<compile_context>
chip_gen: v7x
topology: tpu7x:2x2x1
jax: 0.10.0
libtpu: 0.0.40
codegen_flags: <defaults>
</compile_context>

<pallas_src>
import functools

import jax
import jax.numpy as jnp
from jax.experimental import pallas as pl
from jax.experimental.pallas import tpu as pltpu


def _round_up(n, m):
    return (n + m - 1) // m * m


def _pick_compute_dtype():
    """bf16 elementwise/EUP pipeline on v6e and newer; f32 on <=v5 (no bf16 VALU/EUP)."""
    kind = jax.devices()[0].device_kind.lower()
    old_gen = any(t in kind for t in ("v2", "v3", "v4", "v5"))
    return jnp.float32 if old_gen else jnp.bfloat16


def _derive_vmem_limit_bytes():
    """Per-generation VMEM request with headroom for the compiler's own buffers."""
    cap = 128 * 1024 * 1024
    try:
        cap = int(getattr(pltpu.get_tpu_info(), "vmem_capacity_bytes", cap))
    except Exception:
        pass
    # 3/4 of physical: 48 MiB on v7x (64 MiB), capped at 96 MiB on v5e/v6e (128 MiB).
    return int(min(cap * 3 // 4, 96 * 1024 * 1024))


def tgat_kernel(elT_ref, erT_ref, adjT_ref, nfo_ref, bias_ref, out_ref,
                m_sc, acc_sc, *, num_heads, neg_slope, compute_dtype):
    """One (dst-tile, src-chunk) grid step of the edge softmax + aggregation.

    elT_ref : (H, Ts)     compute  source logits for this src chunk
    erT_ref : (H, Td)     compute  destination logits for this dst tile
    adjT_ref: (Td, Ts)    int8     adjT[v, u] = 1 iff edge u -> v
    nfo_ref : (Ts, F+1)   bf16     [node features | ones] (ones col = denominator)
    bias_ref: (1, F)      f32      head-mean of the module bias
    out_ref : (Td, F)     f32
    m_sc    : (H, Td, 1)   f32     running row max (online softmax)
    acc_sc  : (H, Td, F+1) f32     running [numerator | denominator]
    """
    H = num_heads
    Td = erT_ref.shape[1]
    Fp1 = nfo_ref.shape[1]
    F = Fp1 - 1
    k = pl.program_id(1)

    @pl.when(k == 0)
    def _init():
        m_sc[...] = jnp.full_like(m_sc, -jnp.inf)
        acc_sc[...] = jnp.zeros_like(acc_sc)

    # Stacked-head logits e[h, v, u] = leaky_relu(er[h, v] + el[h, u]).
    e = erT_ref[...][:, :, None] + elT_ref[...][:, None, :]          # (H, Td, Ts)
    e = jnp.maximum(e, neg_slope * e)                                # LeakyReLU, 2 VALU ops

    # Online softmax statistics in f32. Using the *unmasked* chunk max is safe
    # (shift invariance; exp stays <= ~1, no overflow) and avoids a mask pass.
    m_prev = m_sc[...]                                               # (H, Td, 1)
    m_curr = jnp.max(e, axis=-1, keepdims=True).astype(jnp.float32)
    m_new = jnp.maximum(m_prev, m_curr)
    alpha = jnp.exp(m_prev - m_new)                                  # (H, Td, 1) f32

    # Multiplicative mask AFTER exp (no -1e30 bias / compare+select). int8
    # adjacency converted once per tile, shared across heads.
    adj_c = adjT_ref[...].astype(jnp.float32).astype(compute_dtype)  # (Td, Ts) 0/1
    p = jnp.exp(e - m_new.astype(compute_dtype)) * adj_c[None, :, :]  # (H, Td, Ts)

    # One stacked-head MXU matmul (bf16 operands, f32 accumulate); the ones
    # column of nfo yields the softmax denominator for free and keeps it
    # consistent with the bf16-rounded numerator.
    part = jnp.dot(p.reshape(H * Td, -1).astype(jnp.bfloat16), nfo_ref[...],
                   preferred_element_type=jnp.float32)               # (H*Td, F+1)
    acc_sc[...] = alpha * acc_sc[...] + part.reshape(H, Td, Fp1)
    m_sc[...] = m_new

    @pl.when(k == pl.num_programs(1) - 1)
    def _finalize():
        acc = acc_sc[...]
        denom = jnp.maximum(acc[:, :, F:], 1e-20)        # guard padded (edge-less) rows
        rst = acc[:, :, :F] * pl.reciprocal(denom, approx=True)
        rst = jnp.mean(rst, axis=0)                      # head mean -> (Td, F)
        out_ref[...] = (rst + bias_ref[...]).astype(out_ref.dtype)
        # TODO(synk): emit a lane-dense (F, Td) transposed output slab once the
        # in-kernel (Td, F)->(F, Td) relayout cost is verified; output volume is tiny.


def tgat_conv_forward(x, params, adj, nfeat, syn, *, num_heads, out_feats,
                      neg_slope=0.2, tile_dst=128, tile_src=128,
                      compute_dtype=None):
    """x: (N, 100); adj[u, v] = 1 iff edge u->v; nfeat: (N, F); syn: (N, S)."""
    wt, wf, attn_l, attn_r, bias = params
    N = x.shape[0]
    H, F = num_heads, out_feats

    if compute_dtype is None:
        compute_dtype = _pick_compute_dtype()

    # O(N) projections / logits stay in XLA: fuse the two bias-free linears
    # (W = Wt @ Wf) and compute per-head logits once.
    W = wt.astype(jnp.float32) @ wf.astype(jnp.float32)              # (100, H*F)
    z = (x.astype(jnp.float32) @ W).reshape(N, H, F)
    elT = jnp.sum(z * attn_l, axis=-1).T                             # (H, N) src logits
    erT = jnp.sum(z * attn_r, axis=-1).T                             # (H, N) dst logits
    bias_mean = bias.reshape(H, F).mean(axis=0, keepdims=True).astype(jnp.float32)

    Td, Ts = tile_dst, tile_src
    Nd, Ns = _round_up(N, Td), _round_up(N, Ts)

    # Padded operands (padded rows/cols carry zero adjacency -> contribute nothing).
    elT_p = jnp.zeros((H, Ns), compute_dtype).at[:, :N].set(elT.astype(compute_dtype))
    erT_p = jnp.zeros((H, Nd), compute_dtype).at[:, :N].set(erT.astype(compute_dtype))
    adjT_p = jnp.zeros((Nd, Ns), jnp.int8).at[:N, :N].set(
        (adj.T > 0).astype(jnp.int8))                                # (dst, src) int8 mask
    nfo = jnp.concatenate([nfeat.astype(jnp.bfloat16),
                           jnp.ones((N, 1), jnp.bfloat16)], axis=1)  # [feature | 1]
    nfo_p = jnp.zeros((Ns, F + 1), jnp.bfloat16).at[:N, :].set(nfo)

    grid = (Nd // Td, Ns // Ts)

    kernel = functools.partial(tgat_kernel, num_heads=H, neg_slope=neg_slope,
                               compute_dtype=compute_dtype)
    cost = pl.CostEstimate(
        flops=int(2 * H * Nd * Ns * (F + 1) + 6 * H * Nd * Ns),
        transcendentals=int(H * Nd * Ns),
        bytes_accessed=int(adjT_p.size                               # int8
                           + (nfo_p.size * 2 + elT_p.size * elT_p.dtype.itemsize)
                           * (Nd // Td)
                           + erT_p.size * erT_p.dtype.itemsize + Nd * F * 4),
    )

    rst = pl.pallas_call(
        kernel,
        out_shape=jax.ShapeDtypeStruct((Nd, F), jnp.float32),
        grid=grid,
        in_specs=[
            pl.BlockSpec((H, Ts), lambda i, k: (0, k)),       # elT per src chunk
            pl.BlockSpec((H, Td), lambda i, k: (0, i)),       # erT per dst tile
            pl.BlockSpec((Td, Ts), lambda i, k: (i, k)),      # adjT tile (int8)
            pl.BlockSpec((Ts, F + 1), lambda i, k: (k, 0)),   # [nfeat | ones] chunk
            pl.BlockSpec((1, F), lambda i, k: (0, 0)),        # head-mean bias
        ],
        out_specs=pl.BlockSpec((Td, F), lambda i, k: (i, 0)),
        scratch_shapes=[
            pltpu.VMEM((H, Td, 1), jnp.float32),              # running max
            pltpu.VMEM((H, Td, F + 1), jnp.float32),          # running [num | denom]
        ],
        compiler_params=pltpu.CompilerParams(
            dimension_semantics=("parallel", "arbitrary"),    # dst tiles shard across TCs
            vmem_limit_bytes=_derive_vmem_limit_bytes()),
        cost_estimate=cost,
    )(elT_p, erT_p, adjT_p, nfo_p, bias_mean)

    # syn passthrough stays in XLA: no wasted DMA, no masked stores at lane offset F.
    return jnp.concatenate([rst[:N], syn.astype(jnp.float32)], axis=1)


def ref_forward(x, wt, wf, attn_l, attn_r, bias, adj, nfeat, syn, neg_slope):
    """Pure-JAX (f32) reference of the PyTorch forward (dense adjacency)."""
    N = x.shape[0]
    H, F = attn_l.shape[1], attn_l.shape[2]
    h = x @ wt
    z = (h @ wf).reshape(N, H, F)
    el = (z * attn_l).sum(-1)                       # (N, H)
    er = (z * attn_r).sum(-1)                       # (N, H)
    e = er[:, None, :] + el[None, :, :]             # (N_dst, N_src, H)
    e = jnp.where(e > 0, e, neg_slope * e)
    mask = (adj.T)[:, :, None] > 0
    e = jnp.where(mask, e, -1e30)
    a = jax.nn.softmax(e, axis=1)
    a = jnp.where(mask, a, 0.0)
    rst = jnp.einsum('vuh,uf->vhf', a, nfeat)       # (N, H, F)
    rst = rst + bias.reshape(1, H, F)
    rst = rst.mean(axis=1)
    return jnp.concatenate([rst, syn], axis=1)


if __name__ == "__main__":
    N, IN, HID, H, F, S = 256, 100, 64, 4, 8, 16
    key = jax.random.PRNGKey(0)
    ks = jax.random.split(key, 8)

    x = jax.random.normal(ks[0], (N, IN), jnp.float32)
    # Synthetic parameters (shapes from __init__; linear weights pre-transposed).
    wt = jax.random.normal(ks[1], (IN, HID), jnp.float32) / jnp.sqrt(IN)              # type_liner.weight.T
    wf = jax.random.normal(ks[2], (HID, H * F), jnp.float32) * (2.0 / jnp.sqrt(HID))  # fc.weight.T
    attn_l = jax.random.normal(ks[3], (1, H, F), jnp.float32) * 0.3
    attn_r = jax.random.normal(ks[4], (1, H, F), jnp.float32) * 0.3
    # reset_parameters() sets bias to 0; use nonzero values here to exercise the path.
    bias = jax.random.normal(ks[5], (H * F,), jnp.float32) * 0.1

    # Random graph + self loops (guarantees no zero-in-degree node, as DGL requires).
    kadj, kfeat, ksyn = jax.random.split(ks[6], 3)
    adj = (jax.random.uniform(kadj, (N, N)) < 0.3).astype(jnp.float32)
    adj = jnp.maximum(adj, jnp.eye(N, dtype=jnp.float32))
    nfeat = jax.random.normal(kfeat, (N, F), jnp.float32)   # graph.ndata['feature']
    syn = jax.random.normal(ksyn, (N, S), jnp.float32)      # graph.ndata['syntax']

    cdt = _pick_compute_dtype()
    out = tgat_conv_forward(x, (wt, wf, attn_l, attn_r, bias), adj, nfeat, syn,
                            num_heads=H, out_feats=F, neg_slope=0.2,
                            tile_dst=128, tile_src=128, compute_dtype=cdt)
    out = jax.block_until_ready(out)

    ref = ref_forward(x, wt, wf, attn_l, attn_r, bias, adj, nfeat, syn, 0.2)
    assert out.shape == (N, F + S), out.shape
    # Tolerance reflects the intentional reduced-precision path: bf16 MXU
    # operands everywhere, plus the bf16 logit/exp pipeline on v6e+.
    atol, rtol = (3e-2, 2e-2) if cdt == jnp.bfloat16 else (1e-2, 1e-2)
    assert jnp.allclose(out, ref, atol=atol, rtol=rtol), \
        float(jnp.max(jnp.abs(out - ref)))
    print("KERNEL_OK")
</pallas_src>

<mosaic_0001>
module attributes {stable_mosaic.version = 11 : i64} {
  func.func @tgat_kernel(%arg0: i32, %arg1: i32, %arg2: memref<4x128xbf16, #tpu.memory_space<vmem>>, %arg3: memref<4x128xbf16, #tpu.memory_space<vmem>>, %arg4: memref<128x128xi8, #tpu.memory_space<vmem>>, %arg5: memref<128x9xbf16, #tpu.memory_space<vmem>>, %arg6: memref<1x8xf32, #tpu.memory_space<vmem>>, %arg7: memref<128x8xf32, #tpu.memory_space<vmem>>, %arg8: memref<4x128x1xf32, #tpu.memory_space<vmem>>, %arg9: memref<4x128x9xf32, #tpu.memory_space<vmem>>) attributes {dimension_semantics = [#tpu.dimension_semantics<parallel>, #tpu.dimension_semantics<arbitrary>], iteration_bounds = array<i64: 2, 2>, scalar_prefetch = 0 : i64, scratch_operands = 2 : i64, tpu.core_type = #tpu.core_type<tc>, window_params = [{transform_indices = @transform_0, window_bounds = array<i64: 4, 128>}, {transform_indices = @transform_1, window_bounds = array<i64: 4, 128>}, {transform_indices = @transform_2, window_bounds = array<i64: 128, 128>}, {transform_indices = @transform_3, window_bounds = array<i64: 128, 9>}, {pipeline_mode = #tpu.pipeline_mode<synchronous>, transform_indices = @transform_4, window_bounds = array<i64: 1, 8>}, {transform_indices = @transform_5, window_bounds = array<i64: 128, 8>}]} {
    %c0_i32 = arith.constant 0 : i32
    %0 = arith.cmpi eq, %arg1, %c0_i32 : i32
    %1 = arith.extui %0 : i1 to i32
    %c0_i32_0 = arith.constant 0 : i32
    %2 = arith.cmpi ne, %1, %c0_i32_0 : i32
    scf.if %2 {
      %cst_23 = arith.constant 0xFF800000 : f32
      %43 = vector.broadcast %cst_23 : f32 to vector<4x128x1xf32>
      %c0_24 = arith.constant 0 : index
      %c0_25 = arith.constant 0 : index
      %c0_26 = arith.constant 0 : index
      %44 = vector.load %arg8[%c0_24, %c0_25, %c0_26] : memref<4x128x1xf32, #tpu.memory_space<vmem>>, vector<4x128x1xf32>
      tpu.vector_store %arg8[%c0_24, %c0_25, %c0_26], %43 {strides = array<i32>} : memref<4x128x1xf32, #tpu.memory_space<vmem>>, vector<4x128x1xf32>,
      %cst_27 = arith.constant 0.000000e+00 : f32
      %45 = vector.broadcast %cst_27 : f32 to vector<4x128x9xf32>
      %c0_28 = arith.constant 0 : index
      %c0_29 = arith.constant 0 : index
      %c0_30 = arith.constant 0 : index
      %46 = vector.load %arg9[%c0_28, %c0_29, %c0_30] : memref<4x128x9xf32, #tpu.memory_space<vmem>>, vector<4x128x9xf32>
      tpu.vector_store %arg9[%c0_28, %c0_29, %c0_30], %45 {strides = array<i32>} : memref<4x128x9xf32, #tpu.memory_space<vmem>>, vector<4x128x9xf32>,
    } else {
    }
    %c0 = arith.constant 0 : index
    %c0_1 = arith.constant 0 : index
    %3 = vector.load %arg3[%c0, %c0_1] : memref<4x128xbf16, #tpu.memory_space<vmem>>, vector<4x128xbf16>
    %4 = vector.shape_cast %3 : vector<4x128xbf16> to vector<4x128x1xbf16>
    %c0_2 = arith.constant 0 : index
    %c0_3 = arith.constant 0 : index
    %5 = vector.load %arg2[%c0_2, %c0_3] : memref<4x128xbf16, #tpu.memory_space<vmem>>, vector<4x128xbf16>
    %6 = vector.shape_cast %5 : vector<4x128xbf16> to vector<4x1x128xbf16>
    %7 = vector.broadcast %4 : vector<4x128x1xbf16> to vector<4x128x128xbf16>
    %8 = vector.broadcast %6 : vector<4x1x128xbf16> to vector<4x128x128xbf16>
    %9 = arith.addf %7, %8 : vector<4x128x128xbf16>
    %cst = arith.constant 2.001950e-01 : bf16
    %10 = vector.broadcast %cst : bf16 to vector<4x128x128xbf16>
    %11 = arith.mulf %10, %9 : vector<4x128x128xbf16>
    %12 = arith.maximumf %9, %11 : vector<4x128x128xbf16>
    %c0_4 = arith.constant 0 : index
    %c0_5 = arith.constant 0 : index
    %c0_6 = arith.constant 0 : index
    %13 = vector.load %arg8[%c0_4, %c0_5, %c0_6] : memref<4x128x1xf32, #tpu.memory_space<vmem>>, vector<4x128x1xf32>
    %cst_7 = arith.constant dense<0xFF80> : vector<4x128xbf16>
    %14 = vector.multi_reduction <maximumf>, %12, %cst_7 [2] : vector<4x128x128xbf16> to vector<4x128xbf16>
    %15 = vector.shape_cast %14 : vector<4x128xbf16> to vector<4x128x1xbf16>
    %16 = arith.extf %15 : vector<4x128x1xbf16> to vector<4x128x1xf32>
    %17 = arith.maximumf %13, %16 : vector<4x128x1xf32>
    %18 = arith.subf %13, %17 : vector<4x128x1xf32>
    %19 = math.exp %18 : vector<4x128x1xf32>
    %c0_8 = arith.constant 0 : index
    %c0_9 = arith.constant 0 : index
    %20 = vector.load %arg4[%c0_8, %c0_9] : memref<128x128xi8, #tpu.memory_space<vmem>>, vector<128x128xi8>
    %21 = arith.sitofp %20 : vector<128x128xi8> to vector<128x128xf32>
    %22 = arith.truncf %21 : vector<128x128xf32> to vector<128x128xbf16>
    %23 = arith.truncf %17 : vector<4x128x1xf32> to vector<4x128x1xbf16>
    %24 = vector.broadcast %23 : vector<4x128x1xbf16> to vector<4x128x128xbf16>
    %25 = arith.subf %12, %24 : vector<4x128x128xbf16>
    %26 = math.exp %25 : vector<4x128x128xbf16>
    %27 = vector.shape_cast %22 : vector<128x128xbf16> to vector<1x128x128xbf16>
    %28 = vector.broadcast %27 : vector<1x128x128xbf16> to vector<4x128x128xbf16>
    %29 = arith.mulf %26, %28 : vector<4x128x128xbf16>
    %30 = vector.shape_cast %29 : vector<4x128x128xbf16> to vector<512x128xbf16>
    %c0_10 = arith.constant 0 : index
    %c0_11 = arith.constant 0 : index
    %31 = vector.load %arg5[%c0_10, %c0_11] : memref<128x9xbf16, #tpu.memory_space<vmem>>, vector<128x9xbf16>
    %cst_12 = arith.constant dense<0.000000e+00> : vector<512x9xf32>
    %32 = tpu.matmul %30, %31, %cst_12 {dimension_numbers = #tpu.dot_dimension_numbers<[1], [0], [0], [1], [0, 0, 1, 1], [], []>} : vector<512x128xbf16>, vector<128x9xbf16>, vector<512x9xf32> -> vector<512x9xf32>
    %c0_13 = arith.constant 0 : index
    %c0_14 = arith.constant 0 : index
    %c0_15 = arith.constant 0 : index
    %33 = vector.load %arg9[%c0_13, %c0_14, %c0_15] : memref<4x128x9xf32, #tpu.memory_space<vmem>>, vector<4x128x9xf32>
    %34 = vector.broadcast %19 : vector<4x128x1xf32> to vector<4x128x9xf32>
    %35 = arith.mulf %34, %33 : vector<4x128x9xf32>
    %36 = vector.shape_cast %32 : vector<512x9xf32> to vector<4x128x9xf32>
    %37 = arith.addf %35, %36 : vector<4x128x9xf32>
    %c0_16 = arith.constant 0 : index
    %c0_17 = arith.constant 0 : index
    %c0_18 = arith.constant 0 : index
    %38 = vector.load %arg9[%c0_16, %c0_17, %c0_18] : memref<4x128x9xf32, #tpu.memory_space<vmem>>, vector<4x128x9xf32>
    tpu.vector_store %arg9[%c0_16, %c0_17, %c0_18], %37 {strides = array<i32>} : memref<4x128x9xf32, #tpu.memory_space<vmem>>, vector<4x128x9xf32>,
    %c0_19 = arith.constant 0 : index
    %c0_20 = arith.constant 0 : index
    %c0_21 = arith.constant 0 : index
    %39 = vector.load %arg8[%c0_19, %c0_20, %c0_21] : memref<4x128x1xf32, #tpu.memory_space<vmem>>, vector<4x128x1xf32>
    tpu.vector_store %arg8[%c0_19, %c0_20, %c0_21], %17 {strides = array<i32>} : memref<4x128x1xf32, #tpu.memory_space<vmem>>, vector<4x128x1xf32>,
    %c1_i32 = arith.constant 1 : i32
    %40 = arith.cmpi eq, %arg1, %c1_i32 : i32
    %41 = arith.extui %40 : i1 to i32
    %c0_i32_22 = arith.constant 0 : i32
    %42 = arith.cmpi ne, %41, %c0_i32_22 : i32
    scf.if %42 {
      %c0_23 = arith.constant 0 : index
      %c0_24 = arith.constant 0 : index
      %c0_25 = arith.constant 0 : index
      %43 = vector.load %arg9[%c0_23, %c0_24, %c0_25] : memref<4x128x9xf32, #tpu.memory_space<vmem>>, vector<4x128x9xf32>
      %44 = vector.extract_strided_slice %43 {offsets = [0, 0, 8], sizes = [4, 128, 1], strides = [1, 1, 1]} : vector<4x128x9xf32> to vector<4x128x1xf32>
      %cst_26 = arith.constant 9.99999968E-21 : f32
      %45 = vector.broadcast %cst_26 : f32 to vector<4x128x1xf32>
      %46 = arith.maximumf %44, %45 : vector<4x128x1xf32>
      %47 = vector.extract_strided_slice %43 {offsets = [0, 0, 0], sizes = [4, 128, 8], strides = [1, 1, 1]} : vector<4x128x9xf32> to vector<4x128x8xf32>
      %48 = tpu.reciprocal %46 {approx = true} : vector<4x128x1xf32> -> vector<4x128x1xf32>
      %49 = vector.broadcast %48 : vector<4x128x1xf32> to vector<4x128x8xf32>
      %50 = arith.mulf %47, %49 : vector<4x128x8xf32>
      %cst_27 = arith.constant dense<0.000000e+00> : vector<128x8xf32>
      %51 = vector.multi_reduction <add>, %50, %cst_27 [0] : vector<4x128x8xf32> to vector<128x8xf32>
      %cst_28 = arith.constant 4.000000e+00 : f32
      %52 = vector.broadcast %cst_28 : f32 to vector<128x8xf32>
      %53 = arith.divf %51, %52 : vector<128x8xf32>
      %c0_29 = arith.constant 0 : index
      %c0_30 = arith.constant 0 : index
      %54 = vector.load %arg6[%c0_29, %c0_30] : memref<1x8xf32, #tpu.memory_space<vmem>>, vector<1x8xf32>
      %55 = vector.broadcast %54 : vector<1x8xf32> to vector<128x8xf32>
      %56 = arith.addf %53, %55 : vector<128x8xf32>
      %c0_31 = arith.constant 0 : index
      %c0_32 = arith.constant 0 : index
      %57 = vector.load %arg7[%c0_31, %c0_32] : memref<128x8xf32, #tpu.memory_space<vmem>>, vector<128x8xf32>
      tpu.vector_store %arg7[%c0_31, %c0_32], %56 {strides = array<i32>} : memref<128x8xf32, #tpu.memory_space<vmem>>, vector<128x8xf32>,
    } else {
    }
    return
  }
  func.func @transform_0(%arg0: i32, %arg1: i32) -> (i32, i32) {
    %c0_i32 = arith.constant 0 : i32
    %c0_i32_0 = arith.constant 0 : i32
    return %c0_i32, %arg1 : i32, i32
  }
  func.func @transform_1(%arg0: i32, %arg1: i32) -> (i32, i32) {
    %c0_i32 = arith.constant 0 : i32
    %c0_i32_0 = arith.constant 0 : i32
    return %c0_i32, %arg0 : i32, i32
  }
  func.func @transform_2(%arg0: i32, %arg1: i32) -> (i32, i32) {
    %c0_i32 = arith.constant 0 : i32
    return %arg0, %arg1 : i32, i32
  }
  func.func @transform_3(%arg0: i32, %arg1: i32) -> (i32, i32) {
    %c0_i32 = arith.constant 0 : i32
    %c0_i32_0 = arith.constant 0 : i32
    return %arg1, %c0_i32 : i32, i32
  }
  func.func @transform_4(%arg0: i32, %arg1: i32) -> (i32, i32) {
    %c0_i32 = arith.constant 0 : i32
    %c0_i32_0 = arith.constant 0 : i32
    %c0_i32_1 = arith.constant 0 : i32
    return %c0_i32, %c0_i32_0 : i32, i32
  }
  func.func @transform_5(%arg0: i32, %arg1: i32) -> (i32, i32) {
    %c0_i32 = arith.constant 0 : i32
    %c0_i32_0 = arith.constant 0 : i32
    return %arg0, %c0_i32 : i32, i32
  }
}

</mosaic_0001>

<llo_original>
// kernel: tpu_custom_call.1
$region0: #{tpu_custom_call.1}
  #allocation0 [shape = 'u32[]', space=smem, size = 0x4, offset = 0x4, fixed_abs, tag = 'smem constant byte address 0x4 - core index']
  #allocation1 [shape = 'u32[144,128]{1,0:T(1,128)}', space=vmem, size = 0x12000, scoped, tag = 'internal scratch']
  #allocation2 [shape = 'f32[4,128,1]{2,1,0:T(8,128)}', space=vmem, size = 0x40000, scoped, tag = 'scratch operand']
  #allocation3 [shape = 'f32[4,128,9]{2,1,0:T(8,128)}', space=vmem, size = 0x40000, scoped, tag = 'scratch operand']
  %s0 = inlined_call_operand.hbm [shape: bf16[4,256], index: 0, kind: input, shape index: {}]
  %s1 = inlined_call_operand.hbm [shape: bf16[4,256], index: 1, kind: input, shape index: {}]
  %s2 = inlined_call_operand.hbm [shape: s8[256,256], index: 2, kind: input, shape index: {}]
  %s3 = inlined_call_operand.hbm [shape: bf16[256,9], index: 3, kind: input, shape index: {}]
  %s4 = inlined_call_operand.hbm [shape: f32[1,8], index: 4, kind: input, shape index: {}]
  %s5 = inlined_call_operand.hbm [shape: f32[256,8], index: 5, kind: output, shape index: {}]
  %s6 = sld [smem:[#allocation0]]
  $region81: #{tpu_custom_call.1} parent=0
    _
  %s8 = ssub.s32 1, %s6
  %s9 = scalar_select 0, %s8, %s6
  $region1: #{tpu_custom_call.1} parent=0
    #allocation4 [shape = 'u8[2048]{0}', space=vmem, size = 0x800, scoped, tag = 'input window, operand 0']
    #allocation5 [shape = 's32[2]{0}', space=sflag, size = 0x8, scoped, tag = 'scoped memory for tpu_custom_call.1']
    #allocation6 [shape = 's32[2]{0}', space=sflag, size = 0x8, scoped, tag = 'scoped memory for tpu_custom_call.1']
    #allocation7 [shape = 'u8[2048]{0}', space=vmem, size = 0x800, scoped, tag = 'input window, operand 1']
    #allocation8 [shape = 's32[2]{0}', space=sflag, size = 0x8, scoped, tag = 'scoped memory for tpu_custom_call.1']
    #allocation9 [shape = 'u8[32768]{0}', space=vmem, size = 0x8000, scoped, tag = 'input window, operand 2']
    #allocation10 [shape = 'u8[65536]{0}', space=vmem, size = 0x10000, scoped, tag = 'input window, operand 3']
    #allocation11 [shape = 's32[2]{0}', space=sflag, size = 0x8, scoped, tag = 'scoped memory for tpu_custom_call.1']
    #allocation12 [shape = 'u8[512]{0}', space=vmem, size = 0x400, scoped, tag = 'input window, operand 4, single buffered']
    #allocation13 [shape = 'u8[131072]{0}', space=vmem, size = 0x20000, scoped, tag = 'output window, operand 0']
    %10 = vsyncpa [#allocation5], 0
    %s11 = scalar_lea.sflag [#allocation5], 1
    %12 = vsyncpa %s11, 0
    %13 = vsyncpa [#allocation8], 0
    %s14 = scalar_lea.sflag [#allocation8], 1
    %15 = vsyncpa %s14, 0
    %16 = vsyncpa [#allocation11], 0
    %s17 = scalar_lea.sflag [#allocation11], 1
    %18 = vsyncpa %s17, 0
    %19 = vsyncpa [#allocation6], 0
    %s20 = scalar_lea.sflag [#allocation6], 1
    %21 = vsyncpa %s20, 0
    loop: start=0, step=1, limit=6
    $region2: #{tpu_custom_call.1} parent=1 // loop_pre_header
      _
    $region3: #{tpu_custom_call.1} parent=1 // loop_header
      %s23 = sphi 0, %s27
      %p24 = scmp.ge.s32.totalorder %s23, 6
      %s30 = sphi 0, %s42
      %s31 = sphi 0, %s38
      %s32 = sphi 0, %s30
      %s33 = sphi 0, %s31
      %s34 = sphi 0, %s32
      %s35 = sphi 0, %s33
      %s45 = sphi 0, %s47
      %s48 = sphi 0, %s45
      %s49 = sphi 0, %s48
      %s65 = sphi 0, %s49
      %s71 = sphi 0, %s73
      %s74 = sphi 0, %s71
      %s75 = sphi 0, %s74
      %s91 = sphi 0, %s75
      %s99 = sphi 0, %s101
      %s102 = sphi 0, %s99
      %s103 = sphi 0, %s102
      %s119 = sphi 0, %s103
      %s125 = sphi 0, %s127
      %s128 = sphi 0, %s125
      %s129 = sphi 0, %s128
      %s145 = sphi 0, %s129
      %s149 = sphi 0, %s149
      %s151 = sphi 0, %s149
      %s152 = sphi 0, %s151
      %s166 = sphi 0, %s152
      %s172 = sphi 0, %s174
      %s175 = sphi 0, %s172
      %s176 = sphi 0, %s175
      %s192 = sphi 0, %s176
    $region4: #{tpu_custom_call.1} parent=1 // loop_header_branch
      %26 = sbr.rel (%p24) target = $region8
    $region5: #{tpu_custom_call.1} parent=1 // loop_body
      %s28 = ssub.s32 %s23, 1
      %s29 = ssub.s32 %s23, 2
      %s36 = sadd.s32 1, %s31
      %p37 = scmp.ge.s32.totalorder %s36, 2
      %s38 = scalar_select %p37, 0, %s36
      %s39 = sadd.s32 1, %s30
      %s40 = scalar_select %p37, %s39, %s30
      %p41 = scmp.ge.s32.totalorder %s40, 2
      %s42 = scalar_select %p41, 0, %s40
      %s43 = ssub.s32 %s31, %s38
      %p44 = scmp.eq.s32.totalorder %s43, 0
      %s46 = sadd.s32 %s45, 1
      %s47 = scalar_select %p44, %s45, %s46
      %p50 = pneg %p44
      %p51 = scmp.eq.s32.totalorder %s23, 3
      %p52 = por %p50, %p51
      %p53 = scmp.ne.s32.totalorder %s45, %s48
      %p54 = scmp.eq.s32.totalorder %s23, 0
      %p55 = por %p53, %p54
      %p56 = scmp.ne.s32.totalorder %s45, %s48
      %p57 = scmp.eq.s32.totalorder %s28, 3
      %p58 = por %p56, %p57
      %p59 = scmp.ne.s32.totalorder %s48, %s49
      %p60 = scmp.eq.s32.totalorder %s28, 0
      %p61 = por %p59, %p60
      %p62 = scmp.ne.s32.totalorder %s48, %s49
      %p63 = scmp.eq.s32.totalorder %s29, 3
      %p64 = por %p62, %p63
      %p66 = scmp.ne.s32.totalorder %s49, %s65
      %p67 = scmp.eq.s32.totalorder %s29, 0
      %p68 = por %p66, %p67
      %s69 = ssub.s32 %s30, %s42
      %p70 = scmp.eq.s32.totalorder %s69, 0
      %s72 = sadd.s32 %s71, 1
      %s73 = scalar_select %p70, %s71, %s72
      %p76 = pneg %p70
      %p77 = scmp.eq.s32.totalorder %s23, 3
      %p78 = por %p76, %p77
      %p79 = scmp.ne.s32.totalorder %s71, %s74
      %p80 = scmp.eq.s32.totalorder %s23, 0
      %p81 = por %p79, %p80
      %p82 = scmp.ne.s32.totalorder %s71, %s74
      %p83 = scmp.eq.s32.totalorder %s28, 3
      %p84 = por %p82, %p83
      %p85 = scmp.ne.s32.totalorder %s74, %s75
      %p86 = scmp.eq.s32.totalorder %s28, 0
      %p87 = por %p85, %p86
      %p88 = scmp.ne.s32.totalorder %s74, %s75
      %p89 = scmp.eq.s32.totalorder %s29, 3
      %p90 = por %p88, %p89
      %p92 = scmp.ne.s32.totalorder %s75, %s91
      %p93 = scmp.eq.s32.totalorder %s29, 0
      %p94 = por %p92, %p93
      %s95 = ssub.s32 %s30, %s42
      %s96 = ssub.s32 %s31, %s38
      %s97 = sor.u32 %s95, %s96
      %p98 = scmp.eq.s32.totalorder %s97, 0
      %s100 = sadd.s32 %s99, 1
      %s101 = scalar_select %p98, %s99, %s100
      %p104 = pneg %p98
      %p105 = scmp.eq.s32.totalorder %s23, 3
      %p106 = por %p104, %p105
      %p107 = scmp.ne.s32.totalorder %s99, %s102
      %p108 = scmp.eq.s32.totalorder %s23, 0
      %p109 = por %p107, %p108
      %p110 = scmp.ne.s32.totalorder %s99, %s102
      %p111 = scmp.eq.s32.totalorder %s28, 3
      %p112 = por %p110, %p111
      %p113 = scmp.ne.s32.totalorder %s102, %s103
      %p114 = scmp.eq.s32.totalorder %s28, 0
      %p115 = por %p113, %p114
      %p116 = scmp.ne.s32.totalorder %s102, %s103
      %p117 = scmp.eq.s32.totalorder %s29, 3
      %p118 = por %p116, %p117
      %p120 = scmp.ne.s32.totalorder %s103, %s119
      %p121 = scmp.eq.s32.totalorder %s29, 0
      %p122 = por %p120, %p121
      %s123 = ssub.s32 %s31, %s38
      %p124 = scmp.eq.s32.totalorder %s123, 0
      %s126 = sadd.s32 %s125, 1
      %s127 = scalar_select %p124, %s125, %s126
      %p130 = pneg %p124
      %p131 = scmp.eq.s32.totalorder %s23, 3
      %p132 = por %p130, %p131
      %p133 = scmp.ne.s32.totalorder %s125, %s128
      %p134 = scmp.eq.s32.totalorder %s23, 0
      %p135 = por %p133, %p134
      %p136 = scmp.ne.s32.totalorder %s125, %s128
      %p137 = scmp.eq.s32.totalorder %s28, 3
      %p138 = por %p136, %p137
      %p139 = scmp.ne.s32.totalorder %s128, %s129
      %p140 = scmp.eq.s32.totalorder %s28, 0
      %p141 = por %p139, %p140
      %p142 = scmp.ne.s32.totalorder %s128, %s129
      %p143 = scmp.eq.s32.totalorder %s29, 3
      %p144 = por %p142, %p143
      %p146 = scmp.ne.s32.totalorder %s129, %s145
      %p147 = scmp.eq.s32.totalorder %s29, 0
      %p148 = por %p146, %p147
      %s150 = sadd.s32 %s149, 1
      %p153 = scmp.eq.s32.totalorder %s23, 3
      %p154 = scmp.ne.s32.totalorder %s149, %s151
      %p155 = scmp.eq.s32.totalorder %s23, 0
      %p156 = por %p154, %p155
      %p157 = scmp.ne.s32.totalorder %s149, %s151
      %p158 = scmp.eq.s32.totalorder %s28, 3
      %p159 = por %p157, %p158
      %p160 = scmp.ne.s32.totalorder %s151, %s152
      %p161 = scmp.eq.s32.totalorder %s28, 0
      %p162 = por %p160, %p161
      %p163 = scmp.ne.s32.totalorder %s151, %s152
      %p164 = scmp.eq.s32.totalorder %s29, 3
      %p165 = por %p163, %p164
      %p167 = scmp.ne.s32.totalorder %s152, %s166
      %p168 = scmp.eq.s32.totalorder %s29, 0
      %p169 = por %p167, %p168
      %s170 = ssub.s32 %s30, %s42
      %p171 = scmp.eq.s32.totalorder %s170, 0
      %s173 = sadd.s32 %s172, 1
      %s174 = scalar_select %p171, %s172, %s173
      %p177 = pneg %p171
      %p178 = scmp.eq.s32.totalorder %s23, 3
      %p179 = por %p177, %p178
      %p180 = scmp.ne.s32.totalorder %s172, %s175
      %p181 = scmp.eq.s32.totalorder %s23, 0
      %p182 = por %p180, %p181
      %p183 = scmp.ne.s32.totalorder %s172, %s175
      %p184 = scmp.eq.s32.totalorder %s28, 3
      %p185 = por %p183, %p184
      %p186 = scmp.ne.s32.totalorder %s175, %s176
      %p187 = scmp.eq.s32.totalorder %s28, 0
      %p188 = por %p186, %p187
      %p189 = scmp.ne.s32.totalorder %s175, %s176
      %p190 = scmp.eq.s32.totalorder %s29, 3
      %p191 = por %p189, %p190
      %p193 = scmp.ne.s32.totalorder %s176, %s192
      %p194 = scmp.eq.s32.totalorder %s29, 0
      %p195 = por %p193, %p194
      %p196 = scmp.le.s32.totalorder 1, %s23
      %p197 = scmp.lt.s32.totalorder %s23, 5
      %p198 = pnand %p196, %p197
      %p199 = pneg %p198
      // Predicated region
      $region9: #{tpu_custom_call.1} parent=5 // pred_check
        _
      $region10: #{tpu_custom_call.1} parent=5 // pred_check_branch
        %201 = sbr.rel (%p198) target = $region12
      $region11: #{tpu_custom_call.1} parent=5 // pred_region
        %s202 = ssub.s32 %s23, 1
        // Predicated region
        $region13: #{tpu_custom_call.1} parent=11 // pred_check
          %p203 = pneg %p162
        $region14: #{tpu_custom_call.1} parent=11 // pred_check_branch
          %205 = sbr.rel (%p203) target = $region16
        $region15: #{tpu_custom_call.1} parent=11 // pred_region
          %s207 = ssub.s32 16, 16
          %208 = vsyncadd [#allocation11], %s207
          %s210 = sshll.u32 [#allocation12], 4
          %s211 = int_to_ptr.vmem [resolvable:$true] %s210
          %213 = dma.hbm_to_vmem [thread:$0]  %s4, 16, %s211, [#allocation11]
        $region16: #{tpu_custom_call.1} parent=11 // pred_fallthru
          _
      $region12: #{tpu_custom_call.1} parent=5 // pred_fallthru
        _
      %p214 = scmp.lt.s32.totalorder %s23, 4
      // Predicated region
      $region17: #{tpu_custom_call.1} parent=5 // pred_check
        %p215 = pneg %p214
      $region18: #{tpu_custom_call.1} parent=5 // pred_check_branch
        %217 = sbr.rel (%p215) target = $region20
      $region19: #{tpu_custom_call.1} parent=5 // pred_region
        // Predicated region
        $region21: #{tpu_custom_call.1} parent=19 // pred_check
          %p218 = pneg %p55
        $region22: #{tpu_custom_call.1} parent=19 // pred_check_branch
          %220 = sbr.rel (%p218) target = $region24
        $region23: #{tpu_custom_call.1} parent=19 // pred_region
          %s221 = sand.u32 %s45, 1
          %s222 = scalar_lea.sflag [#allocation5], %s221
          %s223 = sand.u32 %s45, 1
          %s224 = smul.addr %s223, 2
          %s225 = scalar_lea.vmem [#allocation4], %s224
          %s227 = ssub.s32 32, 32
          %228 = vsyncadd %s222, %s227
          %s229 = smul.addr %s31, 32
          %s230 = scalar_lea.hbm %s0, %s229
          %s232 = sshll.u32 %s225, 4
          %s233 = int_to_ptr.vmem [resolvable:$true] %s232
          %235 = dma.hbm_to_vmem [thread:$0]  %s230, 32, %s233, %s222
        $region24: #{tpu_custom_call.1} parent=19 // pred_fallthru
          _
        // Predicated region
        $region25: #{tpu_custom_call.1} parent=19 // pred_check
          %p236 = pneg %p81
        $region26: #{tpu_custom_call.1} parent=19 // pred_check_branch
          %238 = sbr.rel (%p236) target = $region28
        $region27: #{tpu_custom_call.1} parent=19 // pred_region
          %s239 = sand.u32 %s23, 1
          %s240 = scalar_lea.sflag [#allocation8], %s239
          %s241 = sand.u32 %s71, 1
          %s242 = smul.addr %s241, 2
          %s243 = scalar_lea.vmem [#allocation7], %s242
          %s245 = ssub.s32 32, 32
          %246 = vsyncadd %s240, %s245
          %s247 = smul.addr %s30, 32
          %s248 = scalar_lea.hbm %s1, %s247
          %s250 = sshll.u32 %s243, 4
          %s251 = int_to_ptr.vmem [resolvable:$true] %s250
          %253 = dma.hbm_to_vmem [thread:$0]  %s248, 32, %s251, %s240
        $region28: #{tpu_custom_call.1} parent=19 // pred_fallthru
          _
        // Predicated region
        $region29: #{tpu_custom_call.1} parent=19 // pred_check
          %p254 = pneg %p109
        $region30: #{tpu_custom_call.1} parent=19 // pred_check_branch
          %256 = sbr.rel (%p254) target = $region32
        $region31: #{tpu_custom_call.1} parent=19 // pred_region
          %s257 = sand.u32 %s23, 1
          %s258 = scalar_lea.sflag [#allocation8], %s257
          %s259 = sand.u32 %s99, 1
          %s260 = smul.addr %s259, 32
          %s261 = scalar_lea.vmem [#allocation9], %s260
          %s262 = smul.u32 4, %s30
          %s264 = ssub.s32 512, 512
          %265 = vsyncadd %s258, %s264
          %s266 = smul.addr %s262, 2
          %s267 = sadd.s32 %s31, %s266
          %s268 = smul.addr %s267, 128
          %s269 = scalar_lea.hbm %s2, %s268
          %s270 = sshll.u32 %s261, 4
          %s271 = int_to_ptr.vmem [resolvable:$true] %s270
          %276 = dma.hbm_to_vmem [thread:$0]  %s269, 512, %s271, %s258, 256, 128, 8
        $region32: #{tpu_custom_call.1} parent=19 // pred_fallthru
          _
        // Predicated region
        $region33: #{tpu_custom_call.1} parent=19 // pred_check
          %p277 = pneg %p135
        $region34: #{tpu_custom_call.1} parent=19 // pred_check_branch
          %279 = sbr.rel (%p277) target = $region36
        $region35: #{tpu_custom_call.1} parent=19 // pred_region
          %s280 = sand.u32 %s23, 1
          %s281 = scalar_lea.sflag [#allocation11], %s280
          %s282 = sand.u32 %s125, 1
          %s283 = smul.addr %s282, 64
          %s284 = scalar_lea.vmem [#allocation10], %s283
          %s285 = smul.u32 16, %s31
          %s287 = ssub.s32 1024, 1024
          %288 = vsyncadd %s281, %s287
          %s289 = smul.addr %s285, 64
          %s290 = scalar_lea.hbm %s3, %s289
          %s291 = sshll.u32 %s284, 4
          %s292 = int_to_ptr.vmem [resolvable:$true] %s291
          %297 = dma.hbm_to_vmem [thread:$0]  %s290, 1024, %s292, %s281, 64, 64, 4
        $region36: #{tpu_custom_call.1} parent=19 // pred_fallthru
          _
      $region20: #{tpu_custom_call.1} parent=5 // pred_fallthru
        _
      %p298 = scmp.le.s32.totalorder 1, %s23
      %p299 = scmp.lt.s32.totalorder %s23, 5
      %p300 = pnand %p298, %p299
      %p301 = pneg %p300
      // Predicated region
      $region37: #{tpu_custom_call.1} parent=5 // pred_check
        _
      $region38: #{tpu_custom_call.1} parent=5 // pred_check_branch
        %303 = sbr.rel (%p300) target = $region40
      $region39: #{tpu_custom_call.1} parent=5 // pred_region
        %s304 = ssub.s32 %s23, 1
        %s305 = sand.u32 %s48, 1
        %s306 = scalar_lea.sflag [#allocation5], %s305
        %s307 = sand.u32 %s48, 1
        %s308 = smul.addr %s307, 2
        %s309 = scalar_lea.vmem [#allocation4], %s308
        // Predicated region
        $region41: #{tpu_custom_call.1} parent=39 // pred_check
          %p310 = pneg %p61
        $region42: #{tpu_custom_call.1} parent=39 // pred_check_branch
          %312 = sbr.rel (%p310) target = $region44
        $region43: #{tpu_custom_call.1} parent=39 // pred_region
          %313 = dma.done %s306, 32
        $region44: #{tpu_custom_call.1} parent=39 // pred_fallthru
          _
        %s314 = sand.u32 %s28, 1
        %s315 = scalar_lea.sflag [#allocation8], %s314
        %s316 = sand.u32 %s74, 1
        %s317 = smul.addr %s316, 2
        %s318 = scalar_lea.vmem [#allocation7], %s317
        // Predicated region
        $region45: #{tpu_custom_call.1} parent=39 // pred_check
          %p319 = pneg %p87
        $region46: #{tpu_custom_call.1} parent=39 // pred_check_branch
          %321 = sbr.rel (%p319) target = $region48
        $region47: #{tpu_custom_call.1} parent=39 // pred_region
          %322 = dma.done %s315, 32
        $region48: #{tpu_custom_call.1} parent=39 // pred_fallthru
          _
        %s323 = sand.u32 %s28, 1
        %s324 = scalar_lea.sflag [#allocation8], %s323
        %s325 = sand.u32 %s102, 1
        %s326 = smul.addr %s325, 32
        %s327 = scalar_lea.vmem [#allocation9], %s326
        // Predicated region
        $region49: #{tpu_custom_call.1} parent=39 // pred_check
          %p328 = pneg %p115
        $region50: #{tpu_custom_call.1} parent=39 // pred_check_branch
          %330 = sbr.rel (%p328) target = $region52
        $region51: #{tpu_custom_call.1} parent=39 // pred_region
          %331 = dma.done %s324, 512
        $region52: #{tpu_custom_call.1} parent=39 // pred_fallthru
          _
        %s332 = sand.u32 %s28, 1
        %s333 = scalar_lea.sflag [#allocation11], %s332
        %s334 = sand.u32 %s128, 1
        %s335 = smul.addr %s334, 64
        %s336 = scalar_lea.vmem [#allocation10], %s335
        // Predicated region
        $region53: #{tpu_custom_call.1} parent=39 // pred_check
          %p337 = pneg %p141
        $region54: #{tpu_custom_call.1} parent=39 // pred_check_branch
          %339 = sbr.rel (%p337) target = $region56
        $region55: #{tpu_custom_call.1} parent=39 // pred_region
          %340 = dma.done %s333, 1024
        $region56: #{tpu_custom_call.1} parent=39 // pred_fallthru
          _
        // Predicated region
        $region57: #{tpu_custom_call.1} parent=39 // pred_check
          %p341 = pneg %p162
        $region58: #{tpu_custom_call.1} parent=39 // pred_check_branch
          %343 = sbr.rel (%p341) target = $region60
        $region59: #{tpu_custom_call.1} parent=39 // pred_region
          %344 = dma.done [#allocation11], 16
        $region60: #{tpu_custom_call.1} parent=39 // pred_fallthru
          _
        %s345 = sand.u32 %s48, 1
        %s346 = scalar_lea.sflag [#allocation5], %s345
        %s347 = sand.u32 %s48, 1
        %s348 = smul.addr %s347, 2
        %s349 = scalar_lea.vmem [#allocation4], %s348
        %p350 = pneg %p61
        %p351 = pneg %p58
        %s352 = sand.u32 %s28, 1
        %s353 = scalar_lea.sflag [#allocation8], %s352
        %s354 = sand.u32 %s74, 1
        %s355 = smul.addr %s354, 2
        %s356 = scalar_lea.vmem [#allocation7], %s355
        %p357 = pneg %p87
        %p358 = pneg %p84
        %s359 = sand.u32 %s28, 1
        %s360 = scalar_lea.sflag [#allocation8], %s359
        %s361 = sand.u32 %s102, 1
        %s362 = smul.addr %s361, 32
        %s363 = scalar_lea.vmem [#allocation9], %s362
        %p364 = pneg %p115
        %p365 = pneg %p112
        %s366 = sand.u32 %s28, 1
        %s367 = scalar_lea.sflag [#allocation11], %s366
        %s368 = sand.u32 %s128, 1
        %s369 = smul.addr %s368, 64
        %s370 = scalar_lea.vmem [#allocation10], %s369
        %p371 = pneg %p141
        %p372 = pneg %p138
        %p373 = pneg %p162
        %p374 = pneg %p159
        %p375 = pneg %p188
        %p376 = pneg %p185
        %s377 = sand.u32 %s175, 1
        %s378 = scalar_lea.sflag [#allocation6], %s377
        %s379 = sand.u32 %s175, 1
        %s380 = smul.addr %s379, 128
        %s381 = scalar_lea.vmem [#allocation13], %s380
        %s382 = smul.u32 4, %s32
        %s383 = smul.u32 16, %s33
        %s384 = smul.u32 16, %s32
        %p387 = scmp.eq.s32.totalorder %s33, 0
        // Predicated region
        $region61: #{tpu_custom_call.1} parent=39 // pred_check
          %p388 = pneg %p387
        $region62: #{tpu_custom_call.1} parent=39 // pred_check_branch
          %390 = sbr.rel (%p388) target = $region64
        $region63: #{tpu_custom_call.1} parent=39 // pred_region
          %vm391 = vcmask 7168
          %392 = vst.msk [vmem:[#allocation2] sm:$0xff] %vm391, -inf
          %393 = vst.msk [vmem:[#allocation2 + $0x8] sm:$0xff] %vm391, -inf
          %394 = vst.msk [vmem:[#allocation2 + $0x10] sm:$0xff] %vm391, -inf
          %395 = vst.msk [vmem:[#allocation2 + $0x18] sm:$0xff] %vm391, -inf
          %396 = vst.msk [vmem:[#allocation2 + $0x20] sm:$0xff] %vm391, -inf
          %397 = vst.msk [vmem:[#allocation2 + $0x28] sm:$0xff] %vm391, -inf
          %398 = vst.msk [vmem:[#allocation2 + $0x30] sm:$0xff] %vm391, -inf
          %399 = vst.msk [vmem:[#allocation2 + $0x38] sm:$0xff] %vm391, -inf
          %400 = vst.msk [vmem:[#allocation2 + $0x40] sm:$0xff] %vm391, -inf
          %401 = vst.msk [vmem:[#allocation2 + $0x48] sm:$0xff] %vm391, -inf
          %402 = vst.msk [vmem:[#allocation2 + $0x50] sm:$0xff] %vm391, -inf
          %403 = vst.msk [vmem:[#allocation2 + $0x58] sm:$0xff] %vm391, -inf
          %404 = vst.msk [vmem:[#allocation2 + $0x60] sm:$0xff] %vm391, -inf
          %405 = vst.msk [vmem:[#allocation2 + $0x68] sm:$0xff] %vm391, -inf
          %406 = vst.msk [vmem:[#allocation2 + $0x70] sm:$0xff] %vm391, -inf
          %407 = vst.msk [vmem:[#allocation2 + $0x78] sm:$0xff] %vm391, -inf
          %408 = vst.msk [vmem:[#allocation2 + $0x80] sm:$0xff] %vm391, -inf
          %409 = vst.msk [vmem:[#allocation2 + $0x88] sm:$0xff] %vm391, -inf
          %410 = vst.msk [vmem:[#allocation2 + $0x90] sm:$0xff] %vm391, -inf
          %411 = vst.msk [vmem:[#allocation2 + $0x98] sm:$0xff] %vm391, -inf
          %412 = vst.msk [vmem:[#allocation2 + $0xa0] sm:$0xff] %vm391, -inf
          %413 = vst.msk [vmem:[#allocation2 + $0xa8] sm:$0xff] %vm391, -inf
          %414 = vst.msk [vmem:[#allocation2 + $0xb0] sm:$0xff] %vm391, -inf
          %415 = vst.msk [vmem:[#allocation2 + $0xb8] sm:$0xff] %vm391, -inf
          %416 = vst.msk [vmem:[#allocation2 + $0xc0] sm:$0xff] %vm391, -inf
          %417 = vst.msk [vmem:[#allocation2 + $0xc8] sm:$0xff] %vm391, -inf
          %418 = vst.msk [vmem:[#allocation2 + $0xd0] sm:$0xff] %vm391, -inf
          %419 = vst.msk [vmem:[#allocation2 + $0xd8] sm:$0xff] %vm391, -inf
          %420 = vst.msk [vmem:[#allocation2 + $0xe0] sm:$0xff] %vm391, -inf
          %421 = vst.msk [vmem:[#allocation2 + $0xe8] sm:$0xff] %vm391, -inf
          %422 = vst.msk [vmem:[#allocation2 + $0xf0] sm:$0xff] %vm391, -inf
          %423 = vst.msk [vmem:[#allocation2 + $0xf8] sm:$0xff] %vm391, -inf
          %424 = vst.msk [vmem:[#allocation2 + $0x100] sm:$0xff] %vm391, -inf
          %425 = vst.msk [vmem:[#allocation2 + $0x108] sm:$0xff] %vm391, -inf
          %426 = vst.msk [vmem:[#allocation2 + $0x110] sm:$0xff] %vm391, -inf
          %427 = vst.msk [vmem:[#allocation2 + $0x118] sm:$0xff] %vm391, -inf
          %428 = vst.msk [vmem:[#allocation2 + $0x120] sm:$0xff] %vm391, -inf
          %429 = vst.msk [vmem:[#allocation2 + $0x128] sm:$0xff] %vm391, -inf
          %430 = vst.msk [vmem:[#allocation2 + $0x130] sm:$0xff] %vm391, -inf
          %431 = vst.msk [vmem:[#allocation2 + $0x138] sm:$0xff] %vm391, -inf
          %432 = vst.msk [vmem:[#allocation2 + $0x140] sm:$0xff] %vm391, -inf
          %433 = vst.msk [vmem:[#allocation2 + $0x148] sm:$0xff] %vm391, -inf
          %434 = vst.msk [vmem:[#allocation2 + $0x150] sm:$0xff] %vm391, -inf
          %435 = vst.msk [vmem:[#allocation2 + $0x158] sm:$0xff] %vm391, -inf
          %436 = vst.msk [vmem:[#allocation2 + $0x160] sm:$0xff] %vm391, -inf
          %437 = vst.msk [vmem:[#allocation2 + $0x168] sm:$0xff] %vm391, -inf
          %438 = vst.msk [vmem:[#allocation2 + $0x170] sm:$0xff] %vm391, -inf
          %439 = vst.msk [vmem:[#allocation2 + $0x178] sm:$0xff] %vm391, -inf
          %440 = vst.msk [vmem:[#allocation2 + $0x180] sm:$0xff] %vm391, -inf
          %441 = vst.msk [vmem:[#allocation2 + $0x188] sm:$0xff] %vm391, -inf
          %442 = vst.msk [vmem:[#allocation2 + $0x190] sm:$0xff] %vm391, -inf
          %443 = vst.msk [vmem:[#allocation2 + $0x198] sm:$0xff] %vm391, -inf
          %444 = vst.msk [vmem:[#allocation2 + $0x1a0] sm:$0xff] %vm391, -inf
          %445 = vst.msk [vmem:[#allocation2 + $0x1a8] sm:$0xff] %vm391, -inf
          %446 = vst.msk [vmem:[#allocation2 + $0x1b0] sm:$0xff] %vm391, -inf
          %447 = vst.msk [vmem:[#allocation2 + $0x1b8] sm:$0xff] %vm391, -inf
          %448 = vst.msk [vmem:[#allocation2 + $0x1c0] sm:$0xff] %vm391, -inf
          %449 = vst.msk [vmem:[#allocation2 + $0x1c8] sm:$0xff] %vm391, -inf
          %450 = vst.msk [vmem:[#allocation2 + $0x1d0] sm:$0xff] %vm391, -inf
          %451 = vst.msk [vmem:[#allocation2 + $0x1d8] sm:$0xff] %vm391, -inf
          %452 = vst.msk [vmem:[#allocation2 + $0x1e0] sm:$0xff] %vm391, -inf
          %453 = vst.msk [vmem:[#allocation2 + $0x1e8] sm:$0xff] %vm391, -inf
          %454 = vst.msk [vmem:[#allocation2 + $0x1f0] sm:$0xff] %vm391, -inf
          %455 = vst.msk [vmem:[#allocation2 + $0x1f8] sm:$0xff] %vm391, -inf
          %vm456 = vcmask 72704
          %457 = vst.msk [vmem:[#allocation3] sm:$0xff] %vm456, 0.0
          %458 = vst.msk [vmem:[#allocation3 + $0x8] sm:$0xff] %vm456, 0.0
          %459 = vst.msk [vmem:[#allocation3 + $0x10] sm:$0xff] %vm456, 0.0
          %460 = vst.msk [vmem:[#allocation3 + $0x18] sm:$0xff] %vm456, 0.0
          %461 = vst.msk [vmem:[#allocation3 + $0x20] sm:$0xff] %vm456, 0.0
          %462 = vst.msk [vmem:[#allocation3 + $0x28] sm:$0xff] %vm456, 0.0
          %463 = vst.msk [vmem:[#allocation3 + $0x30] sm:$0xff] %vm456, 0.0
          %464 = vst.msk [vmem:[#allocation3 + $0x38] sm:$0xff] %vm456, 0.0
          %465 = vst.msk [vmem:[#allocation3 + $0x40] sm:$0xff] %vm456, 0.0
          %466 = vst.msk [vmem:[#allocation3 + $0x48] sm:$0xff] %vm456, 0.0
          %467 = vst.msk [vmem:[#allocation3 + $0x50] sm:$0xff] %vm456, 0.0
          %468 = vst.msk [vmem:[#allocation3 + $0x58] sm:$0xff] %vm456, 0.0
          %469 = vst.msk [vmem:[#allocation3 + $0x60] sm:$0xff] %vm456, 0.0
          %470 = vst.msk [vmem:[#allocation3 + $0x68] sm:$0xff] %vm456, 0.0
          %471 = vst.msk [vmem:[#allocation3 + $0x70] sm:$0xff] %vm456, 0.0
          %472 = vst.msk [vmem:[#allocation3 + $0x78] sm:$0xff] %vm456, 0.0
          %473 = vst.msk [vmem:[#allocation3 + $0x80] sm:$0xff] %vm456, 0.0
          %474 = vst.msk [vmem:[#allocation3 + $0x88] sm:$0xff] %vm456, 0.0
          %475 = vst.msk [vmem:[#allocation3 + $0x90] sm:$0xff] %vm456, 0.0
          %476 = vst.msk [vmem:[#allocation3 + $0x98] sm:$0xff] %vm456, 0.0
          %477 = vst.msk [vmem:[#allocation3 + $0xa0] sm:$0xff] %vm456, 0.0
          %478 = vst.msk [vmem:[#allocation3 + $0xa8] sm:$0xff] %vm456, 0.0
          %479 = vst.msk [vmem:[#allocation3 + $0xb0] sm:$0xff] %vm456, 0.0
          %480 = vst.msk [vmem:[#allocation3 + $0xb8] sm:$0xff] %vm456, 0.0
          %481 = vst.msk [vmem:[#allocation3 + $0xc0] sm:$0xff] %vm456, 0.0
          %482 = vst.msk [vmem:[#allocation3 + $0xc8] sm:$0xff] %vm456, 0.0
          %483 = vst.msk [vmem:[#allocation3 + $0xd0] sm:$0xff] %vm456, 0.0
          %484 = vst.msk [vmem:[#allocation3 + $0xd8] sm:$0xff] %vm456, 0.0
          %485 = vst.msk [vmem:[#allocation3 + $0xe0] sm:$0xff] %vm456, 0.0
          %486 = vst.msk [vmem:[#allocation3 + $0xe8] sm:$0xff] %vm456, 0.0
          %487 = vst.msk [vmem:[#allocation3 + $0xf0] sm:$0xff] %vm456, 0.0
          %488 = vst.msk [vmem:[#allocation3 + $0xf8] sm:$0xff] %vm456, 0.0
          %489 = vst.msk [vmem:[#allocation3 + $0x100] sm:$0xff] %vm456, 0.0
          %490 = vst.msk [vmem:[#allocation3 + $0x108] sm:$0xff] %vm456, 0.0
          %491 = vst.msk [vmem:[#allocation3 + $0x110] sm:$0xff] %vm456, 0.0
          %492 = vst.msk [vmem:[#allocation3 + $0x118] sm:$0xff] %vm456, 0.0
          %493 = vst.msk [vmem:[#allocation3 + $0x120] sm:$0xff] %vm456, 0.0
          %494 = vst.msk [vmem:[#allocation3 + $0x128] sm:$0xff] %vm456, 0.0
          %495 = vst.msk [vmem:[#allocation3 + $0x130] sm:$0xff] %vm456, 0.0
          %496 = vst.msk [vmem:[#allocation3 + $0x138] sm:$0xff] %vm456, 0.0
          %497 = vst.msk [vmem:[#allocation3 + $0x140] sm:$0xff] %vm456, 0.0
          %498 = vst.msk [vmem:[#allocation3 + $0x148] sm:$0xff] %vm456, 0.0
          %499 = vst.msk [vmem:[#allocation3 + $0x150] sm:$0xff] %vm456, 0.0
          %500 = vst.msk [vmem:[#allocation3 + $0x158] sm:$0xff] %vm456, 0.0
          %501 = vst.msk [vmem:[#allocation3 + $0x160] sm:$0xff] %vm456, 0.0
          %502 = vst.msk [vmem:[#allocation3 + $0x168] sm:$0xff] %vm456, 0.0
          %503 = vst.msk [vmem:[#allocation3 + $0x170] sm:$0xff] %vm456, 0.0
          %504 = vst.msk [vmem:[#allocation3 + $0x178] sm:$0xff] %vm456, 0.0
          %505 = vst.msk [vmem:[#allocation3 + $0x180] sm:$0xff] %vm456, 0.0
          %506 = vst.msk [vmem:[#allocation3 + $0x188] sm:$0xff] %vm456, 0.0
          %507 = vst.msk [vmem:[#allocation3 + $0x190] sm:$0xff] %vm456, 0.0
          %508 = vst.msk [vmem:[#allocation3 + $0x198] sm:$0xff] %vm456, 0.0
          %509 = vst.msk [vmem:[#allocation3 + $0x1a0] sm:$0xff] %vm456, 0.0
          %510 = vst.msk [vmem:[#allocation3 + $0x1a8] sm:$0xff] %vm456, 0.0
          %511 = vst.msk [vmem:[#allocation3 + $0x1b0] sm:$0xff] %vm456, 0.0
          %512 = vst.msk [vmem:[#allocation3 + $0x1b8] sm:$0xff] %vm456, 0.0
          %513 = vst.msk [vmem:[#allocation3 + $0x1c0] sm:$0xff] %vm456, 0.0
          %514 = vst.msk [vmem:[#allocation3 + $0x1c8] sm:$0xff] %vm456, 0.0
          %515 = vst.msk [vmem:[#allocation3 + $0x1d0] sm:$0xff] %vm456, 0.0
          %516 = vst.msk [vmem:[#allocation3 + $0x1d8] sm:$0xff] %vm456, 0.0
          %517 = vst.msk [vmem:[#allocation3 + $0x1e0] sm:$0xff] %vm456, 0.0
          %518 = vst.msk [vmem:[#allocation3 + $0x1e8] sm:$0xff] %vm456, 0.0
          %519 = vst.msk [vmem:[#allocation3 + $0x1f0] sm:$0xff] %vm456, 0.0
          %520 = vst.msk [vmem:[#allocation3 + $0x1f8] sm:$0xff] %vm456, 0.0
        $region64: #{tpu_custom_call.1} parent=39 // pred_fallthru
          _
        %v521 = vld [vmem:[%s318] sm:$0x3]
        %v523 = vpack.i.b16 %v521, %v521
        %v525 = vlaneseq
        %v526 = vshrl.u32 %v525, 7
        %v527 = vsub.s32 0, %v526
        %v528 = vrot.slane %v523, %v527
        %530 = vbcast.lane.c.b16.xlu0 %v528, 256
        %v531 = vpop.permute.xlu0 %530
        %s533 = sor.u32 256, 16
        %534 = vbcast.lane.c.b16.xlu0 %v528, %s533
        %v535 = vpop.permute.xlu0 %534
        %s537 = sor.u32 256, 32
        %538 = vbcast.lane.c.b16.xlu0 %v528, %s537
        %v539 = vpop.permute.xlu0 %538
        %s541 = sor.u32 256, 48
        %542 = vbcast.lane.c.b16.xlu0 %v528, %s541
        %v543 = vpop.permute.xlu0 %542
        %s545 = sor.u32 256, 64
        %546 = vbcast.lane.c.b16.xlu0 %v528, %s545
        %v547 = vpop.permute.xlu0 %546
        %s549 = sor.u32 256, 80
        %550 = vbcast.lane.c.b16.xlu0 %v528, %s549
        %v551 = vpop.permute.xlu0 %550
        %s553 = sor.u32 256, 96
        %554 = vbcast.lane.c.b16.xlu0 %v528, %s553
        %v555 = vpop.permute.xlu0 %554
        %s557 = sor.u32 256, 112
        %558 = vbcast.lane.c.b16.xlu0 %v528, %s557
        %v559 = vpop.permute.xlu0 %558
        %v560 = vshrl.u32 %v521, 16
        %v561 = vpack.i.b16 %v560, %v560
        %v563 = vlaneseq
        %v564 = vshrl.u32 %v563, 7
        %v565 = vsub.s32 0, %v564
        %v566 = vrot.slane %v561, %v565
        %568 = vbcast.lane.c.b16.xlu0 %v566, 256
        %v569 = vpop.permute.xlu0 %568
        %s571 = sor.u32 256, 16
        %572 = vbcast.lane.c.b16.xlu0 %v566, %s571
        %v573 = vpop.permute.xlu0 %572
        %s575 = sor.u32 256, 32
        %576 = vbcast.lane.c.b16.xlu0 %v566, %s575
        %v577 = vpop.permute.xlu0 %576
        %s579 = sor.u32 256, 48
        %580 = vbcast.lane.c.b16.xlu0 %v566, %s579
        %v581 = vpop.permute.xlu0 %580
        %s583 = sor.u32 256, 64
        %584 = vbcast.lane.c.b16.xlu0 %v566, %s583
        %v585 = vpop.permute.xlu0 %584
        %s587 = sor.u32 256, 80
        %588 = vbcast.lane.c.b16.xlu0 %v566, %s587
        %v589 = vpop.permute.xlu0 %588
        %s591 = sor.u32 256, 96
        %592 = vbcast.lane.c.b16.xlu0 %v566, %s591
        %v593 = vpop.permute.xlu0 %592
        %s595 = sor.u32 256, 112
        %596 = vbcast.lane.c.b16.xlu0 %v566, %s595
        %v597 = vpop.permute.xlu0 %596
        %v598 = vlaneseq
        %v599 = vshrl.u32 %v598, 7
        %v600 = vsub.s32 1, %v599
        %v601 = vrot.slane %v523, %v600
        %603 = vbcast.lane.c.b16.xlu0 %v601, 256
        %v604 = vpop.permute.xlu0 %603
        %s606 = sor.u32 256, 16
        %607 = vbcast.lane.c.b16.xlu0 %v601, %s606
        %v608 = vpop.permute.xlu0 %607
        %s610 = sor.u32 256, 32
        %611 = vbcast.lane.c.b16.xlu0 %v601, %s610
        %v612 = vpop.permute.xlu0 %611
        %s614 = sor.u32 256, 48
        %615 = vbcast.lane.c.b16.xlu0 %v601, %s614
        %v616 = vpop.permute.xlu0 %615
        %s618 = sor.u32 256, 64
        %619 = vbcast.lane.c.b16.xlu0 %v601, %s618
        %v620 = vpop.permute.xlu0 %619
        %s622 = sor.u32 256, 80
        %623 = vbcast.lane.c.b16.xlu0 %v601, %s622
        %v624 = vpop.permute.xlu0 %623
        %s626 = sor.u32 256, 96
        %627 = vbcast.lane.c.b16.xlu0 %v601, %s626
        %v628 = vpop.permute.xlu0 %627
        %s630 = sor.u32 256, 112
        %631 = vbcast.lane.c.b16.xlu0 %v601, %s630
        %v632 = vpop.permute.xlu0 %631
        %v633 = vlaneseq
        %v634 = vshrl.u32 %v633, 7
        %v635 = vsub.s32 1, %v634
        %v636 = vrot.slane %v561, %v635
        %638 = vbcast.lane.c.b16.xlu0 %v636, 256
        %v639 = vpop.permute.xlu0 %638
        %s641 = sor.u32 256, 16
        %642 = vbcast.lane.c.b16.xlu0 %v636, %s641
        %v643 = vpop.permute.xlu0 %642
        %s645 = sor.u32 256, 32
        %646 = vbcast.lane.c.b16.xlu0 %v636, %s645
        %v647 = vpop.permute.xlu0 %646
        %s649 = sor.u32 256, 48
        %650 = vbcast.lane.c.b16.xlu0 %v636, %s649
        %v651 = vpop.permute.xlu0 %650
        %s653 = sor.u32 256, 64
        %654 = vbcast.lane.c.b16.xlu0 %v636, %s653
        %v655 = vpop.permute.xlu0 %654
        %s657 = sor.u32 256, 80
        %658 = vbcast.lane.c.b16.xlu0 %v636, %s657
        %v659 = vpop.permute.xlu0 %658
        %s661 = sor.u32 256, 96
        %662 = vbcast.lane.c.b16.xlu0 %v636, %s661
        %v663 = vpop.permute.xlu0 %662
        %s665 = sor.u32 256, 112
        %666 = vbcast.lane.c.b16.xlu0 %v636, %s665
        %v667 = vpop.permute.xlu0 %666
        %v668 = vld [vmem:[%s309] sm:$0x3]
        %v671 = vunpack.c.l.s4 1966171168
        %v672 = vunpack.c.0.s8 %v671
        %v673 = vlaneseq
        %v674 = vshrl.u32 %v673, 7
        %v675 = vsub.s32 %v672, %v674
        %v676 = vrot.slane %v668, %v675
        %v677 = vcombine.high %v676, %v676
        %v678 = vunpack.i.l.s16 %v676
        %v679 = vunpack.i.h.s16 %v676
        %v680 = vunpack.i.l.s16 %v677
        %v681 = vunpack.i.h.s16 %v677
        %v682 = vpack.i.b16 %v678, %v678
        %v683 = vpack.i.b16 %v679, %v679
        %v684 = vpack.i.b16 %v680, %v680
        %v685 = vpack.i.b16 %v681, %v681
        %v686 = vlaneseq
        %v687 = vshrl.u32 %v686, 7
        %v688 = vsub.s32 0, %v687
        %v689 = vrot.slane %v682, %v688
        %v690 = vlaneseq
        %v691 = vshrl.u32 %v690, 7
        %v692 = vsub.s32 0, %v691
        %v693 = vrot.slane %v683, %v692
        %v694 = vlaneseq
        %v695 = vshrl.u32 %v694, 7
        %v696 = vsub.s32 0, %v695
        %v697 = vrot.slane %v684, %v696
        %v698 = vlaneseq
        %v699 = vshrl.u32 %v698, 7
        %v700 = vsub.s32 0, %v699
        %v701 = vrot.slane %v685, %v700
        %v703 = vpack.i.b16 %v689, %v689
        %v705 = vlaneseq
        %v706 = vshrl.u32 %v705, 7
        %v707 = vsub.s32 0, %v706
        %v708 = vrot.slane %v703, %v707
        %v710 = vpack.i.b16 %v693, %v693
        %v712 = vlaneseq
        %v713 = vshrl.u32 %v712, 7
        %v714 = vsub.s32 0, %v713
        %v715 = vrot.slane %v710, %v714
        %v717 = vpack.i.b16 %v697, %v697
        %v719 = vlaneseq
        %v720 = vshrl.u32 %v719, 7
        %v721 = vsub.s32 0, %v720
        %v722 = vrot.slane %v717, %v721
        %v724 = vpack.i.b16 %v701, %v701
        %v726 = vlaneseq
        %v727 = vshrl.u32 %v726, 7
        %v728 = vsub.s32 0, %v727
        %v729 = vrot.slane %v724, %v728
        %v730 = vadd.bf16 %v531, %v708
        %v731 = vadd.bf16 %v535, %v708
        %v732 = vadd.bf16 %v539, %v708
        %v733 = vadd.bf16 %v543, %v708
        %v734 = vadd.bf16 %v547, %v708
        %v735 = vadd.bf16 %v551, %v708
        %v736 = vadd.bf16 %v555, %v708
        %v737 = vadd.bf16 %v559, %v708
        %v738 = vadd.bf16 %v569, %v715
        %v739 = vadd.bf16 %v573, %v715
        %v740 = vadd.bf16 %v577, %v715
        %v741 = vadd.bf16 %v581, %v715
        %v742 = vadd.bf16 %v585, %v715
        %v743 = vadd.bf16 %v589, %v715
        %v744 = vadd.bf16 %v593, %v715
        %v745 = vadd.bf16 %v597, %v715
        %v746 = vadd.bf16 %v604, %v722
        %v747 = vadd.bf16 %v608, %v722
        %v748 = vadd.bf16 %v612, %v722
        %v749 = vadd.bf16 %v616, %v722
        %v750 = vadd.bf16 %v620, %v722
        %v751 = vadd.bf16 %v624, %v722
        %v752 = vadd.bf16 %v628, %v722
        %v753 = vadd.bf16 %v632, %v722
        %v754 = vadd.bf16 %v639, %v729
        %v755 = vadd.bf16 %v643, %v729
        %v756 = vadd.bf16 %v647, %v729
        %v757 = vadd.bf16 %v651, %v729
        %v758 = vadd.bf16 %v655, %v729
        %v759 = vadd.bf16 %v659, %v729
        %v760 = vadd.bf16 %v663, %v729
        %v761 = vadd.bf16 %v667, %v729
        %v762 = vmul.bf16 %v730, 1045249613
        %v763 = vmul.bf16 %v731, 1045249613
        %v764 = vmul.bf16 %v732, 1045249613
        %v765 = vmul.bf16 %v733, 1045249613
        %v766 = vmul.bf16 %v734, 1045249613
        %v767 = vmul.bf16 %v735, 1045249613
        %v768 = vmul.bf16 %v736, 1045249613
        %v769 = vmul.bf16 %v737, 1045249613
        %v770 = vmul.bf16 %v738, 1045249613
        %v771 = vmul.bf16 %v739, 1045249613
        %v772 = vmul.bf16 %v740, 1045249613
        %v773 = vmul.bf16 %v741, 1045249613
        %v774 = vmul.bf16 %v742, 1045249613
        %v775 = vmul.bf16 %v743, 1045249613
        %v776 = vmul.bf16 %v744, 1045249613
        %v777 = vmul.bf16 %v745, 1045249613
        %v778 = vmul.bf16 %v746, 1045249613
        %v779 = vmul.bf16 %v747, 1045249613
        %v780 = vmul.bf16 %v748, 1045249613
        %v781 = vmul.bf16 %v749, 1045249613
        %v782 = vmul.bf16 %v750, 1045249613
        %v783 = vmul.bf16 %v751, 1045249613
        %v784 = vmul.bf16 %v752, 1045249613
        %v785 = vmul.bf16 %v753, 1045249613
        %v786 = vmul.bf16 %v754, 1045249613
        %v787 = vmul.bf16 %v755, 1045249613
        %v788 = vmul.bf16 %v756, 1045249613
        %v789 = vmul.bf16 %v757, 1045249613
        %v790 = vmul.bf16 %v758, 1045249613
        %v791 = vmul.bf16 %v759, 1045249613
        %v792 = vmul.bf16 %v760, 1045249613
        %v793 = vmul.bf16 %v761, 1045249613
        %v794 = vmax.bf16 %v730, %v762
        %v795 = vmax.bf16 %v731, %v763
        %v796 = vmax.bf16 %v732, %v764
        %v797 = vmax.bf16 %v733, %v765
        %v798 = vmax.bf16 %v734, %v766
        %v799 = vmax.bf16 %v735, %v767
        %v800 = vmax.bf16 %v736, %v768
        %v801 = vmax.bf16 %v737, %v769
        %v802 = vmax.bf16 %v738, %v770
        %v803 = vmax.bf16 %v739, %v771
        %v804 = vmax.bf16 %v740, %v772
        %v805 = vmax.bf16 %v741, %v773
        %v806 = vmax.bf16 %v742, %v774
        %v807 = vmax.bf16 %v743, %v775
        %v808 = vmax.bf16 %v744, %v776
        %v809 = vmax.bf16 %v745, %v777
        %v810 = vmax.bf16 %v746, %v778
        %v811 = vmax.bf16 %v747, %v779
        %v812 = vmax.bf16 %v748, %v780
        %v813 = vmax.bf16 %v749, %v781
        %v814 = vmax.bf16 %v750, %v782
        %v815 = vmax.bf16 %v751, %v783
        %v816 = vmax.bf16 %v752, %v784
        %v817 = vmax.bf16 %v753, %v785
        %v818 = vmax.bf16 %v754, %v786
        %v819 = vmax.bf16 %v755, %v787
        %v820 = vmax.bf16 %v756, %v788
        %v821 = vmax.bf16 %v757, %v789
        %v822 = vmax.bf16 %v758, %v790
        %v823 = vmax.bf16 %v759, %v791
        %v824 = vmax.bf16 %v760, %v792
        %v825 = vmax.bf16 %v761, %v793
        %v826 = vld [vmem:[#allocation2] sm:$0xff]
        %v827 = vld [vmem:[#allocation2 + $0x8] sm:$0xff]
        %v828 = vld [vmem:[#allocation2 + $0x10] sm:$0xff]
        %v829 = vld [vmem:[#allocation2 + $0x18] sm:$0xff]
        %v830 = vld [vmem:[#allocation2 + $0x20] sm:$0xff]
        %v831 = vld [vmem:[#allocation2 + $0x28] sm:$0xff]
        %v832 = vld [vmem:[#allocation2 + $0x30] sm:$0xff]
        %v833 = vld [vmem:[#allocation2 + $0x38] sm:$0xff]
        %v834 = vld [vmem:[#allocation2 + $0x40] sm:$0xff]
        %v835 = vld [vmem:[#allocation2 + $0x48] sm:$0xff]
        %v836 = vld [vmem:[#allocation2 + $0x50] sm:$0xff]
        %v837 = vld [vmem:[#allocation2 + $0x58] sm:$0xff]
        %v838 = vld [vmem:[#allocation2 + $0x60] sm:$0xff]
        %v839 = vld [vmem:[#allocation2 + $0x68] sm:$0xff]
        %v840 = vld [vmem:[#allocation2 + $0x70] sm:$0xff]
        %v841 = vld [vmem:[#allocation2 + $0x78] sm:$0xff]
        %v842 = vld [vmem:[#allocation2 + $0x80] sm:$0xff]
        %v843 = vld [vmem:[#allocation2 + $0x88] sm:$0xff]
        %v844 = vld [vmem:[#allocation2 + $0x90] sm:$0xff]
        %v845 = vld [vmem:[#allocation2 + $0x98] sm:$0xff]
        %v846 = vld [vmem:[#allocation2 + $0xa0] sm:$0xff]
        %v847 = vld [vmem:[#allocation2 + $0xa8] sm:$0xff]
        %v848 = vld [vmem:[#allocation2 + $0xb0] sm:$0xff]
        %v849 = vld [vmem:[#allocation2 + $0xb8] sm:$0xff]
        %v850 = vld [vmem:[#allocation2 + $0xc0] sm:$0xff]
        %v851 = vld [vmem:[#allocation2 + $0xc8] sm:$0xff]
        %v852 = vld [vmem:[#allocation2 + $0xd0] sm:$0xff]
        %v853 = vld [vmem:[#allocation2 + $0xd8] sm:$0xff]
        %v854 = vld [vmem:[#allocation2 + $0xe0] sm:$0xff]
        %v855 = vld [vmem:[#allocation2 + $0xe8] sm:$0xff]
        %v856 = vld [vmem:[#allocation2 + $0xf0] sm:$0xff]
        %v857 = vld [vmem:[#allocation2 + $0xf8] sm:$0xff]
        %v858 = vld [vmem:[#allocation2 + $0x100] sm:$0xff]
        %v859 = vld [vmem:[#allocation2 + $0x108] sm:$0xff]
        %v860 = vld [vmem:[#allocation2 + $0x110] sm:$0xff]
        %v861 = vld [vmem:[#allocation2 + $0x118] sm:$0xff]
        %v862 = vld [vmem:[#allocation2 + $0x120] sm:$0xff]
        %v863 = vld [vmem:[#allocation2 + $0x128] sm:$0xff]
        %v864 = vld [vmem:[#allocation2 + $0x130] sm:$0xff]
        %v865 = vld [vmem:[#allocation2 + $0x138] sm:$0xff]
        %v866 = vld [vmem:[#allocation2 + $0x140] sm:$0xff]
        %v867 = vld [vmem:[#allocation2 + $0x148] sm:$0xff]
        %v868 = vld [vmem:[#allocation2 + $0x150] sm:$0xff]
        %v869 = vld [vmem:[#allocation2 + $0x158] sm:$0xff]
        %v870 = vld [vmem:[#allocation2 + $0x160] sm:$0xff]
        %v871 = vld [vmem:[#allocation2 + $0x168] sm:$0xff]
        %v872 = vld [vmem:[#allocation2 + $0x170] sm:$0xff]
        %v873 = vld [vmem:[#allocation2 + $0x178] sm:$0xff]
        %v874 = vld [vmem:[#allocation2 + $0x180] sm:$0xff]
        %v875 = vld [vmem:[#allocation2 + $0x188] sm:$0xff]
        %v876 = vld [vmem:[#allocation2 + $0x190] sm:$0xff]
        %v877 = vld [vmem:[#allocation2 + $0x198] sm:$0xff]
        %v878 = vld [vmem:[#allocation2 + $0x1a0] sm:$0xff]
        %v879 = vld [vmem:[#allocation2 + $0x1a8] sm:$0xff]
        %v880 = vld [vmem:[#allocation2 + $0x1b0] sm:$0xff]
        %v881 = vld [vmem:[#allocation2 + $0x1b8] sm:$0xff]
        %v882 = vld [vmem:[#allocation2 + $0x1c0] sm:$0xff]
        %v883 = vld [vmem:[#allocation2 + $0x1c8] sm:$0xff]
        %v884 = vld [vmem:[#allocation2 + $0x1d0] sm:$0xff]
        %v885 = vld [vmem:[#allocation2 + $0x1d8] sm:$0xff]
        %v886 = vld [vmem:[#allocation2 + $0x1e0] sm:$0xff]
        %v887 = vld [vmem:[#allocation2 + $0x1e8] sm:$0xff]
        %v888 = vld [vmem:[#allocation2 + $0x1f0] sm:$0xff]
        %v889 = vld [vmem:[#allocation2 + $0x1f8] sm:$0xff]
        %890 = vmax.xlane.bf16.xlu0 %v794
        %v891 = vpop.xlane.xlu0 %890
        %892 = vmax.xlane.bf16.xlu0 %v795
        %v893 = vpop.xlane.xlu0 %892
        %894 = vmax.xlane.bf16.xlu0 %v796
        %v895 = vpop.xlane.xlu0 %894
        %896 = vmax.xlane.bf16.xlu0 %v797
        %v897 = vpop.xlane.xlu0 %896
        %898 = vmax.xlane.bf16.xlu0 %v798
        %v899 = vpop.xlane.xlu0 %898
        %900 = vmax.xlane.bf16.xlu0 %v799
        %v901 = vpop.xlane.xlu0 %900
        %902 = vmax.xlane.bf16.xlu0 %v800
        %v903 = vpop.xlane.xlu0 %902
        %904 = vmax.xlane.bf16.xlu0 %v801
        %v905 = vpop.xlane.xlu0 %904
        %906 = vmax.xlane.bf16.xlu0 %v802
        %v907 = vpop.xlane.xlu0 %906
        %908 = vmax.xlane.bf16.xlu0 %v803
        %v909 = vpop.xlane.xlu0 %908
        %910 = vmax.xlane.bf16.xlu0 %v804
        %v911 = vpop.xlane.xlu0 %910
        %912 = vmax.xlane.bf16.xlu0 %v805
        %v913 = vpop.xlane.xlu0 %912
        %914 = vmax.xlane.bf16.xlu0 %v806
        %v915 = vpop.xlane.xlu0 %914
        %916 = vmax.xlane.bf16.xlu0 %v807
        %v917 = vpop.xlane.xlu0 %916
        %918 = vmax.xlane.bf16.xlu0 %v808
        %v919 = vpop.xlane.xlu0 %918
        %920 = vmax.xlane.bf16.xlu0 %v809
        %v921 = vpop.xlane.xlu0 %920
        %922 = vmax.xlane.bf16.xlu0 %v810
        %v923 = vpop.xlane.xlu0 %922
        %924 = vmax.xlane.bf16.xlu0 %v811
        %v925 = vpop.xlane.xlu0 %924
        %926 = vmax.xlane.bf16.xlu0 %v812
        %v927 = vpop.xlane.xlu0 %926
        %928 = vmax.xlane.bf16.xlu0 %v813
        %v929 = vpop.xlane.xlu0 %928
        %930 = vmax.xlane.bf16.xlu0 %v814
        %v931 = vpop.xlane.xlu0 %930
        %932 = vmax.xlane.bf16.xlu0 %v815
        %v933 = vpop.xlane.xlu0 %932
        %934 = vmax.xlane.bf16.xlu0 %v816
        %v935 = vpop.xlane.xlu0 %934
        %936 = vmax.xlane.bf16.xlu0 %v817
        %v937 = vpop.xlane.xlu0 %936
        %938 = vmax.xlane.bf16.xlu0 %v818
        %v939 = vpop.xlane.xlu0 %938
        %940 = vmax.xlane.bf16.xlu0 %v819
        %v941 = vpop.xlane.xlu0 %940
        %942 = vmax.xlane.bf16.xlu0 %v820
        %v943 = vpop.xlane.xlu0 %942
        %944 = vmax.xlane.bf16.xlu0 %v821
        %v945 = vpop.xlane.xlu0 %944
        %946 = vmax.xlane.bf16.xlu0 %v822
        %v947 = vpop.xlane.xlu0 %946
        %948 = vmax.xlane.bf16.xlu0 %v823
        %v949 = vpop.xlane.xlu0 %948
        %950 = vmax.xlane.bf16.xlu0 %v824
        %v951 = vpop.xlane.xlu0 %950
        %952 = vmax.xlane.bf16.xlu0 %v825
        %v953 = vpop.xlane.xlu0 %952
        %v954 = vunpack.c.l.bf16 %v891
        %v955 = vunpack.c.h.bf16 %v891
        %v956 = vunpack.c.l.bf16 %v893
        %v957 = vunpack.c.h.bf16 %v893
        %v958 = vunpack.c.l.bf16 %v895
        %v959 = vunpack.c.h.bf16 %v895
        %v960 = vunpack.c.l.bf16 %v897
        %v961 = vunpack.c.h.bf16 %v897
        %v962 = vunpack.c.l.bf16 %v899
        %v963 = vunpack.c.h.bf16 %v899
        %v964 = vunpack.c.l.bf16 %v901
        %v965 = vunpack.c.h.bf16 %v901
        %v966 = vunpack.c.l.bf16 %v903
        %v967 = vunpack.c.h.bf16 %v903
        %v968 = vunpack.c.l.bf16 %v905
        %v969 = vunpack.c.h.bf16 %v905
        %v970 = vunpack.c.l.bf16 %v907
        %v971 = vunpack.c.h.bf16 %v907
        %v972 = vunpack.c.l.bf16 %v909
        %v973 = vunpack.c.h.bf16 %v909
        %v974 = vunpack.c.l.bf16 %v911
        %v975 = vunpack.c.h.bf16 %v911
        %v976 = vunpack.c.l.bf16 %v913
        %v977 = vunpack.c.h.bf16 %v913
        %v978 = vunpack.c.l.bf16 %v915
        %v979 = vunpack.c.h.bf16 %v915
        %v980 = vunpack.c.l.bf16 %v917
        %v981 = vunpack.c.h.bf16 %v917
        %v982 = vunpack.c.l.bf16 %v919
        %v983 = vunpack.c.h.bf16 %v919
        %v984 = vunpack.c.l.bf16 %v921
        %v985 = vunpack.c.h.bf16 %v921
        %v986 = vunpack.c.l.bf16 %v923
        %v987 = vunpack.c.h.bf16 %v923
        %v988 = vunpack.c.l.bf16 %v925
        %v989 = vunpack.c.h.bf16 %v925
        %v990 = vunpack.c.l.bf16 %v927
        %v991 = vunpack.c.h.bf16 %v927
        %v992 = vunpack.c.l.bf16 %v929
        %v993 = vunpack.c.h.bf16 %v929
        %v994 = vunpack.c.l.bf16 %v931
        %v995 = vunpack.c.h.bf16 %v931
        %v996 = vunpack.c.l.bf16 %v933
        %v997 = vunpack.c.h.bf16 %v933
        %v998 = vunpack.c.l.bf16 %v935
        %v999 = vunpack.c.h.bf16 %v935
        %v1000 = vunpack.c.l.bf16 %v937
        %v1001 = vunpack.c.h.bf16 %v937
        %v1002 = vunpack.c.l.bf16 %v939
        %v1003 = vunpack.c.h.bf16 %v939
        %v1004 = vunpack.c.l.bf16 %v941
        %v1005 = vunpack.c.h.bf16 %v941
        %v1006 = vunpack.c.l.bf16 %v943
        %v1007 = vunpack.c.h.bf16 %v943
        %v1008 = vunpack.c.l.bf16 %v945
        %v1009 = vunpack.c.h.bf16 %v945
        %v1010 = vunpack.c.l.bf16 %v947
        %v1011 = vunpack.c.h.bf16 %v947
        %v1012 = vunpack.c.l.bf16 %v949
        %v1013 = vunpack.c.h.bf16 %v949
        %v1014 = vunpack.c.l.bf16 %v951
        %v1015 = vunpack.c.h.bf16 %v951
        %v1016 = vunpack.c.l.bf16 %v953
        %v1017 = vunpack.c.h.bf16 %v953
        %v1018 = vmax.f32 %v826, %v954
        %v1019 = vmax.f32 %v827, %v955
        %v1020 = vmax.f32 %v828, %v956
        %v1021 = vmax.f32 %v829, %v957
        %v1022 = vmax.f32 %v830, %v958
        %v1023 = vmax.f32 %v831, %v959
        %v1024 = vmax.f32 %v832, %v960
        %v1025 = vmax.f32 %v833, %v961
        %v1026 = vmax.f32 %v834, %v962
        %v1027 = vmax.f32 %v835, %v963
        %v1028 = vmax.f32 %v836, %v964
        %v1029 = vmax.f32 %v837, %v965
        %v1030 = vmax.f32 %v838, %v966
        %v1031 = vmax.f32 %v839, %v967
        %v1032 = vmax.f32 %v840, %v968
        %v1033 = vmax.f32 %v841, %v969
        %v1034 = vmax.f32 %v842, %v970
        %v1035 = vmax.f32 %v843, %v971
        %v1036 = vmax.f32 %v844, %v972
        %v1037 = vmax.f32 %v845, %v973
        %v1038 = vmax.f32 %v846, %v974
        %v1039 = vmax.f32 %v847, %v975
        %v1040 = vmax.f32 %v848, %v976
        %v1041 = vmax.f32 %v849, %v977
        %v1042 = vmax.f32 %v850, %v978
        %v1043 = vmax.f32 %v851, %v979
        %v1044 = vmax.f32 %v852, %v980
        %v1045 = vmax.f32 %v853, %v981
        %v1046 = vmax.f32 %v854, %v982
        %v1047 = vmax.f32 %v855, %v983
        %v1048 = vmax.f32 %v856, %v984
        %v1049 = vmax.f32 %v857, %v985
        %v1050 = vmax.f32 %v858, %v986
        %v1051 = vmax.f32 %v859, %v987
        %v1052 = vmax.f32 %v860, %v988
        %v1053 = vmax.f32 %v861, %v989
        %v1054 = vmax.f32 %v862, %v990
        %v1055 = vmax.f32 %v863, %v991
        %v1056 = vmax.f32 %v864, %v992
        %v1057 = vmax.f32 %v865, %v993
        %v1058 = vmax.f32 %v866, %v994
        %v1059 = vmax.f32 %v867, %v995
        %v1060 = vmax.f32 %v868, %v996
        %v1061 = vmax.f32 %v869, %v997
        %v1062 = vmax.f32 %v870, %v998
        %v1063 = vmax.f32 %v871, %v999
        %v1064 = vmax.f32 %v872, %v1000
        %v1065 = vmax.f32 %v873, %v1001
        %v1066 = vmax.f32 %v874, %v1002
        %v1067 = vmax.f32 %v875, %v1003
        %v1068 = vmax.f32 %v876, %v1004
        %v1069 = vmax.f32 %v877, %v1005
        %v1070 = vmax.f32 %v878, %v1006
        %v1071 = vmax.f32 %v879, %v1007
        %v1072 = vmax.f32 %v880, %v1008
        %v1073 = vmax.f32 %v881, %v1009
        %v1074 = vmax.f32 %v882, %v1010
        %v1075 = vmax.f32 %v883, %v1011
        %v1076 = vmax.f32 %v884, %v1012
        %v1077 = vmax.f32 %v885, %v1013
        %v1078 = vmax.f32 %v886, %v1014
        %v1079 = vmax.f32 %v887, %v1015
        %v1080 = vmax.f32 %v888, %v1016
        %v1081 = vmax.f32 %v889, %v1017
        %v1082 = vsub.f32 %v826, %v1018
        %v1083 = vsub.f32 %v827, %v1019
        %v1084 = vsub.f32 %v828, %v1020
        %v1085 = vsub.f32 %v829, %v1021
        %v1086 = vsub.f32 %v830, %v1022
        %v1087 = vsub.f32 %v831, %v1023
        %v1088 = vsub.f32 %v832, %v1024
        %v1089 = vsub.f32 %v833, %v1025
        %v1090 = vsub.f32 %v834, %v1026
        %v1091 = vsub.f32 %v835, %v1027
        %v1092 = vsub.f32 %v836, %v1028
        %v1093 = vsub.f32 %v837, %v1029
        %v1094 = vsub.f32 %v838, %v1030
        %v1095 = vsub.f32 %v839, %v1031
        %v1096 = vsub.f32 %v840, %v1032
        %v1097 = vsub.f32 %v841, %v1033
        %v1098 = vsub.f32 %v842, %v1034
        %v1099 = vsub.f32 %v843, %v1035
        %v1100 = vsub.f32 %v844, %v1036
        %v1101 = vsub.f32 %v845, %v1037
        %v1102 = vsub.f32 %v846, %v1038
        %v1103 = vsub.f32 %v847, %v1039
        %v1104 = vsub.f32 %v848, %v1040
        %v1105 = vsub.f32 %v849, %v1041
        %v1106 = vsub.f32 %v850, %v1042
        %v1107 = vsub.f32 %v851, %v1043
        %v1108 = vsub.f32 %v852, %v1044
        %v1109 = vsub.f32 %v853, %v1045
        %v1110 = vsub.f32 %v854, %v1046
        %v1111 = vsub.f32 %v855, %v1047
        %v1112 = vsub.f32 %v856, %v1048
        %v1113 = vsub.f32 %v857, %v1049
        %v1114 = vsub.f32 %v858, %v1050
        %v1115 = vsub.f32 %v859, %v1051
        %v1116 = vsub.f32 %v860, %v1052
        %v1117 = vsub.f32 %v861, %v1053
        %v1118 = vsub.f32 %v862, %v1054
        %v1119 = vsub.f32 %v863, %v1055
        %v1120 = vsub.f32 %v864, %v1056
        %v1121 = vsub.f32 %v865, %v1057
        %v1122 = vsub.f32 %v866, %v1058
        %v1123 = vsub.f32 %v867, %v1059
        %v1124 = vsub.f32 %v868, %v1060
        %v1125 = vsub.f32 %v869, %v1061
        %v1126 = vsub.f32 %v870, %v1062
        %v1127 = vsub.f32 %v871, %v1063
        %v1128 = vsub.f32 %v872, %v1064
        %v1129 = vsub.f32 %v873, %v1065
        %v1130 = vsub.f32 %v874, %v1066
        %v1131 = vsub.f32 %v875, %v1067
        %v1132 = vsub.f32 %v876, %v1068
        %v1133 = vsub.f32 %v877, %v1069
        %v1134 = vsub.f32 %v878, %v1070
        %v1135 = vsub.f32 %v879, %v1071
        %v1136 = vsub.f32 %v880, %v1072
        %v1137 = vsub.f32 %v881, %v1073
        %v1138 = vsub.f32 %v882, %v1074
        %v1139 = vsub.f32 %v883, %v1075
        %v1140 = vsub.f32 %v884, %v1076
        %v1141 = vsub.f32 %v885, %v1077
        %v1142 = vsub.f32 %v886, %v1078
        %v1143 = vsub.f32 %v887, %v1079
        %v1144 = vsub.f32 %v888, %v1080
        %v1145 = vsub.f32 %v889, %v1081
        %v1146 = vmul.f32 %v1082, 1.442695
        %v1147 = vpow.pop %v1146
        %v1148 = vmul.f32 %v1083, 1.442695
        %v1149 = vpow.pop %v1148
        %v1150 = vmul.f32 %v1084, 1.442695
        %v1151 = vpow.pop %v1150
        %v1152 = vmul.f32 %v1085, 1.442695
        %v1153 = vpow.pop %v1152
        %v1154 = vmul.f32 %v1086, 1.442695
        %v1155 = vpow.pop %v1154
        %v1156 = vmul.f32 %v1087, 1.442695
        %v1157 = vpow.pop %v1156
        %v1158 = vmul.f32 %v1088, 1.442695
        %v1159 = vpow.pop %v1158
        %v1160 = vmul.f32 %v1089, 1.442695
        %v1161 = vpow.pop %v1160
        %v1162 = vmul.f32 %v1090, 1.442695
        %v1163 = vpow.pop %v1162
        %v1164 = vmul.f32 %v1091, 1.442695
        %v1165 = vpow.pop %v1164
        %v1166 = vmul.f32 %v1092, 1.442695
        %v1167 = vpow.pop %v1166
        %v1168 = vmul.f32 %v1093, 1.442695
        %v1169 = vpow.pop %v1168
        %v1170 = vmul.f32 %v1094, 1.442695
        %v1171 = vpow.pop %v1170
        %v1172 = vmul.f32 %v1095, 1.442695
        %v1173 = vpow.pop %v1172
        %v1174 = vmul.f32 %v1096, 1.442695
        %v1175 = vpow.pop %v1174
        %v1176 = vmul.f32 %v1097, 1.442695
        %v1177 = vpow.pop %v1176
        %v1178 = vmul.f32 %v1098, 1.442695
        %v1179 = vpow.pop %v1178
        %v1180 = vmul.f32 %v1099, 1.442695
        %v1181 = vpow.pop %v1180
        %v1182 = vmul.f32 %v1100, 1.442695
        %v1183 = vpow.pop %v1182
        %v1184 = vmul.f32 %v1101, 1.442695
        %v1185 = vpow.pop %v1184
        %v1186 = vmul.f32 %v1102, 1.442695
        %v1187 = vpow.pop %v1186
        %v1188 = vmul.f32 %v1103, 1.442695
        %v1189 = vpow.pop %v1188
        %v1190 = vmul.f32 %v1104, 1.442695
        %v1191 = vpow.pop %v1190
        %v1192 = vmul.f32 %v1105, 1.442695
        %v1193 = vpow.pop %v1192
        %v1194 = vmul.f32 %v1106, 1.442695
        %v1195 = vpow.pop %v1194
        %v1196 = vmul.f32 %v1107, 1.442695
        %v1197 = vpow.pop %v1196
        %v1198 = vmul.f32 %v1108, 1.442695
        %v1199 = vpow.pop %v1198
        %v1200 = vmul.f32 %v1109, 1.442695
        %v1201 = vpow.pop %v1200
        %v1202 = vmul.f32 %v1110, 1.442695
        %v1203 = vpow.pop %v1202
        %v1204 = vmul.f32 %v1111, 1.442695
        %v1205 = vpow.pop %v1204
        %v1206 = vmul.f32 %v1112, 1.442695
        %v1207 = vpow.pop %v1206
        %v1208 = vmul.f32 %v1113, 1.442695
        %v1209 = vpow.pop %v1208
        %v1210 = vmul.f32 %v1114, 1.442695
        %v1211 = vpow.pop %v1210
        %v1212 = vmul.f32 %v1115, 1.442695
        %v1213 = vpow.pop %v1212
        %v1214 = vmul.f32 %v1116, 1.442695
        %v1215 = vpow.pop %v1214
        %v1216 = vmul.f32 %v1117, 1.442695
        %v1217 = vpow.pop %v1216
        %v1218 = vmul.f32 %v1118, 1.442695
        %v1219 = vpow.pop %v1218
        %v1220 = vmul.f32 %v1119, 1.442695
        %v1221 = vpow.pop %v1220
        %v1222 = vmul.f32 %v1120, 1.442695
        %v1223 = vpow.pop %v1222
        %v1224 = vmul.f32 %v1121, 1.442695
        %v1225 = vpow.pop %v1224
        %v1226 = vmul.f32 %v1122, 1.442695
        %v1227 = vpow.pop %v1226
        %v1228 = vmul.f32 %v1123, 1.442695
        %v1229 = vpow.pop %v1228
        %v1230 = vmul.f32 %v1124, 1.442695
        %v1231 = vpow.pop %v1230
        %v1232 = vmul.f32 %v1125, 1.442695
        %v1233 = vpow.pop %v1232
        %v1234 = vmul.f32 %v1126, 1.442695
        %v1235 = vpow.pop %v1234
        %v1236 = vmul.f32 %v1127, 1.442695
        %v1237 = vpow.pop %v1236
        %v1238 = vmul.f32 %v1128, 1.442695
        %v1239 = vpow.pop %v1238
        %v1240 = vmul.f32 %v1129, 1.442695
        %v1241 = vpow.pop %v1240
        %v1242 = vmul.f32 %v1130, 1.442695
        %v1243 = vpow.pop %v1242
        %v1244 = vmul.f32 %v1131, 1.442695
        %v1245 = vpow.pop %v1244
        %v1246 = vmul.f32 %v1132, 1.442695
        %v1247 = vpow.pop %v1246
        %v1248 = vmul.f32 %v1133, 1.442695
        %v1249 = vpow.pop %v1248
        %v1250 = vmul.f32 %v1134, 1.442695
        %v1251 = vpow.pop %v1250
        %v1252 = vmul.f32 %v1135, 1.442695
        %v1253 = vpow.pop %v1252
        %v1254 = vmul.f32 %v1136, 1.442695
        %v1255 = vpow.pop %v1254
        %v1256 = vmul.f32 %v1137, 1.442695
        %v1257 = vpow.pop %v1256
        %v1258 = vmul.f32 %v1138, 1.442695
        %v1259 = vpow.pop %v1258
        %v1260 = vmul.f32 %v1139, 1.442695
        %v1261 = vpow.pop %v1260
        %v1262 = vmul.f32 %v1140, 1.442695
        %v1263 = vpow.pop %v1262
        %v1264 = vmul.f32 %v1141, 1.442695
        %v1265 = vpow.pop %v1264
        %v1266 = vmul.f32 %v1142, 1.442695
        %v1267 = vpow.pop %v1266
        %v1268 = vmul.f32 %v1143, 1.442695
        %v1269 = vpow.pop %v1268
        %v1270 = vmul.f32 %v1144, 1.442695
        %v1271 = vpow.pop %v1270
        %v1272 = vmul.f32 %v1145, 1.442695
        %v1273 = vpow.pop %v1272
        %v1274 = vld [vmem:[%s327] sm:$0xff]
        %v1275 = vld [vmem:[%s327 + $0x8] sm:$0xff]
        %v1276 = vld [vmem:[%s327 + $0x10] sm:$0xff]
        %v1277 = vld [vmem:[%s327 + $0x18] sm:$0xff]
        %v1278 = vunpack.c.l.s8.bf16 %v1274
        %v1279 = vunpack.c.h.s8.bf16 %v1274
        %v1280 = vunpack.c.l.s8.bf16 %v1275
        %v1281 = vunpack.c.h.s8.bf16 %v1275
        %v1282 = vunpack.c.l.s8.bf16 %v1276
        %v1283 = vunpack.c.h.s8.bf16 %v1276
        %v1284 = vunpack.c.l.s8.bf16 %v1277
        %v1285 = vunpack.c.h.s8.bf16 %v1277
        %v1286 = vpack.c.bf16 %v1019, %v1018
        %v1287 = vpack.c.bf16 %v1021, %v1020
        %v1288 = vpack.c.bf16 %v1023, %v1022
        %v1289 = vpack.c.bf16 %v1025, %v1024
        %v1290 = vpack.c.bf16 %v1027, %v1026
        %v1291 = vpack.c.bf16 %v1029, %v1028
        %v1292 = vpack.c.bf16 %v1031, %v1030
        %v1293 = vpack.c.bf16 %v1033, %v1032
        %v1294 = vpack.c.bf16 %v1035, %v1034
        %v1295 = vpack.c.bf16 %v1037, %v1036
        %v1296 = vpack.c.bf16 %v1039, %v1038
        %v1297 = vpack.c.bf16 %v1041, %v1040
        %v1298 = vpack.c.bf16 %v1043, %v1042
        %v1299 = vpack.c.bf16 %v1045, %v1044
        %v1300 = vpack.c.bf16 %v1047, %v1046
        %v1301 = vpack.c.bf16 %v1049, %v1048
        %v1302 = vpack.c.bf16 %v1051, %v1050
        %v1303 = vpack.c.bf16 %v1053, %v1052
        %v1304 = vpack.c.bf16 %v1055, %v1054
        %v1305 = vpack.c.bf16 %v1057, %v1056
        %v1306 = vpack.c.bf16 %v1059, %v1058
        %v1307 = vpack.c.bf16 %v1061, %v1060
        %v1308 = vpack.c.bf16 %v1063, %v1062
        %v1309 = vpack.c.bf16 %v1065, %v1064
        %v1310 = vpack.c.bf16 %v1067, %v1066
        %v1311 = vpack.c.bf16 %v1069, %v1068
        %v1312 = vpack.c.bf16 %v1071, %v1070
        %v1313 = vpack.c.bf16 %v1073, %v1072
        %v1314 = vpack.c.bf16 %v1075, %v1074
        %v1315 = vpack.c.bf16 %v1077, %v1076
        %v1316 = vpack.c.bf16 %v1079, %v1078
        %v1317 = vpack.c.bf16 %v1081, %v1080
        %1319 = vset.pattern.permute.xlu0 0
        %1320 = vperm.xlu0 %1319, %v1286
        %v1321 = vpop.permute.xlu0 %1320
        %1324 = vset.pattern.permute.xlu0 0
        %1325 = vperm.xlu0 %1324, %v1287
        %v1326 = vpop.permute.xlu0 %1325
        %1329 = vset.pattern.permute.xlu0 0
        %1330 = vperm.xlu0 %1329, %v1288
        %v1331 = vpop.permute.xlu0 %1330
        %1334 = vset.pattern.permute.xlu0 0
        %1335 = vperm.xlu0 %1334, %v1289
        %v1336 = vpop.permute.xlu0 %1335
        %1339 = vset.pattern.permute.xlu0 0
        %1340 = vperm.xlu0 %1339, %v1290
        %v1341 = vpop.permute.xlu0 %1340
        %1344 = vset.pattern.permute.xlu0 0
        %1345 = vperm.xlu0 %1344, %v1291
        %v1346 = vpop.permute.xlu0 %1345
        %1349 = vset.pattern.permute.xlu0 0
        %1350 = vperm.xlu0 %1349, %v1292
        %v1351 = vpop.permute.xlu0 %1350
        %1354 = vset.pattern.permute.xlu0 0
        %1355 = vperm.xlu0 %1354, %v1293
        %v1356 = vpop.permute.xlu0 %1355
        %1359 = vset.pattern.permute.xlu0 0
        %1360 = vperm.xlu0 %1359, %v1294
        %v1361 = vpop.permute.xlu0 %1360
        %1364 = vset.pattern.permute.xlu0 0
        %1365 = vperm.xlu0 %1364, %v1295
        %v1366 = vpop.permute.xlu0 %1365
        %1369 = vset.pattern.permute.xlu0 0
        %1370 = vperm.xlu0 %1369, %v1296
        %v1371 = vpop.permute.xlu0 %1370
        %1374 = vset.pattern.permute.xlu0 0
        %1375 = vperm.xlu0 %1374, %v1297
        %v1376 = vpop.permute.xlu0 %1375
        %1379 = vset.pattern.permute.xlu0 0
        %1380 = vperm.xlu0 %1379, %v1298
        %v1381 = vpop.permute.xlu0 %1380
        %1384 = vset.pattern.permute.xlu0 0
        %1385 = vperm.xlu0 %1384, %v1299
        %v1386 = vpop.permute.xlu0 %1385
        %1389 = vset.pattern.permute.xlu0 0
        %1390 = vperm.xlu0 %1389, %v1300
        %v1391 = vpop.permute.xlu0 %1390
        %1394 = vset.pattern.permute.xlu0 0
        %1395 = vperm.xlu0 %1394, %v1301
        %v1396 = vpop.permute.xlu0 %1395
        %1399 = vset.pattern.permute.xlu0 0
        %1400 = vperm.xlu0 %1399, %v1302
        %v1401 = vpop.permute.xlu0 %1400
        %1404 = vset.pattern.permute.xlu0 0
        %1405 = vperm.xlu0 %1404, %v1303
        %v1406 = vpop.permute.xlu0 %1405
        %1409 = vset.pattern.permute.xlu0 0
        %1410 = vperm.xlu0 %1409, %v1304
        %v1411 = vpop.permute.xlu0 %1410
        %1414 = vset.pattern.permute.xlu0 0
        %1415 = vperm.xlu0 %1414, %v1305
        %v1416 = vpop.permute.xlu0 %1415
        %1419 = vset.pattern.permute.xlu0 0
        %1420 = vperm.xlu0 %1419, %v1306
        %v1421 = vpop.permute.xlu0 %1420
        %1424 = vset.pattern.permute.xlu0 0
        %1425 = vperm.xlu0 %1424, %v1307
        %v1426 = vpop.permute.xlu0 %1425
        %1429 = vset.pattern.permute.xlu0 0
        %1430 = vperm.xlu0 %1429, %v1308
        %v1431 = vpop.permute.xlu0 %1430
        %1434 = vset.pattern.permute.xlu0 0
        %1435 = vperm.xlu0 %1434, %v1309
        %v1436 = vpop.permute.xlu0 %1435
        %1439 = vset.pattern.permute.xlu0 0
        %1440 = vperm.xlu0 %1439, %v1310
        %v1441 = vpop.permute.xlu0 %1440
        %1444 = vset.pattern.permute.xlu0 0
        %1445 = vperm.xlu0 %1444, %v1311
        %v1446 = vpop.permute.xlu0 %1445
        %1449 = vset.pattern.permute.xlu0 0
        %1450 = vperm.xlu0 %1449, %v1312
        %v1451 = vpop.permute.xlu0 %1450
        %1454 = vset.pattern.permute.xlu0 0
        %1455 = vperm.xlu0 %1454, %v1313
        %v1456 = vpop.permute.xlu0 %1455
        %1459 = vset.pattern.permute.xlu0 0
        %1460 = vperm.xlu0 %1459, %v1314
        %v1461 = vpop.permute.xlu0 %1460
        %1464 = vset.pattern.permute.xlu0 0
        %1465 = vperm.xlu0 %1464, %v1315
        %v1466 = vpop.permute.xlu0 %1465
        %1469 = vset.pattern.permute.xlu0 0
        %1470 = vperm.xlu0 %1469, %v1316
        %v1471 = vpop.permute.xlu0 %1470
        %1474 = vset.pattern.permute.xlu0 0
        %1475 = vperm.xlu0 %1474, %v1317
        %v1476 = vpop.permute.xlu0 %1475
        %v1478 = vsub.bf16 %v794, %v1321
        %v1479 = vsub.bf16 %v795, %v1326
        %v1480 = vsub.bf16 %v796, %v1331
        %v1481 = vsub.bf16 %v797, %v1336
        %v1482 = vsub.bf16 %v798, %v1341
        %v1483 = vsub.bf16 %v799, %v1346
        %v1484 = vsub.bf16 %v800, %v1351
        %v1485 = vsub.bf16 %v801, %v1356
        %v1486 = vsub.bf16 %v802, %v1361
        %v1487 = vsub.bf16 %v803, %v1366
        %v1488 = vsub.bf16 %v804, %v1371
        %v1489 = vsub.bf16 %v805, %v1376
        %v1490 = vsub.bf16 %v806, %v1381
        %v1491 = vsub.bf16 %v807, %v1386
        %v1492 = vsub.bf16 %v808, %v1391
        %v1493 = vsub.bf16 %v809, %v1396
        %v1494 = vsub.bf16 %v810, %v1401
        %v1495 = vsub.bf16 %v811, %v1406
        %v1496 = vsub.bf16 %v812, %v1411
        %v1497 = vsub.bf16 %v813, %v1416
        %v1498 = vsub.bf16 %v814, %v1421
        %v1499 = vsub.bf16 %v815, %v1426
        %v1500 = vsub.bf16 %v816, %v1431
        %v1501 = vsub.bf16 %v817, %v1436
        %v1502 = vsub.bf16 %v818, %v1441
        %v1503 = vsub.bf16 %v819, %v1446
        %v1504 = vsub.bf16 %v820, %v1451
        %v1505 = vsub.bf16 %v821, %v1456
        %v1506 = vsub.bf16 %v822, %v1461
        %v1507 = vsub.bf16 %v823, %v1466
        %v1508 = vsub.bf16 %v824, %v1471
        %v1509 = vsub.bf16 %v825, %v1476
        %v1511 = vmul.bf16 %v1478, 1069105081
        %v1512 = vpow.bf16.pop %v1511
        %v1514 = vmul.bf16 %v1479, 1069105081
        %v1515 = vpow.bf16.pop %v1514
        %v1517 = vmul.bf16 %v1480, 1069105081
        %v1518 = vpow.bf16.pop %v1517
        %v1520 = vmul.bf16 %v1481, 1069105081
        %v1521 = vpow.bf16.pop %v1520
        %v1523 = vmul.bf16 %v1482, 1069105081
        %v1524 = vpow.bf16.pop %v1523
        %v1526 = vmul.bf16 %v1483, 1069105081
        %v1527 = vpow.bf16.pop %v1526
        %v1529 = vmul.bf16 %v1484, 1069105081
        %v1530 = vpow.bf16.pop %v1529
        %v1532 = vmul.bf16 %v1485, 1069105081
        %v1533 = vpow.bf16.pop %v1532
        %v1535 = vmul.bf16 %v1486, 1069105081
        %v1536 = vpow.bf16.pop %v1535
        %v1538 = vmul.bf16 %v1487, 1069105081
        %v1539 = vpow.bf16.pop %v1538
        %v1541 = vmul.bf16 %v1488, 1069105081
        %v1542 = vpow.bf16.pop %v1541
        %v1544 = vmul.bf16 %v1489, 1069105081
        %v1545 = vpow.bf16.pop %v1544
        %v1547 = vmul.bf16 %v1490, 1069105081
        %v1548 = vpow.bf16.pop %v1547
        %v1550 = vmul.bf16 %v1491, 1069105081
        %v1551 = vpow.bf16.pop %v1550
        %v1553 = vmul.bf16 %v1492, 1069105081
        %v1554 = vpow.bf16.pop %v1553
        %v1556 = vmul.bf16 %v1493, 1069105081
        %v1557 = vpow.bf16.pop %v1556
        %v1559 = vmul.bf16 %v1494, 1069105081
        %v1560 = vpow.bf16.pop %v1559
        %v1562 = vmul.bf16 %v1495, 1069105081
        %v1563 = vpow.bf16.pop %v1562
        %v1565 = vmul.bf16 %v1496, 1069105081
        %v1566 = vpow.bf16.pop %v1565
        %v1568 = vmul.bf16 %v1497, 1069105081
        %v1569 = vpow.bf16.pop %v1568
        %v1571 = vmul.bf16 %v1498, 1069105081
        %v1572 = vpow.bf16.pop %v1571
        %v1574 = vmul.bf16 %v1499, 1069105081
        %v1575 = vpow.bf16.pop %v1574
        %v1577 = vmul.bf16 %v1500, 1069105081
        %v1578 = vpow.bf16.pop %v1577
        %v1580 = vmul.bf16 %v1501, 1069105081
        %v1581 = vpow.bf16.pop %v1580
        %v1583 = vmul.bf16 %v1502, 1069105081
        %v1584 = vpow.bf16.pop %v1583
        %v1586 = vmul.bf16 %v1503, 1069105081
        %v1587 = vpow.bf16.pop %v1586
        %v1589 = vmul.bf16 %v1504, 1069105081
        %v1590 = vpow.bf16.pop %v1589
        %v1592 = vmul.bf16 %v1505, 1069105081
        %v1593 = vpow.bf16.pop %v1592
        %v1595 = vmul.bf16 %v1506, 1069105081
        %v1596 = vpow.bf16.pop %v1595
        %v1598 = vmul.bf16 %v1507, 1069105081
        %v1599 = vpow.bf16.pop %v1598
        %v1601 = vmul.bf16 %v1508, 1069105081
        %v1602 = vpow.bf16.pop %v1601
        %v1604 = vmul.bf16 %v1509, 1069105081
        %v1605 = vpow.bf16.pop %v1604
        %v1606 = vmul.bf16 %v1512, %v1278
        %v1607 = vmul.bf16 %v1515, %v1279
        %v1608 = vmul.bf16 %v1518, %v1280
        %v1609 = vmul.bf16 %v1521, %v1281
        %v1610 = vmul.bf16 %v1524, %v1282
        %v1611 = vmul.bf16 %v1527, %v1283
        %v1612 = vmul.bf16 %v1530, %v1284
        %v1613 = vmul.bf16 %v1533, %v1285
        %v1614 = vmul.bf16 %v1536, %v1278
        %v1615 = vmul.bf16 %v1539, %v1279
        %v1616 = vmul.bf16 %v1542, %v1280
        %v1617 = vmul.bf16 %v1545, %v1281
        %v1618 = vmul.bf16 %v1548, %v1282
        %v1619 = vmul.bf16 %v1551, %v1283
        %v1620 = vmul.bf16 %v1554, %v1284
        %v1621 = vmul.bf16 %v1557, %v1285
        %v1622 = vmul.bf16 %v1560, %v1278
        %v1623 = vmul.bf16 %v1563, %v1279
        %v1624 = vmul.bf16 %v1566, %v1280
        %v1625 = vmul.bf16 %v1569, %v1281
        %v1626 = vmul.bf16 %v1572, %v1282
        %v1627 = vmul.bf16 %v1575, %v1283
        %v1628 = vmul.bf16 %v1578, %v1284
        %v1629 = vmul.bf16 %v1581, %v1285
        %v1630 = vmul.bf16 %v1584, %v1278
        %v1631 = vmul.bf16 %v1587, %v1279
        %v1632 = vmul.bf16 %v1590, %v1280
        %v1633 = vmul.bf16 %v1593, %v1281
        %v1634 = vmul.bf16 %v1596, %v1282
        %v1635 = vmul.bf16 %v1599, %v1283
        %v1636 = vmul.bf16 %v1602, %v1284
        %v1637 = vmul.bf16 %v1605, %v1285
        %v1638 = vld [vmem:[%s336] sm:$0xf]
        %v1639 = vld [vmem:[%s336 + $0x4] sm:$0xf]
        %v1640 = vld [vmem:[%s336 + $0x8] sm:$0xf]
        %v1641 = vld [vmem:[%s336 + $0xc] sm:$0xf]
        %v1642 = vld [vmem:[%s336 + $0x10] sm:$0xf]
        %v1643 = vld [vmem:[%s336 + $0x14] sm:$0xf]
        %v1644 = vld [vmem:[%s336 + $0x18] sm:$0xf]
        %v1645 = vld [vmem:[%s336 + $0x1c] sm:$0xf]
        %v1646 = vld [vmem:[%s336 + $0x20] sm:$0xf]
        %v1647 = vld [vmem:[%s336 + $0x24] sm:$0xf]
        %v1648 = vld [vmem:[%s336 + $0x28] sm:$0xf]
        %v1649 = vld [vmem:[%s336 + $0x2c] sm:$0xf]
        %v1650 = vld [vmem:[%s336 + $0x30] sm:$0xf]
        %v1651 = vld [vmem:[%s336 + $0x34] sm:$0xf]
        %v1652 = vld [vmem:[%s336 + $0x38] sm:$0xf]
        %v1653 = vld [vmem:[%s336 + $0x3c] sm:$0xf]
        %v1670 = vunpack.c.l.b16 %v1638
        %v1671 = vunpack.c.l.b16 %v1639
        %v1672 = vunpack.c.l.b16 %v1640
        %v1673 = vunpack.c.l.b16 %v1641
        %v1674 = vunpack.c.l.b16 %v1642
        %v1675 = vunpack.c.l.b16 %v1643
        %v1676 = vunpack.c.l.b16 %v1644
        %v1677 = vunpack.c.l.b16 %v1645
        %v1678 = vunpack.c.l.b16 %v1646
        %v1679 = vunpack.c.l.b16 %v1647
        %v1680 = vunpack.c.l.b16 %v1648
        %v1681 = vunpack.c.l.b16 %v1649
        %v1682 = vunpack.c.l.b16 %v1650
        %v1683 = vunpack.c.l.b16 %v1651
        %v1684 = vunpack.c.l.b16 %v1652
        %v1685 = vunpack.c.l.b16 %v1653
        %v1686 = vpack.c.b16 %v1671, %v1670
        %v1687 = vpack.c.b16 %v1673, %v1672
        %v1688 = vpack.c.b16 %v1675, %v1674
        %v1689 = vpack.c.b16 %v1677, %v1676
        %v1690 = vpack.c.b16 %v1679, %v1678
        %v1691 = vpack.c.b16 %v1681, %v1680
        %v1692 = vpack.c.b16 %v1683, %v1682
        %v1693 = vpack.c.b16 %v1685, %v1684
        %1702 = vmatprep.subr.bf16.mxu0 0
        %1703 = vmatpush1.bf16.msra.mxu0 %v1686
        %1704 = vmatprep.subr.bf16.mxu0 0
        %1705 = vmatpush1.bf16.msra.mxu0 %v1687
        %1706 = vmatprep.subr.bf16.mxu0 0
        %1707 = vmatpush1.bf16.msra.mxu0 %v1688
        %1708 = vmatprep.subr.bf16.mxu0 0
        %1709 = vmatpush1.bf16.msra.mxu0 %v1689
        %1710 = vmatprep.subr.bf16.mxu0 0
        %1711 = vmatpush1.bf16.msra.mxu0 %v1690
        %1712 = vmatprep.subr.bf16.mxu0 0
        %1713 = vmatpush1.bf16.msra.mxu0 %v1691
        %1714 = vmatprep.subr.bf16.mxu0 0
        %1715 = vmatpush1.bf16.msra.mxu0 %v1692
        %1716 = vmatprep.subr.bf16.mxu0 0
        %1717 = vmatpush1.bf16.msra.mxu0 %v1693
        %1718 = vmatprep.subr.bf16.mxu0 0
        %1719 = vmatpush1.bf16.msra.mxu0 0
        %1720 = vmatprep.subr.bf16.mxu0 0
        %1721 = vmatpush1.bf16.msra.mxu0 0
        %1722 = vmatprep.subr.bf16.mxu0 0
        %1723 = vmatpush1.bf16.msra.mxu0 0
        %1724 = vmatprep.subr.bf16.mxu0 0
        %1725 = vmatpush1.bf16.msra.mxu0 0
        %1726 = vmatprep.subr.bf16.mxu0 0
        %1727 = vmatpush1.bf16.msra.mxu0 0
        %1728 = vmatprep.subr.bf16.mxu0 0
        %1729 = vmatpush1.bf16.msra.mxu0 0
        %1730 = vmatprep.subr.bf16.mxu0 0
        %1731 = vmatpush1.bf16.msra.mxu0 0
        %1732 = vmatprep.subr.bf16.mxu0 0
        %1733 = vmatpush1.bf16.msra.mxu0 0
        %1734 = vmatprep.mubr.bf16.mxu0 0
        %1735 = vmatmul.mubr.bf16.gmra.mrb[0].mxu0 %v1606
        %v1736 = vpop.f32.mrb[0].mxu0
        %v1737 = vadd.f32 0.0, %v1736
        %v1738 = vpop.f32.mrb[0].mxu0
        %v1739 = vpop.f32.mrb[0].mxu0
        %v1740 = vadd.f32 0.0, %v1739
        %v1741 = vpop.f32.mrb[0].mxu0
        %1742 = vmatprep.mubr.bf16.mxu0 0
        %1743 = vmatmul.mubr.bf16.gmra.mrb[0].mxu0 %v1607
        %v1744 = vpop.f32.mrb[0].mxu0
        %v1745 = vadd.f32 0.0, %v1744
        %v1746 = vpop.f32.mrb[0].mxu0
        %v1747 = vpop.f32.mrb[0].mxu0
        %v1748 = vadd.f32 0.0, %v1747
        %v1749 = vpop.f32.mrb[0].mxu0
        %1750 = vmatprep.mubr.bf16.mxu0 0
        %1751 = vmatmul.mubr.bf16.gmra.mrb[0].mxu0 %v1608
        %v1752 = vpop.f32.mrb[0].mxu0
        %v1753 = vadd.f32 0.0, %v1752
        %v1754 = vpop.f32.mrb[0].mxu0
        %v1755 = vpop.f32.mrb[0].mxu0
        %v1756 = vadd.f32 0.0, %v1755
        %v1757 = vpop.f32.mrb[0].mxu0
        %1758 = vmatprep.mubr.bf16.mxu0 0
        %1759 = vmatmul.mubr.bf16.gmra.mrb[0].mxu0 %v1609
        %v1760 = vpop.f32.mrb[0].mxu0
        %v1761 = vadd.f32 0.0, %v1760
        %v1762 = vpop.f32.mrb[0].mxu0
        %v1763 = vpop.f32.mrb[0].mxu0
        %v1764 = vadd.f32 0.0, %v1763
        %v1765 = vpop.f32.mrb[0].mxu0
        %1766 = vmatprep.mubr.bf16.mxu0 0
        %1767 = vmatmul.mubr.bf16.gmra.mrb[0].mxu0 %v1610
        %v1768 = vpop.f32.mrb[0].mxu0
        %v1769 = vadd.f32 0.0, %v1768
        %v1770 = vpop.f32.mrb[0].mxu0
        %v1771 = vpop.f32.mrb[0].mxu0
        %v1772 = vadd.f32 0.0, %v1771
        %v1773 = vpop.f32.mrb[0].mxu0
        %1774 = vmatprep.mubr.bf16.mxu0 0
        %1775 = vmatmul.mubr.bf16.gmra.mrb[0].mxu0 %v1611
        %v1776 = vpop.f32.mrb[0].mxu0
        %v1777 = vadd.f32 0.0, %v1776
        %v1778 = vpop.f32.mrb[0].mxu0
        %v1779 = vpop.f32.mrb[0].mxu0
        %v1780 = vadd.f32 0.0, %v1779
        %v1781 = vpop.f32.mrb[0].mxu0
        %1782 = vmatprep.mubr.bf16.mxu0 0
        %1783 = vmatmul.mubr.bf16.gmra.mrb[0].mxu0 %v1612
        %v1784 = vpop.f32.mrb[0].mxu0
        %v1785 = vadd.f32 0.0, %v1784
        %v1786 = vpop.f32.mrb[0].mxu0
        %v1787 = vpop.f32.mrb[0].mxu0
        %v1788 = vadd.f32 0.0, %v1787
        %v1789 = vpop.f32.mrb[0].mxu0
        %1790 = vmatprep.mubr.bf16.mxu0 0
        %1791 = vmatmul.mubr.bf16.gmra.mrb[0].mxu0 %v1613
        %v1792 = vpop.f32.mrb[0].mxu0
        %v1793 = vadd.f32 0.0, %v1792
        %v1794 = vpop.f32.mrb[0].mxu0
        %v1795 = vpop.f32.mrb[0].mxu0
        %v1796 = vadd.f32 0.0, %v1795
        %v1797 = vpop.f32.mrb[0].mxu0
        %1798 = vmatprep.mubr.bf16.mxu0 0
        %1799 = vmatmul.mubr.bf16.gmra.mrb[0].mxu0 %v1614
        %v1800 = vpop.f32.mrb[0].mxu0
        %v1801 = vadd.f32 0.0, %v1800
        %v1802 = vpop.f32.mrb[0].mxu0
        %v1803 = vpop.f32.mrb[0].mxu0
        %v1804 = vadd.f32 0.0, %v1803
        %v1805 = vpop.f32.mrb[0].mxu0
        %1806 = vmatprep.mubr.bf16.mxu0 0
        %1807 = vmatmul.mubr.bf16.gmra.mrb[0].mxu0 %v1615
        %v1808 = vpop.f32.mrb[0].mxu0
        %v1809 = vadd.f32 0.0, %v1808
        %v1810 = vpop.f32.mrb[0].mxu0
        %v1811 = vpop.f32.mrb[0].mxu0
        %v1812 = vadd.f32 0.0, %v1811
        %v1813 = vpop.f32.mrb[0].mxu0
        %1814 = vmatprep.mubr.bf16.mxu0 0
        %1815 = vmatmul.mubr.bf16.gmra.mrb[0].mxu0 %v1616
        %v1816 = vpop.f32.mrb[0].mxu0
        %v1817 = vadd.f32 0.0, %v1816
        %v1818 = vpop.f32.mrb[0].mxu0
        %v1819 = vpop.f32.mrb[0].mxu0
        %v1820 = vadd.f32 0.0, %v1819
        %v1821 = vpop.f32.mrb[0].mxu0
        %1822 = vmatprep.mubr.bf16.mxu0 0
        %1823 = vmatmul.mubr.bf16.gmra.mrb[0].mxu0 %v1617
        %v1824 = vpop.f32.mrb[0].mxu0
        %v1825 = vadd.f32 0.0, %v1824
        %v1826 = vpop.f32.mrb[0].mxu0
        %v1827 = vpop.f32.mrb[0].mxu0
        %v1828 = vadd.f32 0.0, %v1827
        %v1829 = vpop.f32.mrb[0].mxu0
        %1830 = vmatprep.mubr.bf16.mxu0 0
        %1831 = vmatmul.mubr.bf16.gmra.mrb[0].mxu0 %v1618
        %v1832 = vpop.f32.mrb[0].mxu0
        %v1833 = vadd.f32 0.0, %v1832
        %v1834 = vpop.f32.mrb[0].mxu0
        %v1835 = vpop.f32.mrb[0].mxu0
        %v1836 = vadd.f32 0.0, %v1835
        %v1837 = vpop.f32.mrb[0].mxu0
        %1838 = vmatprep.mubr.bf16.mxu0 0
        %1839 = vmatmul.mubr.bf16.gmra.mrb[0].mxu0 %v1619
        %v1840 = vpop.f32.mrb[0].mxu0
        %v1841 = vadd.f32 0.0, %v1840
        %v1842 = vpop.f32.mrb[0].mxu0
        %v1843 = vpop.f32.mrb[0].mxu0
        %v1844 = vadd.f32 0.0, %v1843
        %v1845 = vpop.f32.mrb[0].mxu0
        %1846 = vmatprep.mubr.bf16.mxu0 0
        %1847 = vmatmul.mubr.bf16.gmra.mrb[0].mxu0 %v1620
        %v1848 = vpop.f32.mrb[0].mxu0
        %v1849 = vadd.f32 0.0, %v1848
        %v1850 = vpop.f32.mrb[0].mxu0
        %v1851 = vpop.f32.mrb[0].mxu0
        %v1852 = vadd.f32 0.0, %v1851
        %v1853 = vpop.f32.mrb[0].mxu0
        %1854 = vmatprep.mubr.bf16.mxu0 0
        %1855 = vmatmul.mubr.bf16.gmra.mrb[0].mxu0 %v1621
        %v1856 = vpop.f32.mrb[0].mxu0
        %v1857 = vadd.f32 0.0, %v1856
        %v1858 = vpop.f32.mrb[0].mxu0
        %v1859 = vpop.f32.mrb[0].mxu0
        %v1860 = vadd.f32 0.0, %v1859
        %v1861 = vpop.f32.mrb[0].mxu0
        %1862 = vmatprep.mubr.bf16.mxu0 0
        %1863 = vmatmul.mubr.bf16.gmra.mrb[0].mxu0 %v1622
        %v1864 = vpop.f32.mrb[0].mxu0
        %v1865 = vadd.f32 0.0, %v1864
        %v1866 = vpop.f32.mrb[0].mxu0
        %v1867 = vpop.f32.mrb[0].mxu0
        %v1868 = vadd.f32 0.0, %v1867
        %v1869 = vpop.f32.mrb[0].mxu0
        %1870 = vmatprep.mubr.bf16.mxu0 0
        %1871 = vmatmul.mubr.bf16.gmra.mrb[0].mxu0 %v1623
        %v1872 = vpop.f32.mrb[0].mxu0
        %v1873 = vadd.f32 0.0, %v1872
        %v1874 = vpop.f32.mrb[0].mxu0
        %v1875 = vpop.f32.mrb[0].mxu0
        %v1876 = vadd.f32 0.0, %v1875
        %v1877 = vpop.f32.mrb[0].mxu0
        %1878 = vmatprep.mubr.bf16.mxu0 0
        %1879 = vmatmul.mubr.bf16.gmra.mrb[0].mxu0 %v1624
        %v1880 = vpop.f32.mrb[0].mxu0
        %v1881 = vadd.f32 0.0, %v1880
        %v1882 = vpop.f32.mrb[0].mxu0
        %v1883 = vpop.f32.mrb[0].mxu0
        %v1884 = vadd.f32 0.0, %v1883
        %v1885 = vpop.f32.mrb[0].mxu0
        %1886 = vmatprep.mubr.bf16.mxu0 0
        %1887 = vmatmul.mubr.bf16.gmra.mrb[0].mxu0 %v1625
        %v1888 = vpop.f32.mrb[0].mxu0
        %v1889 = vadd.f32 0.0, %v1888
        %v1890 = vpop.f32.mrb[0].mxu0
        %v1891 = vpop.f32.mrb[0].mxu0
        %v1892 = vadd.f32 0.0, %v1891
        %v1893 = vpop.f32.mrb[0].mxu0
        %1894 = vmatprep.mubr.bf16.mxu0 0
        %1895 = vmatmul.mubr.bf16.gmra.mrb[0].mxu0 %v1626
        %v1896 = vpop.f32.mrb[0].mxu0
        %v1897 = vadd.f32 0.0, %v1896
        %v1898 = vpop.f32.mrb[0].mxu0
        %v1899 = vpop.f32.mrb[0].mxu0
        %v1900 = vadd.f32 0.0, %v1899
        %v1901 = vpop.f32.mrb[0].mxu0
        %1902 = vmatprep.mubr.bf16.mxu0 0
        %1903 = vmatmul.mubr.bf16.gmra.mrb[0].mxu0 %v1627
        %v1904 = vpop.f32.mrb[0].mxu0
        %v1905 = vadd.f32 0.0, %v1904
        %v1906 = vpop.f32.mrb[0].mxu0
        %v1907 = vpop.f32.mrb[0].mxu0
        %v1908 = vadd.f32 0.0, %v1907
        %v1909 = vpop.f32.mrb[0].mxu0
        %1910 = vmatprep.mubr.bf16.mxu0 0
        %1911 = vmatmul.mubr.bf16.gmra.mrb[0].mxu0 %v1628
        %v1912 = vpop.f32.mrb[0].mxu0
        %v1913 = vadd.f32 0.0, %v1912
        %v1914 = vpop.f32.mrb[0].mxu0
        %v1915 = vpop.f32.mrb[0].mxu0
        %v1916 = vadd.f32 0.0, %v1915
        %v1917 = vpop.f32.mrb[0].mxu0
        %1918 = vmatprep.mubr.bf16.mxu0 0
        %1919 = vmatmul.mubr.bf16.gmra.mrb[0].mxu0 %v1629
        %v1920 = vpop.f32.mrb[0].mxu0
        %v1921 = vadd.f32 0.0, %v1920
        %v1922 = vpop.f32.mrb[0].mxu0
        %v1923 = vpop.f32.mrb[0].mxu0
        %v1924 = vadd.f32 0.0, %v1923
        %v1925 = vpop.f32.mrb[0].mxu0
        %1926 = vmatprep.mubr.bf16.mxu0 0
        %1927 = vmatmul.mubr.bf16.gmra.mrb[0].mxu0 %v1630
        %v1928 = vpop.f32.mrb[0].mxu0
        %v1929 = vadd.f32 0.0, %v1928
        %v1930 = vpop.f32.mrb[0].mxu0
        %v1931 = vpop.f32.mrb[0].mxu0
        %v1932 = vadd.f32 0.0, %v1931
        %v1933 = vpop.f32.mrb[0].mxu0
        %1934 = vmatprep.mubr.bf16.mxu0 0
        %1935 = vmatmul.mubr.bf16.gmra.mrb[0].mxu0 %v1631
        %v1936 = vpop.f32.mrb[0].mxu0
        %v1937 = vadd.f32 0.0, %v1936
        %v1938 = vpop.f32.mrb[0].mxu0
        %v1939 = vpop.f32.mrb[0].mxu0
        %v1940 = vadd.f32 0.0, %v1939
        %v1941 = vpop.f32.mrb[0].mxu0
        %1942 = vmatprep.mubr.bf16.mxu0 0
        %1943 = vmatmul.mubr.bf16.gmra.mrb[0].mxu0 %v1632
        %v1944 = vpop.f32.mrb[0].mxu0
        %v1945 = vadd.f32 0.0, %v1944
        %v1946 = vpop.f32.mrb[0].mxu0
        %v1947 = vpop.f32.mrb[0].mxu0
        %v1948 = vadd.f32 0.0, %v1947
        %v1949 = vpop.f32.mrb[0].mxu0
        %1950 = vmatprep.mubr.bf16.mxu0 0
        %1951 = vmatmul.mubr.bf16.gmra.mrb[0].mxu0 %v1633
        %v1952 = vpop.f32.mrb[0].mxu0
        %v1953 = vadd.f32 0.0, %v1952
        %v1954 = vpop.f32.mrb[0].mxu0
        %v1955 = vpop.f32.mrb[0].mxu0
        %v1956 = vadd.f32 0.0, %v1955
        %v1957 = vpop.f32.mrb[0].mxu0
        %1958 = vmatprep.mubr.bf16.mxu0 0
        %1959 = vmatmul.mubr.bf16.gmra.mrb[0].mxu0 %v1634
        %v1960 = vpop.f32.mrb[0].mxu0
        %v1961 = vadd.f32 0.0, %v1960
        %v1962 = vpop.f32.mrb[0].mxu0
        %v1963 = vpop.f32.mrb[0].mxu0
        %v1964 = vadd.f32 0.0, %v1963
        %v1965 = vpop.f32.mrb[0].mxu0
        %1966 = vmatprep.mubr.bf16.mxu0 0
        %1967 = vmatmul.mubr.bf16.gmra.mrb[0].mxu0 %v1635
        %v1968 = vpop.f32.mrb[0].mxu0
        %v1969 = vadd.f32 0.0, %v1968
        %v1970 = vpop.f32.mrb[0].mxu0
        %v1971 = vpop.f32.mrb[0].mxu0
        %v1972 = vadd.f32 0.0, %v1971
        %v1973 = vpop.f32.mrb[0].mxu0
        %1974 = vmatprep.mubr.bf16.mxu0 0
        %1975 = vmatmul.mubr.bf16.gmra.mrb[0].mxu0 %v1636
        %v1976 = vpop.f32.mrb[0].mxu0
        %v1977 = vadd.f32 0.0, %v1976
        %v1978 = vpop.f32.mrb[0].mxu0
        %v1979 = vpop.f32.mrb[0].mxu0
        %v1980 = vadd.f32 0.0, %v1979
        %v1981 = vpop.f32.mrb[0].mxu0
        %1982 = vmatprep.mubr.bf16.mxu0 0
        %1983 = vmatmul.mubr.bf16.gmra.mrb[0].mxu0 %v1637
        %v1984 = vpop.f32.mrb[0].mxu0
        %v1985 = vadd.f32 0.0, %v1984
        %v1986 = vpop.f32.mrb[0].mxu0
        %v1987 = vpop.f32.mrb[0].mxu0
        %v1988 = vadd.f32 0.0, %v1987
        %v1989 = vpop.f32.mrb[0].mxu0
        %1990 = vdwg.mxu0
        %v1991 = vld [vmem:[#allocation3] sm:$0xff]
        %v1992 = vld [vmem:[#allocation3 + $0x8] sm:$0xff]
        %v1993 = vld [vmem:[#allocation3 + $0x10] sm:$0xff]
        %v1994 = vld [vmem:[#allocation3 + $0x18] sm:$0xff]
        %v1995 = vld [vmem:[#allocation3 + $0x20] sm:$0xff]
        %v1996 = vld [vmem:[#allocation3 + $0x28] sm:$0xff]
        %v1997 = vld [vmem:[#allocation3 + $0x30] sm:$0xff]
        %v1998 = vld [vmem:[#allocation3 + $0x38] sm:$0xff]
        %v1999 = vld [vmem:[#allocation3 + $0x40] sm:$0xff]
        %v2000 = vld [vmem:[#allocation3 + $0x48] sm:$0xff]
        %v2001 = vld [vmem:[#allocation3 + $0x50] sm:$0xff]
        %v2002 = vld [vmem:[#allocation3 + $0x58] sm:$0xff]
        %v2003 = vld [vmem:[#allocation3 + $0x60] sm:$0xff]
        %v2004 = vld [vmem:[#allocation3 + $0x68] sm:$0xff]
        %v2005 = vld [vmem:[#allocation3 + $0x70] sm:$0xff]
        %v2006 = vld [vmem:[#allocation3 + $0x78] sm:$0xff]
        %v2007 = vld [vmem:[#allocation3 + $0x80] sm:$0xff]
        %v2008 = vld [vmem:[#allocation3 + $0x88] sm:$0xff]
        %v2009 = vld [vmem:[#allocation3 + $0x90] sm:$0xff]
        %v2010 = vld [vmem:[#allocation3 + $0x98] sm:$0xff]
        %v2011 = vld [vmem:[#allocation3 + $0xa0] sm:$0xff]
        %v2012 = vld [vmem:[#allocation3 + $0xa8] sm:$0xff]
        %v2013 = vld [vmem:[#allocation3 + $0xb0] sm:$0xff]
        %v2014 = vld [vmem:[#allocation3 + $0xb8] sm:$0xff]
        %v2015 = vld [vmem:[#allocation3 + $0xc0] sm:$0xff]
        %v2016 = vld [vmem:[#allocation3 + $0xc8] sm:$0xff]
        %v2017 = vld [vmem:[#allocation3 + $0xd0] sm:$0xff]
        %v2018 = vld [vmem:[#allocation3 + $0xd8] sm:$0xff]
        %v2019 = vld [vmem:[#allocation3 + $0xe0] sm:$0xff]
        %v2020 = vld [vmem:[#allocation3 + $0xe8] sm:$0xff]
        %v2021 = vld [vmem:[#allocation3 + $0xf0] sm:$0xff]
        %v2022 = vld [vmem:[#allocation3 + $0xf8] sm:$0xff]
        %v2023 = vld [vmem:[#allocation3 + $0x100] sm:$0xff]
        %v2024 = vld [vmem:[#allocation3 + $0x108] sm:$0xff]
        %v2025 = vld [vmem:[#allocation3 + $0x110] sm:$0xff]
        %v2026 = vld [vmem:[#allocation3 + $0x118] sm:$0xff]
        %v2027 = vld [vmem:[#allocation3 + $0x120] sm:$0xff]
        %v2028 = vld [vmem:[#allocation3 + $0x128] sm:$0xff]
        %v2029 = vld [vmem:[#allocation3 + $0x130] sm:$0xff]
        %v2030 = vld [vmem:[#allocation3 + $0x138] sm:$0xff]
        %v2031 = vld [vmem:[#allocation3 + $0x140] sm:$0xff]
        %v2032 = vld [vmem:[#allocation3 + $0x148] sm:$0xff]
        %v2033 = vld [vmem:[#allocation3 + $0x150] sm:$0xff]
        %v2034 = vld [vmem:[#allocation3 + $0x158] sm:$0xff]
        %v2035 = vld [vmem:[#allocation3 + $0x160] sm:$0xff]
        %v2036 = vld [vmem:[#allocation3 + $0x168] sm:$0xff]
        %v2037 = vld [vmem:[#allocation3 + $0x170] sm:$0xff]
        %v2038 = vld [vmem:[#allocation3 + $0x178] sm:$0xff]
        %v2039 = vld [vmem:[#allocation3 + $0x180] sm:$0xff]
        %v2040 = vld [vmem:[#allocation3 + $0x188] sm:$0xff]
        %v2041 = vld [vmem:[#allocation3 + $0x190] sm:$0xff]
        %v2042 = vld [vmem:[#allocation3 + $0x198] sm:$0xff]
        %v2043 = vld [vmem:[#allocation3 + $0x1a0] sm:$0xff]
        %v2044 = vld [vmem:[#allocation3 + $0x1a8] sm:$0xff]
        %v2045 = vld [vmem:[#allocation3 + $0x1b0] sm:$0xff]
        %v2046 = vld [vmem:[#allocation3 + $0x1b8] sm:$0xff]
        %v2047 = vld [vmem:[#allocation3 + $0x1c0] sm:$0xff]
        %v2048 = vld [vmem:[#allocation3 + $0x1c8] sm:$0xff]
        %v2049 = vld [vmem:[#allocation3 + $0x1d0] sm:$0xff]
        %v2050 = vld [vmem:[#allocation3 + $0x1d8] sm:$0xff]
        %v2051 = vld [vmem:[#allocation3 + $0x1e0] sm:$0xff]
        %v2052 = vld [vmem:[#allocation3 + $0x1e8] sm:$0xff]
        %v2053 = vld [vmem:[#allocation3 + $0x1f0] sm:$0xff]
        %v2054 = vld [vmem:[#allocation3 + $0x1f8] sm:$0xff]
        %2056 = vset.pattern.permute.xlu0 0
        %2057 = vperm.xlu0 %2056, %v1147
        %v2058 = vpop.permute.xlu0 %2057
        %2061 = vset.pattern.permute.xlu0 0
        %2062 = vperm.xlu0 %2061, %v1149
        %v2063 = vpop.permute.xlu0 %2062
        %2066 = vset.pattern.permute.xlu0 0
        %2067 = vperm.xlu0 %2066, %v1151
        %v2068 = vpop.permute.xlu0 %2067
        %2071 = vset.pattern.permute.xlu0 0
        %2072 = vperm.xlu0 %2071, %v1153
        %v2073 = vpop.permute.xlu0 %2072
        %2076 = vset.pattern.permute.xlu0 0
        %2077 = vperm.xlu0 %2076, %v1155
        %v2078 = vpop.permute.xlu0 %2077
        %2081 = vset.pattern.permute.xlu0 0
        %2082 = vperm.xlu0 %2081, %v1157
        %v2083 = vpop.permute.xlu0 %2082
        %2086 = vset.pattern.permute.xlu0 0
        %2087 = vperm.xlu0 %2086, %v1159
        %v2088 = vpop.permute.xlu0 %2087
        %2091 = vset.pattern.permute.xlu0 0
        %2092 = vperm.xlu0 %2091, %v1161
        %v2093 = vpop.permute.xlu0 %2092
        %2096 = vset.pattern.permute.xlu0 0
        %2097 = vperm.xlu0 %2096, %v1163
        %v2098 = vpop.permute.xlu0 %2097
        %2101 = vset.pattern.permute.xlu0 0
        %2102 = vperm.xlu0 %2101, %v1165
        %v2103 = vpop.permute.xlu0 %2102
        %2106 = vset.pattern.permute.xlu0 0
        %2107 = vperm.xlu0 %2106, %v1167
        %v2108 = vpop.permute.xlu0 %2107
        %2111 = vset.pattern.permute.xlu0 0
        %2112 = vperm.xlu0 %2111, %v1169
        %v2113 = vpop.permute.xlu0 %2112
        %2116 = vset.pattern.permute.xlu0 0
        %2117 = vperm.xlu0 %2116, %v1171
        %v2118 = vpop.permute.xlu0 %2117
        %2121 = vset.pattern.permute.xlu0 0
        %2122 = vperm.xlu0 %2121, %v1173
        %v2123 = vpop.permute.xlu0 %2122
        %2126 = vset.pattern.permute.xlu0 0
        %2127 = vperm.xlu0 %2126, %v1175
        %v2128 = vpop.permute.xlu0 %2127
        %2131 = vset.pattern.permute.xlu0 0
        %2132 = vperm.xlu0 %2131, %v1177
        %v2133 = vpop.permute.xlu0 %2132
        %2136 = vset.pattern.permute.xlu0 0
        %2137 = vperm.xlu0 %2136, %v1179
        %v2138 = vpop.permute.xlu0 %2137
        %2141 = vset.pattern.permute.xlu0 0
        %2142 = vperm.xlu0 %2141, %v1181
        %v2143 = vpop.permute.xlu0 %2142
        %2146 = vset.pattern.permute.xlu0 0
        %2147 = vperm.xlu0 %2146, %v1183
        %v2148 = vpop.permute.xlu0 %2147
        %2151 = vset.pattern.permute.xlu0 0
        %2152 = vperm.xlu0 %2151, %v1185
        %v2153 = vpop.permute.xlu0 %2152
        %2156 = vset.pattern.permute.xlu0 0
        %2157 = vperm.xlu0 %2156, %v1187
        %v2158 = vpop.permute.xlu0 %2157
        %2161 = vset.pattern.permute.xlu0 0
        %2162 = vperm.xlu0 %2161, %v1189
        %v2163 = vpop.permute.xlu0 %2162
        %2166 = vset.pattern.permute.xlu0 0
        %2167 = vperm.xlu0 %2166, %v1191
        %v2168 = vpop.permute.xlu0 %2167
        %2171 = vset.pattern.permute.xlu0 0
        %2172 = vperm.xlu0 %2171, %v1193
        %v2173 = vpop.permute.xlu0 %2172
        %2176 = vset.pattern.permute.xlu0 0
        %2177 = vperm.xlu0 %2176, %v1195
        %v2178 = vpop.permute.xlu0 %2177
        %2181 = vset.pattern.permute.xlu0 0
        %2182 = vperm.xlu0 %2181, %v1197
        %v2183 = vpop.permute.xlu0 %2182
        %2186 = vset.pattern.permute.xlu0 0
        %2187 = vperm.xlu0 %2186, %v1199
        %v2188 = vpop.permute.xlu0 %2187
        %2191 = vset.pattern.permute.xlu0 0
        %2192 = vperm.xlu0 %2191, %v1201
        %v2193 = vpop.permute.xlu0 %2192
        %2196 = vset.pattern.permute.xlu0 0
        %2197 = vperm.xlu0 %2196, %v1203
        %v2198 = vpop.permute.xlu0 %2197
        %2201 = vset.pattern.permute.xlu0 0
        %2202 = vperm.xlu0 %2201, %v1205
        %v2203 = vpop.permute.xlu0 %2202
        %2206 = vset.pattern.permute.xlu0 0
        %2207 = vperm.xlu0 %2206, %v1207
        %v2208 = vpop.permute.xlu0 %2207
        %2211 = vset.pattern.permute.xlu0 0
        %2212 = vperm.xlu0 %2211, %v1209
        %v2213 = vpop.permute.xlu0 %2212
        %2216 = vset.pattern.permute.xlu0 0
        %2217 = vperm.xlu0 %2216, %v1211
        %v2218 = vpop.permute.xlu0 %2217
        %2221 = vset.pattern.permute.xlu0 0
        %2222 = vperm.xlu0 %2221, %v1213
        %v2223 = vpop.permute.xlu0 %2222
        %2226 = vset.pattern.permute.xlu0 0
        %2227 = vperm.xlu0 %2226, %v1215
        %v2228 = vpop.permute.xlu0 %2227
        %2231 = vset.pattern.permute.xlu0 0
        %2232 = vperm.xlu0 %2231, %v1217
        %v2233 = vpop.permute.xlu0 %2232
        %2236 = vset.pattern.permute.xlu0 0
        %2237 = vperm.xlu0 %2236, %v1219
        %v2238 = vpop.permute.xlu0 %2237
        %2241 = vset.pattern.permute.xlu0 0
        %2242 = vperm.xlu0 %2241, %v1221
        %v2243 = vpop.permute.xlu0 %2242
        %2246 = vset.pattern.permute.xlu0 0
        %2247 = vperm.xlu0 %2246, %v1223
        %v2248 = vpop.permute.xlu0 %2247
        %2251 = vset.pattern.permute.xlu0 0
        %2252 = vperm.xlu0 %2251, %v1225
        %v2253 = vpop.permute.xlu0 %2252
        %2256 = vset.pattern.permute.xlu0 0
        %2257 = vperm.xlu0 %2256, %v1227
        %v2258 = vpop.permute.xlu0 %2257
        %2261 = vset.pattern.permute.xlu0 0
        %2262 = vperm.xlu0 %2261, %v1229
        %v2263 = vpop.permute.xlu0 %2262
        %2266 = vset.pattern.permute.xlu0 0
        %2267 = vperm.xlu0 %2266, %v1231
        %v2268 = vpop.permute.xlu0 %2267
        %2271 = vset.pattern.permute.xlu0 0
        %2272 = vperm.xlu0 %2271, %v1233
        %v2273 = vpop.permute.xlu0 %2272
        %2276 = vset.pattern.permute.xlu0 0
        %2277 = vperm.xlu0 %2276, %v1235
        %v2278 = vpop.permute.xlu0 %2277
        %2281 = vset.pattern.permute.xlu0 0
        %2282 = vperm.xlu0 %2281, %v1237
        %v2283 = vpop.permute.xlu0 %2282
        %2286 = vset.pattern.permute.xlu0 0
        %2287 = vperm.xlu0 %2286, %v1239
        %v2288 = vpop.permute.xlu0 %2287
        %2291 = vset.pattern.permute.xlu0 0
        %2292 = vperm.xlu0 %2291, %v1241
        %v2293 = vpop.permute.xlu0 %2292
        %2296 = vset.pattern.permute.xlu0 0
        %2297 = vperm.xlu0 %2296, %v1243
        %v2298 = vpop.permute.xlu0 %2297
        %2301 = vset.pattern.permute.xlu0 0
        %2302 = vperm.xlu0 %2301, %v1245
        %v2303 = vpop.permute.xlu0 %2302
        %2306 = vset.pattern.permute.xlu0 0
        %2307 = vperm.xlu0 %2306, %v1247
        %v2308 = vpop.permute.xlu0 %2307
        %2311 = vset.pattern.permute.xlu0 0
        %2312 = vperm.xlu0 %2311, %v1249
        %v2313 = vpop.permute.xlu0 %2312
        %2316 = vset.pattern.permute.xlu0 0
        %2317 = vperm.xlu0 %2316, %v1251
        %v2318 = vpop.permute.xlu0 %2317
        %2321 = vset.pattern.permute.xlu0 0
        %2322 = vperm.xlu0 %2321, %v1253
        %v2323 = vpop.permute.xlu0 %2322
        %2326 = vset.pattern.permute.xlu0 0
        %2327 = vperm.xlu0 %2326, %v1255
        %v2328 = vpop.permute.xlu0 %2327
        %2331 = vset.pattern.permute.xlu0 0
        %2332 = vperm.xlu0 %2331, %v1257
        %v2333 = vpop.permute.xlu0 %2332
        %2336 = vset.pattern.permute.xlu0 0
        %2337 = vperm.xlu0 %2336, %v1259
        %v2338 = vpop.permute.xlu0 %2337
        %2341 = vset.pattern.permute.xlu0 0
        %2342 = vperm.xlu0 %2341, %v1261
        %v2343 = vpop.permute.xlu0 %2342
        %2346 = vset.pattern.permute.xlu0 0
        %2347 = vperm.xlu0 %2346, %v1263
        %v2348 = vpop.permute.xlu0 %2347
        %2351 = vset.pattern.permute.xlu0 0
        %2352 = vperm.xlu0 %2351, %v1265
        %v2353 = vpop.permute.xlu0 %2352
        %2356 = vset.pattern.permute.xlu0 0
        %2357 = vperm.xlu0 %2356, %v1267
        %v2358 = vpop.permute.xlu0 %2357
        %2361 = vset.pattern.permute.xlu0 0
        %2362 = vperm.xlu0 %2361, %v1269
        %v2363 = vpop.permute.xlu0 %2362
        %2366 = vset.pattern.permute.xlu0 0
        %2367 = vperm.xlu0 %2366, %v1271
        %v2368 = vpop.permute.xlu0 %2367
        %2371 = vset.pattern.permute.xlu0 0
        %2372 = vperm.xlu0 %2371, %v1273
        %v2373 = vpop.permute.xlu0 %2372
        %v2375 = vmul.f32 %v2058, %v1991
        %v2376 = vmul.f32 %v2063, %v1992
        %v2377 = vmul.f32 %v2068, %v1993
        %v2378 = vmul.f32 %v2073, %v1994
        %v2379 = vmul.f32 %v2078, %v1995
        %v2380 = vmul.f32 %v2083, %v1996
        %v2381 = vmul.f32 %v2088, %v1997
        %v2382 = vmul.f32 %v2093, %v1998
        %v2383 = vmul.f32 %v2098, %v1999
        %v2384 = vmul.f32 %v2103, %v2000
        %v2385 = vmul.f32 %v2108, %v2001
        %v2386 = vmul.f32 %v2113, %v2002
        %v2387 = vmul.f32 %v2118, %v2003
        %v2388 = vmul.f32 %v2123, %v2004
        %v2389 = vmul.f32 %v2128, %v2005
        %v2390 = vmul.f32 %v2133, %v2006
        %v2391 = vmul.f32 %v2138, %v2007
        %v2392 = vmul.f32 %v2143, %v2008
        %v2393 = vmul.f32 %v2148, %v2009
        %v2394 = vmul.f32 %v2153, %v2010
        %v2395 = vmul.f32 %v2158, %v2011
        %v2396 = vmul.f32 %v2163, %v2012
        %v2397 = vmul.f32 %v2168, %v2013
        %v2398 = vmul.f32 %v2173, %v2014
        %v2399 = vmul.f32 %v2178, %v2015
        %v2400 = vmul.f32 %v2183, %v2016
        %v2401 = vmul.f32 %v2188, %v2017
        %v2402 = vmul.f32 %v2193, %v2018
        %v2403 = vmul.f32 %v2198, %v2019
        %v2404 = vmul.f32 %v2203, %v2020
        %v2405 = vmul.f32 %v2208, %v2021
        %v2406 = vmul.f32 %v2213, %v2022
        %v2407 = vmul.f32 %v2218, %v2023
        %v2408 = vmul.f32 %v2223, %v2024
        %v2409 = vmul.f32 %v2228, %v2025
        %v2410 = vmul.f32 %v2233, %v2026
        %v2411 = vmul.f32 %v2238, %v2027
        %v2412 = vmul.f32 %v2243, %v2028
        %v2413 = vmul.f32 %v2248, %v2029
        %v2414 = vmul.f32 %v2253, %v2030
        %v2415 = vmul.f32 %v2258, %v2031
        %v2416 = vmul.f32 %v2263, %v2032
        %v2417 = vmul.f32 %v2268, %v2033
        %v2418 = vmul.f32 %v2273, %v2034
        %v2419 = vmul.f32 %v2278, %v2035
        %v2420 = vmul.f32 %v2283, %v2036
        %v2421 = vmul.f32 %v2288, %v2037
        %v2422 = vmul.f32 %v2293, %v2038
        %v2423 = vmul.f32 %v2298, %v2039
        %v2424 = vmul.f32 %v2303, %v2040
        %v2425 = vmul.f32 %v2308, %v2041
        %v2426 = vmul.f32 %v2313, %v2042
        %v2427 = vmul.f32 %v2318, %v2043
        %v2428 = vmul.f32 %v2323, %v2044
        %v2429 = vmul.f32 %v2328, %v2045
        %v2430 = vmul.f32 %v2333, %v2046
        %v2431 = vmul.f32 %v2338, %v2047
        %v2432 = vmul.f32 %v2343, %v2048
        %v2433 = vmul.f32 %v2348, %v2049
        %v2434 = vmul.f32 %v2353, %v2050
        %v2435 = vmul.f32 %v2358, %v2051
        %v2436 = vmul.f32 %v2363, %v2052
        %v2437 = vmul.f32 %v2368, %v2053
        %v2438 = vmul.f32 %v2373, %v2054
        %v2439 = vadd.f32 %v2375, %v1737
        %v2440 = vadd.f32 %v2376, %v1740
        %v2441 = vadd.f32 %v2377, %v1745
        %v2442 = vadd.f32 %v2378, %v1748
        %v2443 = vadd.f32 %v2379, %v1753
        %v2444 = vadd.f32 %v2380, %v1756
        %v2445 = vadd.f32 %v2381, %v1761
        %v2446 = vadd.f32 %v2382, %v1764
        %v2447 = vadd.f32 %v2383, %v1769
        %v2448 = vadd.f32 %v2384, %v1772
        %v2449 = vadd.f32 %v2385, %v1777
        %v2450 = vadd.f32 %v2386, %v1780
        %v2451 = vadd.f32 %v2387, %v1785
        %v2452 = vadd.f32 %v2388, %v1788
        %v2453 = vadd.f32 %v2389, %v1793
        %v2454 = vadd.f32 %v2390, %v1796
        %v2455 = vadd.f32 %v2391, %v1801
        %v2456 = vadd.f32 %v2392, %v1804
        %v2457 = vadd.f32 %v2393, %v1809
        %v2458 = vadd.f32 %v2394, %v1812
        %v2459 = vadd.f32 %v2395, %v1817
        %v2460 = vadd.f32 %v2396, %v1820
        %v2461 = vadd.f32 %v2397, %v1825
        %v2462 = vadd.f32 %v2398, %v1828
        %v2463 = vadd.f32 %v2399, %v1833
        %v2464 = vadd.f32 %v2400, %v1836
        %v2465 = vadd.f32 %v2401, %v1841
        %v2466 = vadd.f32 %v2402, %v1844
        %v2467 = vadd.f32 %v2403, %v1849
        %v2468 = vadd.f32 %v2404, %v1852
        %v2469 = vadd.f32 %v2405, %v1857
        %v2470 = vadd.f32 %v2406, %v1860
        %v2471 = vadd.f32 %v2407, %v1865
        %v2472 = vadd.f32 %v2408, %v1868
        %v2473 = vadd.f32 %v2409, %v1873
        %v2474 = vadd.f32 %v2410, %v1876
        %v2475 = vadd.f32 %v2411, %v1881
        %v2476 = vadd.f32 %v2412, %v1884
        %v2477 = vadd.f32 %v2413, %v1889
        %v2478 = vadd.f32 %v2414, %v1892
        %v2479 = vadd.f32 %v2415, %v1897
        %v2480 = vadd.f32 %v2416, %v1900
        %v2481 = vadd.f32 %v2417, %v1905
        %v2482 = vadd.f32 %v2418, %v1908
        %v2483 = vadd.f32 %v2419, %v1913
        %v2484 = vadd.f32 %v2420, %v1916
        %v2485 = vadd.f32 %v2421, %v1921
        %v2486 = vadd.f32 %v2422, %v1924
        %v2487 = vadd.f32 %v2423, %v1929
        %v2488 = vadd.f32 %v2424, %v1932
        %v2489 = vadd.f32 %v2425, %v1937
        %v2490 = vadd.f32 %v2426, %v1940
        %v2491 = vadd.f32 %v2427, %v1945
        %v2492 = vadd.f32 %v2428, %v1948
        %v2493 = vadd.f32 %v2429, %v1953
        %v2494 = vadd.f32 %v2430, %v1956
        %v2495 = vadd.f32 %v2431, %v1961
        %v2496 = vadd.f32 %v2432, %v1964
        %v2497 = vadd.f32 %v2433, %v1969
        %v2498 = vadd.f32 %v2434, %v1972
        %v2499 = vadd.f32 %v2435, %v1977
        %v2500 = vadd.f32 %v2436, %v1980
        %v2501 = vadd.f32 %v2437, %v1985
        %v2502 = vadd.f32 %v2438, %v1988
        %vm2503 = vcmask 72704
        %2504 = vst.msk [vmem:[#allocation3] sm:$0xff] %vm2503, %v2439
        %2505 = vst.msk [vmem:[#allocation3 + $0x8] sm:$0xff] %vm2503, %v2440
        %2506 = vst.msk [vmem:[#allocation3 + $0x10] sm:$0xff] %vm2503, %v2441
        %2507 = vst.msk [vmem:[#allocation3 + $0x18] sm:$0xff] %vm2503, %v2442
        %2508 = vst.msk [vmem:[#allocation3 + $0x20] sm:$0xff] %vm2503, %v2443
        %2509 = vst.msk [vmem:[#allocation3 + $0x28] sm:$0xff] %vm2503, %v2444
        %2510 = vst.msk [vmem:[#allocation3 + $0x30] sm:$0xff] %vm2503, %v2445
        %2511 = vst.msk [vmem:[#allocation3 + $0x38] sm:$0xff] %vm2503, %v2446
        %2512 = vst.msk [vmem:[#allocation3 + $0x40] sm:$0xff] %vm2503, %v2447
        %2513 = vst.msk [vmem:[#allocation3 + $0x48] sm:$0xff] %vm2503, %v2448
        %2514 = vst.msk [vmem:[#allocation3 + $0x50] sm:$0xff] %vm2503, %v2449
        %2515 = vst.msk [vmem:[#allocation3 + $0x58] sm:$0xff] %vm2503, %v2450
        %2516 = vst.msk [vmem:[#allocation3 + $0x60] sm:$0xff] %vm2503, %v2451
        %2517 = vst.msk [vmem:[#allocation3 + $0x68] sm:$0xff] %vm2503, %v2452
        %2518 = vst.msk [vmem:[#allocation3 + $0x70] sm:$0xff] %vm2503, %v2453
        %2519 = vst.msk [vmem:[#allocation3 + $0x78] sm:$0xff] %vm2503, %v2454
        %2520 = vst.msk [vmem:[#allocation3 + $0x80] sm:$0xff] %vm2503, %v2455
        %2521 = vst.msk [vmem:[#allocation3 + $0x88] sm:$0xff] %vm2503, %v2456
        %2522 = vst.msk [vmem:[#allocation3 + $0x90] sm:$0xff] %vm2503, %v2457
        %2523 = vst.msk [vmem:[#allocation3 + $0x98] sm:$0xff] %vm2503, %v2458
        %2524 = vst.msk [vmem:[#allocation3 + $0xa0] sm:$0xff] %vm2503, %v2459
        %2525 = vst.msk [vmem:[#allocation3 + $0xa8] sm:$0xff] %vm2503, %v2460
        %2526 = vst.msk [vmem:[#allocation3 + $0xb0] sm:$0xff] %vm2503, %v2461
        %2527 = vst.msk [vmem:[#allocation3 + $0xb8] sm:$0xff] %vm2503, %v2462
        %2528 = vst.msk [vmem:[#allocation3 + $0xc0] sm:$0xff] %vm2503, %v2463
        %2529 = vst.msk [vmem:[#allocation3 + $0xc8] sm:$0xff] %vm2503, %v2464
        %2530 = vst.msk [vmem:[#allocation3 + $0xd0] sm:$0xff] %vm2503, %v2465
        %2531 = vst.msk [vmem:[#allocation3 + $0xd8] sm:$0xff] %vm2503, %v2466
        %2532 = vst.msk [vmem:[#allocation3 + $0xe0] sm:$0xff] %vm2503, %v2467
        %2533 = vst.msk [vmem:[#allocation3 + $0xe8] sm:$0xff] %vm2503, %v2468
        %2534 = vst.msk [vmem:[#allocation3 + $0xf0] sm:$0xff] %vm2503, %v2469
        %2535 = vst.msk [vmem:[#allocation3 + $0xf8] sm:$0xff] %vm2503, %v2470
        %2536 = vst.msk [vmem:[#allocation3 + $0x100] sm:$0xff] %vm2503, %v2471
        %2537 = vst.msk [vmem:[#allocation3 + $0x108] sm:$0xff] %vm2503, %v2472
        %2538 = vst.msk [vmem:[#allocation3 + $0x110] sm:$0xff] %vm2503, %v2473
        %2539 = vst.msk [vmem:[#allocation3 + $0x118] sm:$0xff] %vm2503, %v2474
        %2540 = vst.msk [vmem:[#allocation3 + $0x120] sm:$0xff] %vm2503, %v2475
        %2541 = vst.msk [vmem:[#allocation3 + $0x128] sm:$0xff] %vm2503, %v2476
        %2542 = vst.msk [vmem:[#allocation3 + $0x130] sm:$0xff] %vm2503, %v2477
        %2543 = vst.msk [vmem:[#allocation3 + $0x138] sm:$0xff] %vm2503, %v2478
        %2544 = vst.msk [vmem:[#allocation3 + $0x140] sm:$0xff] %vm2503, %v2479
        %2545 = vst.msk [vmem:[#allocation3 + $0x148] sm:$0xff] %vm2503, %v2480
        %2546 = vst.msk [vmem:[#allocation3 + $0x150] sm:$0xff] %vm2503, %v2481
        %2547 = vst.msk [vmem:[#allocation3 + $0x158] sm:$0xff] %vm2503, %v2482
        %2548 = vst.msk [vmem:[#allocation3 + $0x160] sm:$0xff] %vm2503, %v2483
        %2549 = vst.msk [vmem:[#allocation3 + $0x168] sm:$0xff] %vm2503, %v2484
        %2550 = vst.msk [vmem:[#allocation3 + $0x170] sm:$0xff] %vm2503, %v2485
        %2551 = vst.msk [vmem:[#allocation3 + $0x178] sm:$0xff] %vm2503, %v2486
        %2552 = vst.msk [vmem:[#allocation3 + $0x180] sm:$0xff] %vm2503, %v2487
        %2553 = vst.msk [vmem:[#allocation3 + $0x188] sm:$0xff] %vm2503, %v2488
        %2554 = vst.msk [vmem:[#allocation3 + $0x190] sm:$0xff] %vm2503, %v2489
        %2555 = vst.msk [vmem:[#allocation3 + $0x198] sm:$0xff] %vm2503, %v2490
        %2556 = vst.msk [vmem:[#allocation3 + $0x1a0] sm:$0xff] %vm2503, %v2491
        %2557 = vst.msk [vmem:[#allocation3 + $0x1a8] sm:$0xff] %vm2503, %v2492
        %2558 = vst.msk [vmem:[#allocation3 + $0x1b0] sm:$0xff] %vm2503, %v2493
        %2559 = vst.msk [vmem:[#allocation3 + $0x1b8] sm:$0xff] %vm2503, %v2494
        %2560 = vst.msk [vmem:[#allocation3 + $0x1c0] sm:$0xff] %vm2503, %v2495
        %2561 = vst.msk [vmem:[#allocation3 + $0x1c8] sm:$0xff] %vm2503, %v2496
        %2562 = vst.msk [vmem:[#allocation3 + $0x1d0] sm:$0xff] %vm2503, %v2497
        %2563 = vst.msk [vmem:[#allocation3 + $0x1d8] sm:$0xff] %vm2503, %v2498
        %2564 = vst.msk [vmem:[#allocation3 + $0x1e0] sm:$0xff] %vm2503, %v2499
        %2565 = vst.msk [vmem:[#allocation3 + $0x1e8] sm:$0xff] %vm2503, %v2500
        %2566 = vst.msk [vmem:[#allocation3 + $0x1f0] sm:$0xff] %vm2503, %v2501
        %2567 = vst.msk [vmem:[#allocation3 + $0x1f8] sm:$0xff] %vm2503, %v2502
        %vm2568 = vcmask 7168
        %2569 = vst.msk [vmem:[#allocation2] sm:$0xff] %vm2568, %v1018
        %2570 = vst.msk [vmem:[#allocation2 + $0x8] sm:$0xff] %vm2568, %v1019
        %2571 = vst.msk [vmem:[#allocation2 + $0x10] sm:$0xff] %vm2568, %v1020
        %2572 = vst.msk [vmem:[#allocation2 + $0x18] sm:$0xff] %vm2568, %v1021
        %2573 = vst.msk [vmem:[#allocation2 + $0x20] sm:$0xff] %vm2568, %v1022
        %2574 = vst.msk [vmem:[#allocation2 + $0x28] sm:$0xff] %vm2568, %v1023
        %2575 = vst.msk [vmem:[#allocation2 + $0x30] sm:$0xff] %vm2568, %v1024
        %2576 = vst.msk [vmem:[#allocation2 + $0x38] sm:$0xff] %vm2568, %v1025
        %2577 = vst.msk [vmem:[#allocation2 + $0x40] sm:$0xff] %vm2568, %v1026
        %2578 = vst.msk [vmem:[#allocation2 + $0x48] sm:$0xff] %vm2568, %v1027
        %2579 = vst.msk [vmem:[#allocation2 + $0x50] sm:$0xff] %vm2568, %v1028
        %2580 = vst.msk [vmem:[#allocation2 + $0x58] sm:$0xff] %vm2568, %v1029
        %2581 = vst.msk [vmem:[#allocation2 + $0x60] sm:$0xff] %vm2568, %v1030
        %2582 = vst.msk [vmem:[#allocation2 + $0x68] sm:$0xff] %vm2568, %v1031
        %2583 = vst.msk [vmem:[#allocation2 + $0x70] sm:$0xff] %vm2568, %v1032
        %2584 = vst.msk [vmem:[#allocation2 + $0x78] sm:$0xff] %vm2568, %v1033
        %2585 = vst.msk [vmem:[#allocation2 + $0x80] sm:$0xff] %vm2568, %v1034
        %2586 = vst.msk [vmem:[#allocation2 + $0x88] sm:$0xff] %vm2568, %v1035
        %2587 = vst.msk [vmem:[#allocation2 + $0x90] sm:$0xff] %vm2568, %v1036
        %2588 = vst.msk [vmem:[#allocation2 + $0x98] sm:$0xff] %vm2568, %v1037
        %2589 = vst.msk [vmem:[#allocation2 + $0xa0] sm:$0xff] %vm2568, %v1038
        %2590 = vst.msk [vmem:[#allocation2 + $0xa8] sm:$0xff] %vm2568, %v1039
        %2591 = vst.msk [vmem:[#allocation2 + $0xb0] sm:$0xff] %vm2568, %v1040
        %2592 = vst.msk [vmem:[#allocation2 + $0xb8] sm:$0xff] %vm2568, %v1041
        %2593 = vst.msk [vmem:[#allocation2 + $0xc0] sm:$0xff] %vm2568, %v1042
        %2594 = vst.msk [vmem:[#allocation2 + $0xc8] sm:$0xff] %vm2568, %v1043
        %2595 = vst.msk [vmem:[#allocation2 + $0xd0] sm:$0xff] %vm2568, %v1044
        %2596 = vst.msk [vmem:[#allocation2 + $0xd8] sm:$0xff] %vm2568, %v1045
        %2597 = vst.msk [vmem:[#allocation2 + $0xe0] sm:$0xff] %vm2568, %v1046
        %2598 = vst.msk [vmem:[#allocation2 + $0xe8] sm:$0xff] %vm2568, %v1047
        %2599 = vst.msk [vmem:[#allocation2 + $0xf0] sm:$0xff] %vm2568, %v1048
        %2600 = vst.msk [vmem:[#allocation2 + $0xf8] sm:$0xff] %vm2568, %v1049
        %2601 = vst.msk [vmem:[#allocation2 + $0x100] sm:$0xff] %vm2568, %v1050
        %2602 = vst.msk [vmem:[#allocation2 + $0x108] sm:$0xff] %vm2568, %v1051
        %2603 = vst.msk [vmem:[#allocation2 + $0x110] sm:$0xff] %vm2568, %v1052
        %2604 = vst.msk [vmem:[#allocation2 + $0x118] sm:$0xff] %vm2568, %v1053
        %2605 = vst.msk [vmem:[#allocation2 + $0x120] sm:$0xff] %vm2568, %v1054
        %2606 = vst.msk [vmem:[#allocation2 + $0x128] sm:$0xff] %vm2568, %v1055
        %2607 = vst.msk [vmem:[#allocation2 + $0x130] sm:$0xff] %vm2568, %v1056
        %2608 = vst.msk [vmem:[#allocation2 + $0x138] sm:$0xff] %vm2568, %v1057
        %2609 = vst.msk [vmem:[#allocation2 + $0x140] sm:$0xff] %vm2568, %v1058
        %2610 = vst.msk [vmem:[#allocation2 + $0x148] sm:$0xff] %vm2568, %v1059
        %2611 = vst.msk [vmem:[#allocation2 + $0x150] sm:$0xff] %vm2568, %v1060
        %2612 = vst.msk [vmem:[#allocation2 + $0x158] sm:$0xff] %vm2568, %v1061
        %2613 = vst.msk [vmem:[#allocation2 + $0x160] sm:$0xff] %vm2568, %v1062
        %2614 = vst.msk [vmem:[#allocation2 + $0x168] sm:$0xff] %vm2568, %v1063
        %2615 = vst.msk [vmem:[#allocation2 + $0x170] sm:$0xff] %vm2568, %v1064
        %2616 = vst.msk [vmem:[#allocation2 + $0x178] sm:$0xff] %vm2568, %v1065
        %2617 = vst.msk [vmem:[#allocation2 + $0x180] sm:$0xff] %vm2568, %v1066
        %2618 = vst.msk [vmem:[#allocation2 + $0x188] sm:$0xff] %vm2568, %v1067
        %2619 = vst.msk [vmem:[#allocation2 + $0x190] sm:$0xff] %vm2568, %v1068
        %2620 = vst.msk [vmem:[#allocation2 + $0x198] sm:$0xff] %vm2568, %v1069
        %2621 = vst.msk [vmem:[#allocation2 + $0x1a0] sm:$0xff] %vm2568, %v1070
        %2622 = vst.msk [vmem:[#allocation2 + $0x1a8] sm:$0xff] %vm2568, %v1071
        %2623 = vst.msk [vmem:[#allocation2 + $0x1b0] sm:$0xff] %vm2568, %v1072
        %2624 = vst.msk [vmem:[#allocation2 + $0x1b8] sm:$0xff] %vm2568, %v1073
        %2625 = vst.msk [vmem:[#allocation2 + $0x1c0] sm:$0xff] %vm2568, %v1074
        %2626 = vst.msk [vmem:[#allocation2 + $0x1c8] sm:$0xff] %vm2568, %v1075
        %2627 = vst.msk [vmem:[#allocation2 + $0x1d0] sm:$0xff] %vm2568, %v1076
        %2628 = vst.msk [vmem:[#allocation2 + $0x1d8] sm:$0xff] %vm2568, %v1077
        %2629 = vst.msk [vmem:[#allocation2 + $0x1e0] sm:$0xff] %vm2568, %v1078
        %2630 = vst.msk [vmem:[#allocation2 + $0x1e8] sm:$0xff] %vm2568, %v1079
        %2631 = vst.msk [vmem:[#allocation2 + $0x1f0] sm:$0xff] %vm2568, %v1080
        %2632 = vst.msk [vmem:[#allocation2 + $0x1f8] sm:$0xff] %vm2568, %v1081
        %p2633 = scmp.eq.s32.totalorder %s33, 1
        // Predicated region
        $region65: #{tpu_custom_call.1} parent=39 // pred_check
          %p2634 = pneg %p2633
        $region66: #{tpu_custom_call.1} parent=39 // pred_check_branch
          %2636 = sbr.rel (%p2634) target = $region68
        $region67: #{tpu_custom_call.1} parent=39 // pred_region
          %v2637 = vld [vmem:[#allocation3] sm:$0xff]
          %v2638 = vld [vmem:[#allocation3 + $0x8] sm:$0xff]
          %v2639 = vld [vmem:[#allocation3 + $0x10] sm:$0xff]
          %v2640 = vld [vmem:[#allocation3 + $0x18] sm:$0xff]
          %v2641 = vld [vmem:[#allocation3 + $0x20] sm:$0xff]
          %v2642 = vld [vmem:[#allocation3 + $0x28] sm:$0xff]
          %v2643 = vld [vmem:[#allocation3 + $0x30] sm:$0xff]
          %v2644 = vld [vmem:[#allocation3 + $0x38] sm:$0xff]
          %v2645 = vld [vmem:[#allocation3 + $0x40] sm:$0xff]
          %v2646 = vld [vmem:[#allocation3 + $0x48] sm:$0xff]
          %v2647 = vld [vmem:[#allocation3 + $0x50] sm:$0xff]
          %v2648 = vld [vmem:[#allocation3 + $0x58] sm:$0xff]
          %v2649 = vld [vmem:[#allocation3 + $0x60] sm:$0xff]
          %v2650 = vld [vmem:[#allocation3 + $0x68] sm:$0xff]
          %v2651 = vld [vmem:[#allocation3 + $0x70] sm:$0xff]
          %v2652 = vld [vmem:[#allocation3 + $0x78] sm:$0xff]
          %v2653 = vld [vmem:[#allocation3 + $0x80] sm:$0xff]
          %v2654 = vld [vmem:[#allocation3 + $0x88] sm:$0xff]
          %v2655 = vld [vmem:[#allocation3 + $0x90] sm:$0xff]
          %v2656 = vld [vmem:[#allocation3 + $0x98] sm:$0xff]
          %v2657 = vld [vmem:[#allocation3 + $0xa0] sm:$0xff]
          %v2658 = vld [vmem:[#allocation3 + $0xa8] sm:$0xff]
          %v2659 = vld [vmem:[#allocation3 + $0xb0] sm:$0xff]
          %v2660 = vld [vmem:[#allocation3 + $0xb8] sm:$0xff]
          %v2661 = vld [vmem:[#allocation3 + $0xc0] sm:$0xff]
          %v2662 = vld [vmem:[#allocation3 + $0xc8] sm:$0xff]
          %v2663 = vld [vmem:[#allocation3 + $0xd0] sm:$0xff]
          %v2664 = vld [vmem:[#allocation3 + $0xd8] sm:$0xff]
          %v2665 = vld [vmem:[#allocation3 + $0xe0] sm:$0xff]
          %v2666 = vld [vmem:[#allocation3 + $0xe8] sm:$0xff]
          %v2667 = vld [vmem:[#allocation3 + $0xf0] sm:$0xff]
          %v2668 = vld [vmem:[#allocation3 + $0xf8] sm:$0xff]
          %v2669 = vld [vmem:[#allocation3 + $0x100] sm:$0xff]
          %v2670 = vld [vmem:[#allocation3 + $0x108] sm:$0xff]
          %v2671 = vld [vmem:[#allocation3 + $0x110] sm:$0xff]
          %v2672 = vld [vmem:[#allocation3 + $0x118] sm:$0xff]
          %v2673 = vld [vmem:[#allocation3 + $0x120] sm:$0xff]
          %v2674 = vld [vmem:[#allocation3 + $0x128] sm:$0xff]
          %v2675 = vld [vmem:[#allocation3 + $0x130] sm:$0xff]
          %v2676 = vld [vmem:[#allocation3 + $0x138] sm:$0xff]
          %v2677 = vld [vmem:[#allocation3 + $0x140] sm:$0xff]
          %v2678 = vld [vmem:[#allocation3 + $0x148] sm:$0xff]
          %v2679 = vld [vmem:[#allocation3 + $0x150] sm:$0xff]
          %v2680 = vld [vmem:[#allocation3 + $0x158] sm:$0xff]
          %v2681 = vld [vmem:[#allocation3 + $0x160] sm:$0xff]
          %v2682 = vld [vmem:[#allocation3 + $0x168] sm:$0xff]
          %v2683 = vld [vmem:[#allocation3 + $0x170] sm:$0xff]
          %v2684 = vld [vmem:[#allocation3 + $0x178] sm:$0xff]
          %v2685 = vld [vmem:[#allocation3 + $0x180] sm:$0xff]
          %v2686 = vld [vmem:[#allocation3 + $0x188] sm:$0xff]
          %v2687 = vld [vmem:[#allocation3 + $0x190] sm:$0xff]
          %v2688 = vld [vmem:[#allocation3 + $0x198] sm:$0xff]
          %v2689 = vld [vmem:[#allocation3 + $0x1a0] sm:$0xff]
          %v2690 = vld [vmem:[#allocation3 + $0x1a8] sm:$0xff]
          %v2691 = vld [vmem:[#allocation3 + $0x1b0] sm:$0xff]
          %v2692 = vld [vmem:[#allocation3 + $0x1b8] sm:$0xff]
          %v2693 = vld [vmem:[#allocation3 + $0x1c0] sm:$0xff]
          %v2694 = vld [vmem:[#allocation3 + $0x1c8] sm:$0xff]
          %v2695 = vld [vmem:[#allocation3 + $0x1d0] sm:$0xff]
          %v2696 = vld [vmem:[#allocation3 + $0x1d8] sm:$0xff]
          %v2697 = vld [vmem:[#allocation3 + $0x1e0] sm:$0xff]
          %v2698 = vld [vmem:[#allocation3 + $0x1e8] sm:$0xff]
          %v2699 = vld [vmem:[#allocation3 + $0x1f0] sm:$0xff]
          %v2700 = vld [vmem:[#allocation3 + $0x1f8] sm:$0xff]
          %v2701 = vmax.f32 %v2637, 1e-20
          %v2702 = vmax.f32 %v2638, 1e-20
          %v2703 = vmax.f32 %v2639, 1e-20
          %v2704 = vmax.f32 %v2640, 1e-20
          %v2705 = vmax.f32 %v2641, 1e-20
          %v2706 = vmax.f32 %v2642, 1e-20
          %v2707 = vmax.f32 %v2643, 1e-20
          %v2708 = vmax.f32 %v2644, 1e-20
          %v2709 = vmax.f32 %v2645, 1e-20
          %v2710 = vmax.f32 %v2646, 1e-20
          %v2711 = vmax.f32 %v2647, 1e-20
          %v2712 = vmax.f32 %v2648, 1e-20
          %v2713 = vmax.f32 %v2649, 1e-20
          %v2714 = vmax.f32 %v2650, 1e-20
          %v2715 = vmax.f32 %v2651, 1e-20
          %v2716 = vmax.f32 %v2652, 1e-20
          %v2717 = vmax.f32 %v2653, 1e-20
          %v2718 = vmax.f32 %v2654, 1e-20
          %v2719 = vmax.f32 %v2655, 1e-20
          %v2720 = vmax.f32 %v2656, 1e-20
          %v2721 = vmax.f32 %v2657, 1e-20
          %v2722 = vmax.f32 %v2658, 1e-20
          %v2723 = vmax.f32 %v2659, 1e-20
          %v2724 = vmax.f32 %v2660, 1e-20
          %v2725 = vmax.f32 %v2661, 1e-20
          %v2726 = vmax.f32 %v2662, 1e-20
          %v2727 = vmax.f32 %v2663, 1e-20
          %v2728 = vmax.f32 %v2664, 1e-20
          %v2729 = vmax.f32 %v2665, 1e-20
          %v2730 = vmax.f32 %v2666, 1e-20
          %v2731 = vmax.f32 %v2667, 1e-20
          %v2732 = vmax.f32 %v2668, 1e-20
          %v2733 = vmax.f32 %v2669, 1e-20
          %v2734 = vmax.f32 %v2670, 1e-20
          %v2735 = vmax.f32 %v2671, 1e-20
          %v2736 = vmax.f32 %v2672, 1e-20
          %v2737 = vmax.f32 %v2673, 1e-20
          %v2738 = vmax.f32 %v2674, 1e-20
          %v2739 = vmax.f32 %v2675, 1e-20
          %v2740 = vmax.f32 %v2676, 1e-20
          %v2741 = vmax.f32 %v2677, 1e-20
          %v2742 = vmax.f32 %v2678, 1e-20
          %v2743 = vmax.f32 %v2679, 1e-20
          %v2744 = vmax.f32 %v2680, 1e-20
          %v2745 = vmax.f32 %v2681, 1e-20
          %v2746 = vmax.f32 %v2682, 1e-20
          %v2747 = vmax.f32 %v2683, 1e-20
          %v2748 = vmax.f32 %v2684, 1e-20
          %v2749 = vmax.f32 %v2685, 1e-20
          %v2750 = vmax.f32 %v2686, 1e-20
          %v2751 = vmax.f32 %v2687, 1e-20
          %v2752 = vmax.f32 %v2688, 1e-20
          %v2753 = vmax.f32 %v2689, 1e-20
          %v2754 = vmax.f32 %v2690, 1e-20
          %v2755 = vmax.f32 %v2691, 1e-20
          %v2756 = vmax.f32 %v2692, 1e-20
          %v2757 = vmax.f32 %v2693, 1e-20
          %v2758 = vmax.f32 %v2694, 1e-20
          %v2759 = vmax.f32 %v2695, 1e-20
          %v2760 = vmax.f32 %v2696, 1e-20
          %v2761 = vmax.f32 %v2697, 1e-20
          %v2762 = vmax.f32 %v2698, 1e-20
          %v2763 = vmax.f32 %v2699, 1e-20
          %v2764 = vmax.f32 %v2700, 1e-20
          %v2765 = vrcp.pop %v2701
          %v2766 = vrcp.pop %v2702
          %v2767 = vrcp.pop %v2703
          %v2768 = vrcp.pop %v2704
          %v2769 = vrcp.pop %v2705
          %v2770 = vrcp.pop %v2706
          %v2771 = vrcp.pop %v2707
          %v2772 = vrcp.pop %v2708
          %v2773 = vrcp.pop %v2709
          %v2774 = vrcp.pop %v2710
          %v2775 = vrcp.pop %v2711
          %v2776 = vrcp.pop %v2712
          %v2777 = vrcp.pop %v2713
          %v2778 = vrcp.pop %v2714
          %v2779 = vrcp.pop %v2715
          %v2780 = vrcp.pop %v2716
          %v2781 = vrcp.pop %v2717
          %v2782 = vrcp.pop %v2718
          %v2783 = vrcp.pop %v2719
          %v2784 = vrcp.pop %v2720
          %v2785 = vrcp.pop %v2721
          %v2786 = vrcp.pop %v2722
          %v2787 = vrcp.pop %v2723
          %v2788 = vrcp.pop %v2724
          %v2789 = vrcp.pop %v2725
          %v2790 = vrcp.pop %v2726
          %v2791 = vrcp.pop %v2727
          %v2792 = vrcp.pop %v2728
          %v2793 = vrcp.pop %v2729
          %v2794 = vrcp.pop %v2730
          %v2795 = vrcp.pop %v2731
          %v2796 = vrcp.pop %v2732
          %v2797 = vrcp.pop %v2733
          %v2798 = vrcp.pop %v2734
          %v2799 = vrcp.pop %v2735
          %v2800 = vrcp.pop %v2736
          %v2801 = vrcp.pop %v2737
          %v2802 = vrcp.pop %v2738
          %v2803 = vrcp.pop %v2739
          %v2804 = vrcp.pop %v2740
          %v2805 = vrcp.pop %v2741
          %v2806 = vrcp.pop %v2742
          %v2807 = vrcp.pop %v2743
          %v2808 = vrcp.pop %v2744
          %v2809 = vrcp.pop %v2745
          %v2810 = vrcp.pop %v2746
          %v2811 = vrcp.pop %v2747
          %v2812 = vrcp.pop %v2748
          %v2813 = vrcp.pop %v2749
          %v2814 = vrcp.pop %v2750
          %v2815 = vrcp.pop %v2751
          %v2816 = vrcp.pop %v2752
          %v2817 = vrcp.pop %v2753
          %v2818 = vrcp.pop %v2754
          %v2819 = vrcp.pop %v2755
          %v2820 = vrcp.pop %v2756
          %v2821 = vrcp.pop %v2757
          %v2822 = vrcp.pop %v2758
          %v2823 = vrcp.pop %v2759
          %v2824 = vrcp.pop %v2760
          %v2825 = vrcp.pop %v2761
          %v2826 = vrcp.pop %v2762
          %v2827 = vrcp.pop %v2763
          %v2828 = vrcp.pop %v2764
          %2830 = vset.pattern.permute.xlu0 8
          %2831 = vperm.xlu0 %2830, %v2765
          %v2832 = vpop.permute.xlu0 %2831
          %2835 = vset.pattern.permute.xlu0 8
          %2836 = vperm.xlu0 %2835, %v2766
          %v2837 = vpop.permute.xlu0 %2836
          %2840 = vset.pattern.permute.xlu0 8
          %2841 = vperm.xlu0 %2840, %v2767
          %v2842 = vpop.permute.xlu0 %2841
          %2845 = vset.pattern.permute.xlu0 8
          %2846 = vperm.xlu0 %2845, %v2768
          %v2847 = vpop.permute.xlu0 %2846
          %2850 = vset.pattern.permute.xlu0 8
          %2851 = vperm.xlu0 %2850, %v2769
          %v2852 = vpop.permute.xlu0 %2851
          %2855 = vset.pattern.permute.xlu0 8
          %2856 = vperm.xlu0 %2855, %v2770
          %v2857 = vpop.permute.xlu0 %2856
          %2860 = vset.pattern.permute.xlu0 8
          %2861 = vperm.xlu0 %2860, %v2771
          %v2862 = vpop.permute.xlu0 %2861
          %2865 = vset.pattern.permute.xlu0 8
          %2866 = vperm.xlu0 %2865, %v2772
          %v2867 = vpop.permute.xlu0 %2866
          %2870 = vset.pattern.permute.xlu0 8
          %2871 = vperm.xlu0 %2870, %v2773
          %v2872 = vpop.permute.xlu0 %2871
          %2875 = vset.pattern.permute.xlu0 8
          %2876 = vperm.xlu0 %2875, %v2774
          %v2877 = vpop.permute.xlu0 %2876
          %2880 = vset.pattern.permute.xlu0 8
          %2881 = vperm.xlu0 %2880, %v2775
          %v2882 = vpop.permute.xlu0 %2881
          %2885 = vset.pattern.permute.xlu0 8
          %2886 = vperm.xlu0 %2885, %v2776
          %v2887 = vpop.permute.xlu0 %2886
          %2890 = vset.pattern.permute.xlu0 8
          %2891 = vperm.xlu0 %2890, %v2777
          %v2892 = vpop.permute.xlu0 %2891
          %2895 = vset.pattern.permute.xlu0 8
          %2896 = vperm.xlu0 %2895, %v2778
          %v2897 = vpop.permute.xlu0 %2896
          %2900 = vset.pattern.permute.xlu0 8
          %2901 = vperm.xlu0 %2900, %v2779
          %v2902 = vpop.permute.xlu0 %2901
          %2905 = vset.pattern.permute.xlu0 8
          %2906 = vperm.xlu0 %2905, %v2780
          %v2907 = vpop.permute.xlu0 %2906
          %2910 = vset.pattern.permute.xlu0 8
          %2911 = vperm.xlu0 %2910, %v2781
          %v2912 = vpop.permute.xlu0 %2911
          %2915 = vset.pattern.permute.xlu0 8
          %2916 = vperm.xlu0 %2915, %v2782
          %v2917 = vpop.permute.xlu0 %2916
          %2920 = vset.pattern.permute.xlu0 8
          %2921 = vperm.xlu0 %2920, %v2783
          %v2922 = vpop.permute.xlu0 %2921
          %2925 = vset.pattern.permute.xlu0 8
          %2926 = vperm.xlu0 %2925, %v2784
          %v2927 = vpop.permute.xlu0 %2926
          %2930 = vset.pattern.permute.xlu0 8
          %2931 = vperm.xlu0 %2930, %v2785
          %v2932 = vpop.permute.xlu0 %2931
          %2935 = vset.pattern.permute.xlu0 8
          %2936 = vperm.xlu0 %2935, %v2786
          %v2937 = vpop.permute.xlu0 %2936
          %2940 = vset.pattern.permute.xlu0 8
          %2941 = vperm.xlu0 %2940, %v2787
          %v2942 = vpop.permute.xlu0 %2941
          %2945 = vset.pattern.permute.xlu0 8
          %2946 = vperm.xlu0 %2945, %v2788
          %v2947 = vpop.permute.xlu0 %2946
          %2950 = vset.pattern.permute.xlu0 8
          %2951 = vperm.xlu0 %2950, %v2789
          %v2952 = vpop.permute.xlu0 %2951
          %2955 = vset.pattern.permute.xlu0 8
          %2956 = vperm.xlu0 %2955, %v2790
          %v2957 = vpop.permute.xlu0 %2956
          %2960 = vset.pattern.permute.xlu0 8
          %2961 = vperm.xlu0 %2960, %v2791
          %v2962 = vpop.permute.xlu0 %2961
          %2965 = vset.pattern.permute.xlu0 8
          %2966 = vperm.xlu0 %2965, %v2792
          %v2967 = vpop.permute.xlu0 %2966
          %2970 = vset.pattern.permute.xlu0 8
          %2971 = vperm.xlu0 %2970, %v2793
          %v2972 = vpop.permute.xlu0 %2971
          %2975 = vset.pattern.permute.xlu0 8
          %2976 = vperm.xlu0 %2975, %v2794
          %v2977 = vpop.permute.xlu0 %2976
          %2980 = vset.pattern.permute.xlu0 8
          %2981 = vperm.xlu0 %2980, %v2795
          %v2982 = vpop.permute.xlu0 %2981
          %2985 = vset.pattern.permute.xlu0 8
          %2986 = vperm.xlu0 %2985, %v2796
          %v2987 = vpop.permute.xlu0 %2986
          %2990 = vset.pattern.permute.xlu0 8
          %2991 = vperm.xlu0 %2990, %v2797
          %v2992 = vpop.permute.xlu0 %2991
          %2995 = vset.pattern.permute.xlu0 8
          %2996 = vperm.xlu0 %2995, %v2798
          %v2997 = vpop.permute.xlu0 %2996
          %3000 = vset.pattern.permute.xlu0 8
          %3001 = vperm.xlu0 %3000, %v2799
          %v3002 = vpop.permute.xlu0 %3001
          %3005 = vset.pattern.permute.xlu0 8
          %3006 = vperm.xlu0 %3005, %v2800
          %v3007 = vpop.permute.xlu0 %3006
          %3010 = vset.pattern.permute.xlu0 8
          %3011 = vperm.xlu0 %3010, %v2801
          %v3012 = vpop.permute.xlu0 %3011
          %3015 = vset.pattern.permute.xlu0 8
          %3016 = vperm.xlu0 %3015, %v2802
          %v3017 = vpop.permute.xlu0 %3016
          %3020 = vset.pattern.permute.xlu0 8
          %3021 = vperm.xlu0 %3020, %v2803
          %v3022 = vpop.permute.xlu0 %3021
          %3025 = vset.pattern.permute.xlu0 8
          %3026 = vperm.xlu0 %3025, %v2804
          %v3027 = vpop.permute.xlu0 %3026
          %3030 = vset.pattern.permute.xlu0 8
          %3031 = vperm.xlu0 %3030, %v2805
          %v3032 = vpop.permute.xlu0 %3031
          %3035 = vset.pattern.permute.xlu0 8
          %3036 = vperm.xlu0 %3035, %v2806
          %v3037 = vpop.permute.xlu0 %3036
          %3040 = vset.pattern.permute.xlu0 8
          %3041 = vperm.xlu0 %3040, %v2807
          %v3042 = vpop.permute.xlu0 %3041
          %3045 = vset.pattern.permute.xlu0 8
          %3046 = vperm.xlu0 %3045, %v2808
          %v3047 = vpop.permute.xlu0 %3046
          %3050 = vset.pattern.permute.xlu0 8
          %3051 = vperm.xlu0 %3050, %v2809
          %v3052 = vpop.permute.xlu0 %3051
          %3055 = vset.pattern.permute.xlu0 8
          %3056 = vperm.xlu0 %3055, %v2810
          %v3057 = vpop.permute.xlu0 %3056
          %3060 = vset.pattern.permute.xlu0 8
          %3061 = vperm.xlu0 %3060, %v2811
          %v3062 = vpop.permute.xlu0 %3061
          %3065 = vset.pattern.permute.xlu0 8
          %3066 = vperm.xlu0 %3065, %v2812
          %v3067 = vpop.permute.xlu0 %3066
          %3070 = vset.pattern.permute.xlu0 8
          %3071 = vperm.xlu0 %3070, %v2813
          %v3072 = vpop.permute.xlu0 %3071
          %3075 = vset.pattern.permute.xlu0 8
          %3076 = vperm.xlu0 %3075, %v2814
          %v3077 = vpop.permute.xlu0 %3076
          %3080 = vset.pattern.permute.xlu0 8
          %3081 = vperm.xlu0 %3080, %v2815
          %v3082 = vpop.permute.xlu0 %3081
          %3085 = vset.pattern.permute.xlu0 8
          %3086 = vperm.xlu0 %3085, %v2816
          %v3087 = vpop.permute.xlu0 %3086
          %3090 = vset.pattern.permute.xlu0 8
          %3091 = vperm.xlu0 %3090, %v2817
          %v3092 = vpop.permute.xlu0 %3091
          %3095 = vset.pattern.permute.xlu0 8
          %3096 = vperm.xlu0 %3095, %v2818
          %v3097 = vpop.permute.xlu0 %3096
          %3100 = vset.pattern.permute.xlu0 8
          %3101 = vperm.xlu0 %3100, %v2819
          %v3102 = vpop.permute.xlu0 %3101
          %3105 = vset.pattern.permute.xlu0 8
          %3106 = vperm.xlu0 %3105, %v2820
          %v3107 = vpop.permute.xlu0 %3106
          %3110 = vset.pattern.permute.xlu0 8
          %3111 = vperm.xlu0 %3110, %v2821
          %v3112 = vpop.permute.xlu0 %3111
          %3115 = vset.pattern.permute.xlu0 8
          %3116 = vperm.xlu0 %3115, %v2822
          %v3117 = vpop.permute.xlu0 %3116
          %3120 = vset.pattern.permute.xlu0 8
          %3121 = vperm.xlu0 %3120, %v2823
          %v3122 = vpop.permute.xlu0 %3121
          %3125 = vset.pattern.permute.xlu0 8
          %3126 = vperm.xlu0 %3125, %v2824
          %v3127 = vpop.permute.xlu0 %3126
          %3130 = vset.pattern.permute.xlu0 8
          %3131 = vperm.xlu0 %3130, %v2825
          %v3132 = vpop.permute.xlu0 %3131
          %3135 = vset.pattern.permute.xlu0 8
          %3136 = vperm.xlu0 %3135, %v2826
          %v3137 = vpop.permute.xlu0 %3136
          %3140 = vset.pattern.permute.xlu0 8
          %3141 = vperm.xlu0 %3140, %v2827
          %v3142 = vpop.permute.xlu0 %3141
          %3145 = vset.pattern.permute.xlu0 8
          %3146 = vperm.xlu0 %3145, %v2828
          %v3147 = vpop.permute.xlu0 %3146
          %v3149 = vmul.f32 %v2637, %v2832
          %v3150 = vmul.f32 %v2638, %v2837
          %v3151 = vmul.f32 %v2639, %v2842
          %v3152 = vmul.f32 %v2640, %v2847
          %v3153 = vmul.f32 %v2641, %v2852
          %v3154 = vmul.f32 %v2642, %v2857
          %v3155 = vmul.f32 %v2643, %v2862
          %v3156 = vmul.f32 %v2644, %v2867
          %v3157 = vmul.f32 %v2645, %v2872
          %v3158 = vmul.f32 %v2646, %v2877
          %v3159 = vmul.f32 %v2647, %v2882
          %v3160 = vmul.f32 %v2648, %v2887
          %v3161 = vmul.f32 %v2649, %v2892
          %v3162 = vmul.f32 %v2650, %v2897
          %v3163 = vmul.f32 %v2651, %v2902
          %v3164 = vmul.f32 %v2652, %v2907
          %v3165 = vmul.f32 %v2653, %v2912
          %v3166 = vmul.f32 %v2654, %v2917
          %v3167 = vmul.f32 %v2655, %v2922
          %v3168 = vmul.f32 %v2656, %v2927
          %v3169 = vmul.f32 %v2657, %v2932
          %v3170 = vmul.f32 %v2658, %v2937
          %v3171 = vmul.f32 %v2659, %v2942
          %v3172 = vmul.f32 %v2660, %v2947
          %v3173 = vmul.f32 %v2661, %v2952
          %v3174 = vmul.f32 %v2662, %v2957
          %v3175 = vmul.f32 %v2663, %v2962
          %v3176 = vmul.f32 %v2664, %v2967
          %v3177 = vmul.f32 %v2665, %v2972
          %v3178 = vmul.f32 %v2666, %v2977
          %v3179 = vmul.f32 %v2667, %v2982
          %v3180 = vmul.f32 %v2668, %v2987
          %v3181 = vmul.f32 %v2669, %v2992
          %v3182 = vmul.f32 %v2670, %v2997
          %v3183 = vmul.f32 %v2671, %v3002
          %v3184 = vmul.f32 %v2672, %v3007
          %v3185 = vmul.f32 %v2673, %v3012
          %v3186 = vmul.f32 %v2674, %v3017
          %v3187 = vmul.f32 %v2675, %v3022
          %v3188 = vmul.f32 %v2676, %v3027
          %v3189 = vmul.f32 %v2677, %v3032
          %v3190 = vmul.f32 %v2678, %v3037
          %v3191 = vmul.f32 %v2679, %v3042
          %v3192 = vmul.f32 %v2680, %v3047
          %v3193 = vmul.f32 %v2681, %v3052
          %v3194 = vmul.f32 %v2682, %v3057
          %v3195 = vmul.f32 %v2683, %v3062
          %v3196 = vmul.f32 %v2684, %v3067
          %v3197 = vmul.f32 %v2685, %v3072
          %v3198 = vmul.f32 %v2686, %v3077
          %v3199 = vmul.f32 %v2687, %v3082
          %v3200 = vmul.f32 %v2688, %v3087
          %v3201 = vmul.f32 %v2689, %v3092
          %v3202 = vmul.f32 %v2690, %v3097
          %v3203 = vmul.f32 %v2691, %v3102
          %v3204 = vmul.f32 %v2692, %v3107
          %v3205 = vmul.f32 %v2693, %v3112
          %v3206 = vmul.f32 %v2694, %v3117
          %v3207 = vmul.f32 %v2695, %v3122
          %v3208 = vmul.f32 %v2696, %v3127
          %v3209 = vmul.f32 %v2697, %v3132
          %v3210 = vmul.f32 %v2698, %v3137
          %v3211 = vmul.f32 %v2699, %v3142
          %v3212 = vmul.f32 %v2700, %v3147
          %vm3213 = vcmask 64512
          %v3214 = vsel %vm3213, %v3149, 0.0
          %v3215 = vsel %vm3213, %v3165, 0.0
          %v3216 = vadd.f32 %v3214, %v3215
          %v3217 = vsel %vm3213, %v3181, 0.0
          %v3218 = vadd.f32 %v3216, %v3217
          %v3219 = vsel %vm3213, %v3197, 0.0
          %v3220 = vadd.f32 %v3218, %v3219
          %v3221 = vsel %vm3213, %v3150, 0.0
          %v3222 = vsel %vm3213, %v3166, 0.0
          %v3223 = vadd.f32 %v3221, %v3222
          %v3224 = vsel %vm3213, %v3182, 0.0
          %v3225 = vadd.f32 %v3223, %v3224
          %v3226 = vsel %vm3213, %v3198, 0.0
          %v3227 = vadd.f32 %v3225, %v3226
          %v3228 = vsel %vm3213, %v3151, 0.0
          %v3229 = vsel %vm3213, %v3167, 0.0
          %v3230 = vadd.f32 %v3228, %v3229
          %v3231 = vsel %vm3213, %v3183, 0.0
          %v3232 = vadd.f32 %v3230, %v3231
          %v3233 = vsel %vm3213, %v3199, 0.0
          %v3234 = vadd.f32 %v3232, %v3233
          %v3235 = vsel %vm3213, %v3152, 0.0
          %v3236 = vsel %vm3213, %v3168, 0.0
          %v3237 = vadd.f32 %v3235, %v3236
          %v3238 = vsel %vm3213, %v3184, 0.0
          %v3239 = vadd.f32 %v3237, %v3238
          %v3240 = vsel %vm3213, %v3200, 0.0
          %v3241 = vadd.f32 %v3239, %v3240
          %v3242 = vsel %vm3213, %v3153, 0.0
          %v3243 = vsel %vm3213, %v3169, 0.0
          %v3244 = vadd.f32 %v3242, %v3243
          %v3245 = vsel %vm3213, %v3185, 0.0
          %v3246 = vadd.f32 %v3244, %v3245
          %v3247 = vsel %vm3213, %v3201, 0.0
          %v3248 = vadd.f32 %v3246, %v3247
          %v3249 = vsel %vm3213, %v3154, 0.0
          %v3250 = vsel %vm3213, %v3170, 0.0
          %v3251 = vadd.f32 %v3249, %v3250
          %v3252 = vsel %vm3213, %v3186, 0.0
          %v3253 = vadd.f32 %v3251, %v3252
          %v3254 = vsel %vm3213, %v3202, 0.0
          %v3255 = vadd.f32 %v3253, %v3254
          %v3256 = vsel %vm3213, %v3155, 0.0
          %v3257 = vsel %vm3213, %v3171, 0.0
          %v3258 = vadd.f32 %v3256, %v3257
          %v3259 = vsel %vm3213, %v3187, 0.0
          %v3260 = vadd.f32 %v3258, %v3259
          %v3261 = vsel %vm3213, %v3203, 0.0
          %v3262 = vadd.f32 %v3260, %v3261
          %v3263 = vsel %vm3213, %v3156, 0.0
          %v3264 = vsel %vm3213, %v3172, 0.0
          %v3265 = vadd.f32 %v3263, %v3264
          %v3266 = vsel %vm3213, %v3188, 0.0
          %v3267 = vadd.f32 %v3265, %v3266
          %v3268 = vsel %vm3213, %v3204, 0.0
          %v3269 = vadd.f32 %v3267, %v3268
          %v3270 = vsel %vm3213, %v3157, 0.0
          %v3271 = vsel %vm3213, %v3173, 0.0
          %v3272 = vadd.f32 %v3270, %v3271
          %v3273 = vsel %vm3213, %v3189, 0.0
          %v3274 = vadd.f32 %v3272, %v3273
          %v3275 = vsel %vm3213, %v3205, 0.0
          %v3276 = vadd.f32 %v3274, %v3275
          %v3277 = vsel %vm3213, %v3158, 0.0
          %v3278 = vsel %vm3213, %v3174, 0.0
          %v3279 = vadd.f32 %v3277, %v3278
          %v3280 = vsel %vm3213, %v3190, 0.0
          %v3281 = vadd.f32 %v3279, %v3280
          %v3282 = vsel %vm3213, %v3206, 0.0
          %v3283 = vadd.f32 %v3281, %v3282
          %v3284 = vsel %vm3213, %v3159, 0.0
          %v3285 = vsel %vm3213, %v3175, 0.0
          %v3286 = vadd.f32 %v3284, %v3285
          %v3287 = vsel %vm3213, %v3191, 0.0
          %v3288 = vadd.f32 %v3286, %v3287
          %v3289 = vsel %vm3213, %v3207, 0.0
          %v3290 = vadd.f32 %v3288, %v3289
          %v3291 = vsel %vm3213, %v3160, 0.0
          %v3292 = vsel %vm3213, %v3176, 0.0
          %v3293 = vadd.f32 %v3291, %v3292
          %v3294 = vsel %vm3213, %v3192, 0.0
          %v3295 = vadd.f32 %v3293, %v3294
          %v3296 = vsel %vm3213, %v3208, 0.0
          %v3297 = vadd.f32 %v3295, %v3296
          %v3298 = vsel %vm3213, %v3161, 0.0
          %v3299 = vsel %vm3213, %v3177, 0.0
          %v3300 = vadd.f32 %v3298, %v3299
          %v3301 = vsel %vm3213, %v3193, 0.0
          %v3302 = vadd.f32 %v3300, %v3301
          %v3303 = vsel %vm3213, %v3209, 0.0
          %v3304 = vadd.f32 %v3302, %v3303
          %v3305 = vsel %vm3213, %v3162, 0.0
          %v3306 = vsel %vm3213, %v3178, 0.0
          %v3307 = vadd.f32 %v3305, %v3306
          %v3308 = vsel %vm3213, %v3194, 0.0
          %v3309 = vadd.f32 %v3307, %v3308
          %v3310 = vsel %vm3213, %v3210, 0.0
          %v3311 = vadd.f32 %v3309, %v3310
          %v3312 = vsel %vm3213, %v3163, 0.0
          %v3313 = vsel %vm3213, %v3179, 0.0
          %v3314 = vadd.f32 %v3312, %v3313
          %v3315 = vsel %vm3213, %v3195, 0.0
          %v3316 = vadd.f32 %v3314, %v3315
          %v3317 = vsel %vm3213, %v3211, 0.0
          %v3318 = vadd.f32 %v3316, %v3317
          %v3319 = vsel %vm3213, %v3164, 0.0
          %v3320 = vsel %vm3213, %v3180, 0.0
          %v3321 = vadd.f32 %v3319, %v3320
          %v3322 = vsel %vm3213, %v3196, 0.0
          %v3323 = vadd.f32 %v3321, %v3322
          %v3324 = vsel %vm3213, %v3212, 0.0
          %v3325 = vadd.f32 %v3323, %v3324
          %v3326 = vrcp.pop 4.0
          %v3327 = vmul.f32 %v3220, %v3326
          %v3328 = vmul.f32 %v3227, %v3326
          %v3329 = vmul.f32 %v3234, %v3326
          %v3330 = vmul.f32 %v3241, %v3326
          %v3331 = vmul.f32 %v3248, %v3326
          %v3332 = vmul.f32 %v3255, %v3326
          %v3333 = vmul.f32 %v3262, %v3326
          %v3334 = vmul.f32 %v3269, %v3326
          %v3335 = vmul.f32 %v3276, %v3326
          %v3336 = vmul.f32 %v3283, %v3326
          %v3337 = vmul.f32 %v3290, %v3326
          %v3338 = vmul.f32 %v3297, %v3326
          %v3339 = vmul.f32 %v3304, %v3326
          %v3340 = vmul.f32 %v3311, %v3326
          %v3341 = vmul.f32 %v3318, %v3326
          %v3342 = vmul.f32 %v3325, %v3326
          %v3343 = vld [vmem:[#allocation12] sm:$0x1]
          %v3345 = vlaneseq
          %v3346 = vshrl.u32 %v3345, 7
          %v3347 = vsub.s32 0, %v3346
          %v3348 = vrot.slane %v3343, %v3347
          %v3350 = vadd.f32 %v3327, %v3348
          %v3351 = vadd.f32 %v3328, %v3348
          %v3352 = vadd.f32 %v3329, %v3348
          %v3353 = vadd.f32 %v3330, %v3348
          %v3354 = vadd.f32 %v3331, %v3348
          %v3355 = vadd.f32 %v3332, %v3348
          %v3356 = vadd.f32 %v3333, %v3348
          %v3357 = vadd.f32 %v3334, %v3348
          %v3358 = vadd.f32 %v3335, %v3348
          %v3359 = vadd.f32 %v3336, %v3348
          %v3360 = vadd.f32 %v3337, %v3348
          %v3361 = vadd.f32 %v3338, %v3348
          %v3362 = vadd.f32 %v3339, %v3348
          %v3363 = vadd.f32 %v3340, %v3348
          %v3364 = vadd.f32 %v3341, %v3348
          %v3365 = vadd.f32 %v3342, %v3348
          %3366 = vst.msk [vmem:[%s381] sm:$0xff] %vm3213, %v3350
          %3367 = vst.msk [vmem:[%s381 + $0x8] sm:$0xff] %vm3213, %v3351
          %3368 = vst.msk [vmem:[%s381 + $0x10] sm:$0xff] %vm3213, %v3352
          %3369 = vst.msk [vmem:[%s381 + $0x18] sm:$0xff] %vm3213, %v3353
          %3370 = vst.msk [vmem:[%s381 + $0x20] sm:$0xff] %vm3213, %v3354
          %3371 = vst.msk [vmem:[%s381 + $0x28] sm:$0xff] %vm3213, %v3355
          %3372 = vst.msk [vmem:[%s381 + $0x30] sm:$0xff] %vm3213, %v3356
          %3373 = vst.msk [vmem:[%s381 + $0x38] sm:$0xff] %vm3213, %v3357
          %3374 = vst.msk [vmem:[%s381 + $0x40] sm:$0xff] %vm3213, %v3358
          %3375 = vst.msk [vmem:[%s381 + $0x48] sm:$0xff] %vm3213, %v3359
          %3376 = vst.msk [vmem:[%s381 + $0x50] sm:$0xff] %vm3213, %v3360
          %3377 = vst.msk [vmem:[%s381 + $0x58] sm:$0xff] %vm3213, %v3361
          %3378 = vst.msk [vmem:[%s381 + $0x60] sm:$0xff] %vm3213, %v3362
          %3379 = vst.msk [vmem:[%s381 + $0x68] sm:$0xff] %vm3213, %v3363
          %3380 = vst.msk [vmem:[%s381 + $0x70] sm:$0xff] %vm3213, %v3364
          %3381 = vst.msk [vmem:[%s381 + $0x78] sm:$0xff] %vm3213, %v3365
        $region68: #{tpu_custom_call.1} parent=39 // pred_fallthru
          _
        %s3382 = sand.u32 %s175, 1
        %s3383 = scalar_lea.sflag [#allocation6], %s3382
        %s3384 = sand.u32 %s175, 1
        %s3385 = smul.addr %s3384, 128
        %s3386 = scalar_lea.vmem [#allocation13], %s3385
        // Predicated region
        $region69: #{tpu_custom_call.1} parent=39 // pred_check
          %p3387 = pneg %p185
        $region70: #{tpu_custom_call.1} parent=39 // pred_check_branch
          %3389 = sbr.rel (%p3387) target = $region72
        $region71: #{tpu_custom_call.1} parent=39 // pred_region
          %s3390 = smul.u32 16, %s32
          %s3392 = ssub.s32 2048, 2048
          %3393 = vsyncadd %s3383, %s3392
          %s3394 = smul.addr %s3390, 128
          %s3395 = scalar_lea.hbm %s5, %s3394
          %s3396 = sshll.u32 %s3386, 4
          %s3397 = int_to_ptr.vmem [resolvable:$true] %s3396
          %3402 = dma.vmem_to_hbm [thread:$0]  %s3397, 2048, %s3395, %s3383, 128, 128, 8
        $region72: #{tpu_custom_call.1} parent=39 // pred_fallthru
          _
      $region40: #{tpu_custom_call.1} parent=5 // pred_fallthru
        _
      %p3403 = scmp.le.s32.totalorder 2, %s23
      // Predicated region
      $region73: #{tpu_custom_call.1} parent=5 // pred_check
        %p3404 = pneg %p3403
      $region74: #{tpu_custom_call.1} parent=5 // pred_check_branch
        %3406 = sbr.rel (%p3404) target = $region76
      $region75: #{tpu_custom_call.1} parent=5 // pred_region
        %s3407 = ssub.s32 %s23, 2
        // Predicated region
        $region77: #{tpu_custom_call.1} parent=75 // pred_check
          %p3408 = pneg %p191
        $region78: #{tpu_custom_call.1} parent=75 // pred_check_branch
          %3410 = sbr.rel (%p3408) target = $region80
        $region79: #{tpu_custom_call.1} parent=75 // pred_region
          %s3411 = sand.u32 %s176, 1
          %s3412 = scalar_lea.sflag [#allocation6], %s3411
          %s3413 = sand.u32 %s176, 1
          %s3414 = smul.addr %s3413, 128
          %s3415 = scalar_lea.vmem [#allocation13], %s3414
          %3416 = dma.done %s3412, 2048
        $region80: #{tpu_custom_call.1} parent=75 // pred_fallthru
          _
      $region76: #{tpu_custom_call.1} parent=5 // pred_fallthru
        _
    $region6: #{tpu_custom_call.1} parent=1 // loop_footer
      %s27 = sadd.s32 1, %s23
    $region7: #{tpu_custom_call.1} parent=1 // loop_footer_branch
      %22 = sbr.rel target = $region3
    $region8: #{tpu_custom_call.1} parent=1 // loop_exit
      _
    %3417 = vsyncpa [#allocation5], 1
    %s3418 = scalar_lea.sflag [#allocation5], 1
    %3419 = vsyncpa %s3418, 1
    %3420 = vsyncpa [#allocation8], 1
    %s3421 = scalar_lea.sflag [#allocation8], 1
    %3422 = vsyncpa %s3421, 1
    %3423 = vsyncpa [#allocation11], 1
    %s3424 = scalar_lea.sflag [#allocation11], 1
    %3425 = vsyncpa %s3424, 1
    %3426 = vsyncpa [#allocation6], 1
    %s3427 = scalar_lea.sflag [#allocation6], 1
    %3428 = vsyncpa %s3427, 1

</llo_original>
